<compile_context>
chip_gen: v7x
topology: tpu7x:2x2x1
jax: 0.10.0
libtpu: 0.0.40
codegen_flags: <defaults>
</compile_context>

<pallas_src>
import numpy as np
import jax
import jax.numpy as jnp
from jax import lax
from jax.experimental import pallas as pl
from jax.experimental.pallas import tpu as pltpu


def _round_up(x, m):
    return (x + m - 1) // m * m


def _grouped_to_dense_flat(wdw, n_groups):
    """PyTorch grouped weight (mid, mid//g, 5, 5) -> dense (mid, 25*mid) with
    K ordered [tap-major, in-channel-minor] and zeros outside the groups."""
    mid, gpc, kh, kw = wdw.shape
    wnp = np.asarray(wdw, np.float32)
    dense = np.zeros((mid, kh * kw, mid), np.float32)      # (oc, tap, ic)
    out_per_group = mid // n_groups
    for oc in range(mid):
        g = oc // out_per_group
        for icl in range(gpc):
            dense[oc, :, g * gpc + icl] = wnp[oc, icl].reshape(kh * kw)
    return dense.reshape(mid, kh * kw * mid)                # (mid, 25*mid)


def make_params(key, mid=16, n_in=4, n_out=3):
    ks = jax.random.split(key, 6)
    gpc = mid // n_in  # in-channels per group (groups = n_fea_in = 4)
    return dict(
        w1=jax.random.normal(ks[0], (mid, n_in, 1, 1), jnp.float32) * 0.2,
        b1=jax.random.normal(ks[1], (mid,), jnp.float32) * 0.1,
        wdw=jax.random.normal(ks[2], (mid, gpc, 5, 5), jnp.float32) * 0.1,
        bdw=jax.random.normal(ks[3], (mid,), jnp.float32) * 0.1,
        w2=jax.random.normal(ks[4], (n_out, mid, 1, 1), jnp.float32) * 0.2,
        b2=jax.random.normal(ks[5], (n_out,), jnp.float32) * 0.1,
    )


def illumination_estimator_pallas(img_nchw, params):
    N, C, H, W = img_nchw.shape
    assert C == 3
    mid = params["b1"].shape[0]
    assert mid % 4 == 0
    Wp = W + 4                        # row-padded width (4 trailing zero cols)
    HWP = H * Wp                      # flattened padded spatial extent
    TOP = _round_up(2 * Wp + 2, 128)  # lane-aligned halo on each side

    # Fold several batch images into one grid step when the spatial extent is
    # small (amortizes per-grid-step overhead); B_STEP always divides N.
    B_STEP = 1
    for cand in range(min(N, 8), 0, -1):
        if N % cand == 0 and cand * HWP <= 16384:
            B_STEP = cand
            break

    # ---- parameter glue (plain JAX / numpy, tiny) --------------------------
    w1 = params["w1"][:, :, 0, 0]                               # (mid, 4)
    w1_eff = w1[:, :3] + w1[:, 3:4] * (1.0 / 3.0)               # fold mean channel
    b1 = params["b1"][:, None]                                  # (mid, 1)
    wdw_flat = jnp.asarray(
        _grouped_to_dense_flat(params["wdw"], n_groups=4), jnp.bfloat16)  # (mid, 25*mid)
    bdw = params["bdw"][:, None]                                # (mid, 1)
    w2 = params["w2"][:, :, 0, 0]                               # (3, mid)
    b2 = params["b2"][:, None]                                  # (3, 1)

    # Row-pad the image (4 trailing zero columns per row) and flatten spatial.
    img_p = jnp.pad(img_nchw.astype(jnp.float32),
                    ((0, 0), (0, 0), (0, 0), (0, 4))).reshape(N, 3, HWP)
    # 1.0 on real columns, 0.0 on the 4 gap columns of each row.
    cmask = jnp.tile(jnp.arange(Wp) < W, H).astype(jnp.float32)[None, :]   # (1, HWP)

    def kernel(img_ref, cmask_ref, w1_ref, b1_ref, wdw_ref, bdw_ref, w2_ref,
               b2_ref, fea_ref, map_ref, xpad_ref, stack_ref):
        # Zero the vertical halo strips every step (cheap, megacore-safe).
        xpad_ref[:, 0:TOP] = jnp.zeros((mid, TOP), jnp.bfloat16)
        xpad_ref[:, TOP + HWP:TOP + HWP + TOP] = jnp.zeros((mid, TOP), jnp.bfloat16)

        cm = cmask_ref[...]                                     # (1, HWP)

        for b in range(B_STEP):                                 # static unroll
            img = img_ref[b]                                    # (3, HWP), gaps are 0

            # conv1 (1x1) with the mean channel folded into the weight; the
            # single multiply re-zeroes the gap columns (bias leak).
            x1 = jnp.dot(w1_ref[...], img, preferred_element_type=jnp.float32)
            x1 = (x1 + b1_ref[...]) * cm                        # (mid, HWP)
            xpad_ref[:, TOP:TOP + HWP] = x1.astype(jnp.bfloat16)

            # im2col: 25 contiguous, unmasked shifted windows stacked along K.
            for ky in range(5):
                for kx in range(5):
                    t = ky * 5 + kx
                    off = TOP + (ky - 2) * Wp + (kx - 2)
                    stack_ref[t * mid:(t + 1) * mid, :] = xpad_ref[:, off:off + HWP]

            # grouped 5x5 conv == ONE (mid, 25*mid) @ (25*mid, HWP) matmul.
            fea = jnp.dot(wdw_ref[...], stack_ref[...],
                          preferred_element_type=jnp.float32) + bdw_ref[...]
            fea_ref[b] = fea

            # conv2 (1x1): mid -> 3.
            map_ref[b] = jnp.dot(w2_ref[...], fea,
                                 preferred_element_type=jnp.float32) + b2_ref[...]

    # Size the scoped VMEM limit from the actual working set (with headroom).
    vm_bytes = (2 * B_STEP * 3 * HWP * 4          # img blocks (double-buffered)
                + 2 * B_STEP * mid * HWP * 4      # fea out blocks
                + 2 * B_STEP * 3 * HWP * 4        # map out blocks
                + (2 * TOP + HWP) * mid * 2       # xpad scratch (bf16)
                + 25 * mid * HWP * 2              # im2col stack (bf16)
                + 2 * (HWP * 4 + mid * 25 * mid * 2 + 64 * mid))  # mask + weights
    vmem_limit = int(min(64 * 2 ** 20, max(32 * 2 ** 20, int(vm_bytes * 1.5) + (1 << 20))))

    grid_spec = pltpu.PrefetchScalarGridSpec(
        num_scalar_prefetch=0,
        grid=(N // B_STEP,),
        in_specs=[
            pl.BlockSpec((B_STEP, 3, HWP), lambda n: (n, 0, 0)),
            pl.BlockSpec((1, HWP), lambda n: (0, 0)),
            pl.BlockSpec((mid, 3), lambda n: (0, 0)),
            pl.BlockSpec((mid, 1), lambda n: (0, 0)),
            pl.BlockSpec((mid, 25 * mid), lambda n: (0, 0)),
            pl.BlockSpec((mid, 1), lambda n: (0, 0)),
            pl.BlockSpec((3, mid), lambda n: (0, 0)),
            pl.BlockSpec((3, 1), lambda n: (0, 0)),
        ],
        out_specs=[
            pl.BlockSpec((B_STEP, mid, HWP), lambda n: (n, 0, 0)),
            pl.BlockSpec((B_STEP, 3, HWP), lambda n: (n, 0, 0)),
        ],
        scratch_shapes=[
            pltpu.VMEM((mid, 2 * TOP + HWP), jnp.bfloat16),     # halo-padded x1
            pltpu.VMEM((25 * mid, HWP), jnp.bfloat16),          # im2col stack
        ],
    )

    fea_full, map_full = pl.pallas_call(
        kernel,
        out_shape=(jax.ShapeDtypeStruct((N, mid, HWP), jnp.float32),
                   jax.ShapeDtypeStruct((N, 3, HWP), jnp.float32)),
        grid_spec=grid_spec,
        compiler_params=pltpu.CompilerParams(
            dimension_semantics=("parallel",),
            vmem_limit_bytes=vmem_limit),
    )(img_p, cmask, w1_eff, b1, wdw_flat, bdw, w2, b2)

    # TODO(synk): for very large H*W (e.g. 512x512 at mid=16, or 256x256+ at
    # RetinexFormer's mid=40 on v7x's 64 MiB VMEM) add a spatially row-tiled
    # grid axis with a 2-row halo instead of whole-image blocks.
    fea = fea_full.reshape(N, mid, H, Wp)[:, :, :, :W]
    imap = map_full.reshape(N, 3, H, Wp)[:, :, :, :W]
    return fea, imap


def illumination_estimator_ref(img, params):
    """Pure-JAX NCHW reference (mirrors the PyTorch module exactly, f32)."""
    dn = ("NCHW", "OIHW", "NCHW")
    mean_c = jnp.mean(img, axis=1, keepdims=True)
    inp = jnp.concatenate([img, mean_c], axis=1)
    x1 = lax.conv_general_dilated(inp, params["w1"], (1, 1), "VALID",
                                  dimension_numbers=dn,
                                  precision=lax.Precision.HIGHEST) \
        + params["b1"][None, :, None, None]
    fea = lax.conv_general_dilated(x1, params["wdw"], (1, 1), [(2, 2), (2, 2)],
                                   dimension_numbers=dn, feature_group_count=4,
                                   precision=lax.Precision.HIGHEST) \
        + params["bdw"][None, :, None, None]
    out = lax.conv_general_dilated(fea, params["w2"], (1, 1), "VALID",
                                   dimension_numbers=dn,
                                   precision=lax.Precision.HIGHEST) \
        + params["b2"][None, :, None, None]
    return fea, out


if __name__ == "__main__":
    key = jax.random.PRNGKey(0)
    k_img, k_par = jax.random.split(key)

    N, H, W = 2, 16, 16
    n_fea_middle = 16                       # divisible by groups=4
    img = jax.random.normal(k_img, (N, 3, H, W), jnp.float32)
    params = make_params(k_par, mid=n_fea_middle)

    illu_fea, illu_map = illumination_estimator_pallas(img, params)
    jax.block_until_ready((illu_fea, illu_map))

    fea_r, map_r = illumination_estimator_ref(img, params)
    # depth_conv runs in bf16 with f32 accumulation -> slightly looser tolerance.
    np.testing.assert_allclose(np.asarray(illu_fea), np.asarray(fea_r),
                               rtol=2e-2, atol=2e-2)
    np.testing.assert_allclose(np.asarray(illu_map), np.asarray(map_r),
                               rtol=2e-2, atol=2e-2)
    print("KERNEL_OK")
</pallas_src>

<mosaic_0001>
module attributes {stable_mosaic.version = 11 : i64} {
  func.func @kernel(%arg0: i32, %arg1: memref<2x3x320xf32, #tpu.memory_space<vmem>>, %arg2: memref<1x320xf32, #tpu.memory_space<vmem>>, %arg3: memref<16x3xf32, #tpu.memory_space<vmem>>, %arg4: memref<16x1xf32, #tpu.memory_space<vmem>>, %arg5: memref<16x400xbf16, #tpu.memory_space<vmem>>, %arg6: memref<16x1xf32, #tpu.memory_space<vmem>>, %arg7: memref<3x16xf32, #tpu.memory_space<vmem>>, %arg8: memref<3x1xf32, #tpu.memory_space<vmem>>, %arg9: memref<2x16x320xf32, #tpu.memory_space<vmem>>, %arg10: memref<2x3x320xf32, #tpu.memory_space<vmem>>, %arg11: memref<16x576xbf16, #tpu.memory_space<vmem>>, %arg12: memref<400x320xbf16, #tpu.memory_space<vmem>>) attributes {dimension_semantics = [#tpu.dimension_semantics<parallel>], iteration_bounds = array<i64: 1>, scalar_prefetch = 0 : i64, scratch_operands = 2 : i64, tpu.core_type = #tpu.core_type<tc>, window_params = [{transform_indices = @transform_0, window_bounds = array<i64: 2, 3, 320>}, {pipeline_mode = #tpu.pipeline_mode<synchronous>, transform_indices = @transform_1, window_bounds = array<i64: 1, 320>}, {pipeline_mode = #tpu.pipeline_mode<synchronous>, transform_indices = @transform_2, window_bounds = array<i64: 16, 3>}, {pipeline_mode = #tpu.pipeline_mode<synchronous>, transform_indices = @transform_3, window_bounds = array<i64: 16, 1>}, {pipeline_mode = #tpu.pipeline_mode<synchronous>, transform_indices = @transform_4, window_bounds = array<i64: 16, 400>}, {pipeline_mode = #tpu.pipeline_mode<synchronous>, transform_indices = @transform_5, window_bounds = array<i64: 16, 1>}, {pipeline_mode = #tpu.pipeline_mode<synchronous>, transform_indices = @transform_6, window_bounds = array<i64: 3, 16>}, {pipeline_mode = #tpu.pipeline_mode<synchronous>, transform_indices = @transform_7, window_bounds = array<i64: 3, 1>}, {transform_indices = @transform_8, window_bounds = array<i64: 2, 16, 320>}, {transform_indices = @transform_9, window_bounds = array<i64: 2, 3, 320>}]} {
    %cst = arith.constant 0.000000e+00 : bf16
    %0 = vector.broadcast %cst : bf16 to vector<16x128xbf16>
    %c0 = arith.constant 0 : index
    %c0_0 = arith.constant 0 : index
    %1 = vector.load %arg11[%c0, %c0_0] : memref<16x576xbf16, #tpu.memory_space<vmem>>, vector<16x128xbf16>
    tpu.vector_store %arg11[%c0, %c0_0], %0 {strides = array<i32>} : memref<16x576xbf16, #tpu.memory_space<vmem>>, vector<16x128xbf16>,
    %cst_1 = arith.constant 0.000000e+00 : bf16
    %2 = vector.broadcast %cst_1 : bf16 to vector<16x128xbf16>
    %c0_2 = arith.constant 0 : index
    %c448 = arith.constant 448 : index
    %3 = vector.load %arg11[%c0_2, %c448] : memref<16x576xbf16, #tpu.memory_space<vmem>>, vector<16x128xbf16>
    tpu.vector_store %arg11[%c0_2, %c448], %2 {strides = array<i32>} : memref<16x576xbf16, #tpu.memory_space<vmem>>, vector<16x128xbf16>,
    %c0_3 = arith.constant 0 : index
    %c0_4 = arith.constant 0 : index
    %4 = vector.load %arg2[%c0_3, %c0_4] : memref<1x320xf32, #tpu.memory_space<vmem>>, vector<1x320xf32>
    %c0_5 = arith.constant 0 : index
    %c0_6 = arith.constant 0 : index
    %c0_7 = arith.constant 0 : index
    %5 = vector.load %arg1[%c0_5, %c0_6, %c0_7] : memref<2x3x320xf32, #tpu.memory_space<vmem>>, vector<1x3x320xf32>
    %6 = vector.shape_cast %5 : vector<1x3x320xf32> to vector<3x320xf32>
    %c0_8 = arith.constant 0 : index
    %c0_9 = arith.constant 0 : index
    %7 = vector.load %arg3[%c0_8, %c0_9] : memref<16x3xf32, #tpu.memory_space<vmem>>, vector<16x3xf32>
    %cst_10 = arith.constant dense<0.000000e+00> : vector<16x320xf32>
    %8 = tpu.matmul %7, %6, %cst_10 {dimension_numbers = #tpu.dot_dimension_numbers<[1], [0], [0], [1], [0, 0, 1, 1], [], []>} : vector<16x3xf32>, vector<3x320xf32>, vector<16x320xf32> -> vector<16x320xf32>
    %c0_11 = arith.constant 0 : index
    %c0_12 = arith.constant 0 : index
    %9 = vector.load %arg4[%c0_11, %c0_12] : memref<16x1xf32, #tpu.memory_space<vmem>>, vector<16x1xf32>
    %10 = vector.broadcast %9 : vector<16x1xf32> to vector<16x320xf32>
    %11 = arith.addf %8, %10 : vector<16x320xf32>
    %12 = vector.broadcast %4 : vector<1x320xf32> to vector<16x320xf32>
    %13 = arith.mulf %11, %12 : vector<16x320xf32>
    %14 = arith.truncf %13 : vector<16x320xf32> to vector<16x320xbf16>
    %c0_13 = arith.constant 0 : index
    %c128 = arith.constant 128 : index
    %15 = vector.load %arg11[%c0_13, %c128] : memref<16x576xbf16, #tpu.memory_space<vmem>>, vector<16x320xbf16>
    tpu.vector_store %arg11[%c0_13, %c128], %14 {strides = array<i32>} : memref<16x576xbf16, #tpu.memory_space<vmem>>, vector<16x320xbf16>,
    %c0_14 = arith.constant 0 : index
    %c86 = arith.constant 86 : index
    %16 = vector.load %arg11[%c0_14, %c86] : memref<16x576xbf16, #tpu.memory_space<vmem>>, vector<16x320xbf16>
    %c0_15 = arith.constant 0 : index
    %c0_16 = arith.constant 0 : index
    %17 = vector.load %arg12[%c0_15, %c0_16] : memref<400x320xbf16, #tpu.memory_space<vmem>>, vector<16x320xbf16>
    tpu.vector_store %arg12[%c0_15, %c0_16], %16 {strides = array<i32>} : memref<400x320xbf16, #tpu.memory_space<vmem>>, vector<16x320xbf16>,
    %c0_17 = arith.constant 0 : index
    %c87 = arith.constant 87 : index
    %18 = vector.load %arg11[%c0_17, %c87] : memref<16x576xbf16, #tpu.memory_space<vmem>>, vector<16x320xbf16>
    %c16 = arith.constant 16 : index
    %c0_18 = arith.constant 0 : index
    %19 = vector.load %arg12[%c16, %c0_18] : memref<400x320xbf16, #tpu.memory_space<vmem>>, vector<16x320xbf16>
    tpu.vector_store %arg12[%c16, %c0_18], %18 {strides = array<i32>} : memref<400x320xbf16, #tpu.memory_space<vmem>>, vector<16x320xbf16>,
    %c0_19 = arith.constant 0 : index
    %c88 = arith.constant 88 : index
    %20 = vector.load %arg11[%c0_19, %c88] : memref<16x576xbf16, #tpu.memory_space<vmem>>, vector<16x320xbf16>
    %c32 = arith.constant 32 : index
    %c0_20 = arith.constant 0 : index
    %21 = vector.load %arg12[%c32, %c0_20] : memref<400x320xbf16, #tpu.memory_space<vmem>>, vector<16x320xbf16>
    tpu.vector_store %arg12[%c32, %c0_20], %20 {strides = array<i32>} : memref<400x320xbf16, #tpu.memory_space<vmem>>, vector<16x320xbf16>,
    %c0_21 = arith.constant 0 : index
    %c89 = arith.constant 89 : index
    %22 = vector.load %arg11[%c0_21, %c89] : memref<16x576xbf16, #tpu.memory_space<vmem>>, vector<16x320xbf16>
    %c48 = arith.constant 48 : index
    %c0_22 = arith.constant 0 : index
    %23 = vector.load %arg12[%c48, %c0_22] : memref<400x320xbf16, #tpu.memory_space<vmem>>, vector<16x320xbf16>
    tpu.vector_store %arg12[%c48, %c0_22], %22 {strides = array<i32>} : memref<400x320xbf16, #tpu.memory_space<vmem>>, vector<16x320xbf16>,
    %c0_23 = arith.constant 0 : index
    %c90 = arith.constant 90 : index
    %24 = vector.load %arg11[%c0_23, %c90] : memref<16x576xbf16, #tpu.memory_space<vmem>>, vector<16x320xbf16>
    %c64 = arith.constant 64 : index
    %c0_24 = arith.constant 0 : index
    %25 = vector.load %arg12[%c64, %c0_24] : memref<400x320xbf16, #tpu.memory_space<vmem>>, vector<16x320xbf16>
    tpu.vector_store %arg12[%c64, %c0_24], %24 {strides = array<i32>} : memref<400x320xbf16, #tpu.memory_space<vmem>>, vector<16x320xbf16>,
    %c0_25 = arith.constant 0 : index
    %c106 = arith.constant 106 : index
    %26 = vector.load %arg11[%c0_25, %c106] : memref<16x576xbf16, #tpu.memory_space<vmem>>, vector<16x320xbf16>
    %c80 = arith.constant 80 : index
    %c0_26 = arith.constant 0 : index
    %27 = vector.load %arg12[%c80, %c0_26] : memref<400x320xbf16, #tpu.memory_space<vmem>>, vector<16x320xbf16>
    tpu.vector_store %arg12[%c80, %c0_26], %26 {strides = array<i32>} : memref<400x320xbf16, #tpu.memory_space<vmem>>, vector<16x320xbf16>,
    %c0_27 = arith.constant 0 : index
    %c107 = arith.constant 107 : index
    %28 = vector.load %arg11[%c0_27, %c107] : memref<16x576xbf16, #tpu.memory_space<vmem>>, vector<16x320xbf16>
    %c96 = arith.constant 96 : index
    %c0_28 = arith.constant 0 : index
    %29 = vector.load %arg12[%c96, %c0_28] : memref<400x320xbf16, #tpu.memory_space<vmem>>, vector<16x320xbf16>
    tpu.vector_store %arg12[%c96, %c0_28], %28 {strides = array<i32>} : memref<400x320xbf16, #tpu.memory_space<vmem>>, vector<16x320xbf16>,
    %c0_29 = arith.constant 0 : index
    %c108 = arith.constant 108 : index
    %30 = vector.load %arg11[%c0_29, %c108] : memref<16x576xbf16, #tpu.memory_space<vmem>>, vector<16x320xbf16>
    %c112 = arith.constant 112 : index
    %c0_30 = arith.constant 0 : index
    %31 = vector.load %arg12[%c112, %c0_30] : memref<400x320xbf16, #tpu.memory_space<vmem>>, vector<16x320xbf16>
    tpu.vector_store %arg12[%c112, %c0_30], %30 {strides = array<i32>} : memref<400x320xbf16, #tpu.memory_space<vmem>>, vector<16x320xbf16>,
    %c0_31 = arith.constant 0 : index
    %c109 = arith.constant 109 : index
    %32 = vector.load %arg11[%c0_31, %c109] : memref<16x576xbf16, #tpu.memory_space<vmem>>, vector<16x320xbf16>
    %c128_32 = arith.constant 128 : index
    %c0_33 = arith.constant 0 : index
    %33 = vector.load %arg12[%c128_32, %c0_33] : memref<400x320xbf16, #tpu.memory_space<vmem>>, vector<16x320xbf16>
    tpu.vector_store %arg12[%c128_32, %c0_33], %32 {strides = array<i32>} : memref<400x320xbf16, #tpu.memory_space<vmem>>, vector<16x320xbf16>,
    %c0_34 = arith.constant 0 : index
    %c110 = arith.constant 110 : index
    %34 = vector.load %arg11[%c0_34, %c110] : memref<16x576xbf16, #tpu.memory_space<vmem>>, vector<16x320xbf16>
    %c144 = arith.constant 144 : index
    %c0_35 = arith.constant 0 : index
    %35 = vector.load %arg12[%c144, %c0_35] : memref<400x320xbf16, #tpu.memory_space<vmem>>, vector<16x320xbf16>
    tpu.vector_store %arg12[%c144, %c0_35], %34 {strides = array<i32>} : memref<400x320xbf16, #tpu.memory_space<vmem>>, vector<16x320xbf16>,
    %c0_36 = arith.constant 0 : index
    %c126 = arith.constant 126 : index
    %36 = vector.load %arg11[%c0_36, %c126] : memref<16x576xbf16, #tpu.memory_space<vmem>>, vector<16x320xbf16>
    %c160 = arith.constant 160 : index
    %c0_37 = arith.constant 0 : index
    %37 = vector.load %arg12[%c160, %c0_37] : memref<400x320xbf16, #tpu.memory_space<vmem>>, vector<16x320xbf16>
    tpu.vector_store %arg12[%c160, %c0_37], %36 {strides = array<i32>} : memref<400x320xbf16, #tpu.memory_space<vmem>>, vector<16x320xbf16>,
    %c0_38 = arith.constant 0 : index
    %c127 = arith.constant 127 : index
    %38 = vector.load %arg11[%c0_38, %c127] : memref<16x576xbf16, #tpu.memory_space<vmem>>, vector<16x320xbf16>
    %c176 = arith.constant 176 : index
    %c0_39 = arith.constant 0 : index
    %39 = vector.load %arg12[%c176, %c0_39] : memref<400x320xbf16, #tpu.memory_space<vmem>>, vector<16x320xbf16>
    tpu.vector_store %arg12[%c176, %c0_39], %38 {strides = array<i32>} : memref<400x320xbf16, #tpu.memory_space<vmem>>, vector<16x320xbf16>,
    %c0_40 = arith.constant 0 : index
    %c128_41 = arith.constant 128 : index
    %40 = vector.load %arg11[%c0_40, %c128_41] : memref<16x576xbf16, #tpu.memory_space<vmem>>, vector<16x320xbf16>
    %c192 = arith.constant 192 : index
    %c0_42 = arith.constant 0 : index
    %41 = vector.load %arg12[%c192, %c0_42] : memref<400x320xbf16, #tpu.memory_space<vmem>>, vector<16x320xbf16>
    tpu.vector_store %arg12[%c192, %c0_42], %40 {strides = array<i32>} : memref<400x320xbf16, #tpu.memory_space<vmem>>, vector<16x320xbf16>,
    %c0_43 = arith.constant 0 : index
    %c129 = arith.constant 129 : index
    %42 = vector.load %arg11[%c0_43, %c129] : memref<16x576xbf16, #tpu.memory_space<vmem>>, vector<16x320xbf16>
    %c208 = arith.constant 208 : index
    %c0_44 = arith.constant 0 : index
    %43 = vector.load %arg12[%c208, %c0_44] : memref<400x320xbf16, #tpu.memory_space<vmem>>, vector<16x320xbf16>
    tpu.vector_store %arg12[%c208, %c0_44], %42 {strides = array<i32>} : memref<400x320xbf16, #tpu.memory_space<vmem>>, vector<16x320xbf16>,
    %c0_45 = arith.constant 0 : index
    %c130 = arith.constant 130 : index
    %44 = vector.load %arg11[%c0_45, %c130] : memref<16x576xbf16, #tpu.memory_space<vmem>>, vector<16x320xbf16>
    %c224 = arith.constant 224 : index
    %c0_46 = arith.constant 0 : index
    %45 = vector.load %arg12[%c224, %c0_46] : memref<400x320xbf16, #tpu.memory_space<vmem>>, vector<16x320xbf16>
    tpu.vector_store %arg12[%c224, %c0_46], %44 {strides = array<i32>} : memref<400x320xbf16, #tpu.memory_space<vmem>>, vector<16x320xbf16>,
    %c0_47 = arith.constant 0 : index
    %c146 = arith.constant 146 : index
    %46 = vector.load %arg11[%c0_47, %c146] : memref<16x576xbf16, #tpu.memory_space<vmem>>, vector<16x320xbf16>
    %c240 = arith.constant 240 : index
    %c0_48 = arith.constant 0 : index
    %47 = vector.load %arg12[%c240, %c0_48] : memref<400x320xbf16, #tpu.memory_space<vmem>>, vector<16x320xbf16>
    tpu.vector_store %arg12[%c240, %c0_48], %46 {strides = array<i32>} : memref<400x320xbf16, #tpu.memory_space<vmem>>, vector<16x320xbf16>,
    %c0_49 = arith.constant 0 : index
    %c147 = arith.constant 147 : index
    %48 = vector.load %arg11[%c0_49, %c147] : memref<16x576xbf16, #tpu.memory_space<vmem>>, vector<16x320xbf16>
    %c256 = arith.constant 256 : index
    %c0_50 = arith.constant 0 : index
    %49 = vector.load %arg12[%c256, %c0_50] : memref<400x320xbf16, #tpu.memory_space<vmem>>, vector<16x320xbf16>
    tpu.vector_store %arg12[%c256, %c0_50], %48 {strides = array<i32>} : memref<400x320xbf16, #tpu.memory_space<vmem>>, vector<16x320xbf16>,
    %c0_51 = arith.constant 0 : index
    %c148 = arith.constant 148 : index
    %50 = vector.load %arg11[%c0_51, %c148] : memref<16x576xbf16, #tpu.memory_space<vmem>>, vector<16x320xbf16>
    %c272 = arith.constant 272 : index
    %c0_52 = arith.constant 0 : index
    %51 = vector.load %arg12[%c272, %c0_52] : memref<400x320xbf16, #tpu.memory_space<vmem>>, vector<16x320xbf16>
    tpu.vector_store %arg12[%c272, %c0_52], %50 {strides = array<i32>} : memref<400x320xbf16, #tpu.memory_space<vmem>>, vector<16x320xbf16>,
    %c0_53 = arith.constant 0 : index
    %c149 = arith.constant 149 : index
    %52 = vector.load %arg11[%c0_53, %c149] : memref<16x576xbf16, #tpu.memory_space<vmem>>, vector<16x320xbf16>
    %c288 = arith.constant 288 : index
    %c0_54 = arith.constant 0 : index
    %53 = vector.load %arg12[%c288, %c0_54] : memref<400x320xbf16, #tpu.memory_space<vmem>>, vector<16x320xbf16>
    tpu.vector_store %arg12[%c288, %c0_54], %52 {strides = array<i32>} : memref<400x320xbf16, #tpu.memory_space<vmem>>, vector<16x320xbf16>,
    %c0_55 = arith.constant 0 : index
    %c150 = arith.constant 150 : index
    %54 = vector.load %arg11[%c0_55, %c150] : memref<16x576xbf16, #tpu.memory_space<vmem>>, vector<16x320xbf16>
    %c304 = arith.constant 304 : index
    %c0_56 = arith.constant 0 : index
    %55 = vector.load %arg12[%c304, %c0_56] : memref<400x320xbf16, #tpu.memory_space<vmem>>, vector<16x320xbf16>
    tpu.vector_store %arg12[%c304, %c0_56], %54 {strides = array<i32>} : memref<400x320xbf16, #tpu.memory_space<vmem>>, vector<16x320xbf16>,
    %c0_57 = arith.constant 0 : index
    %c166 = arith.constant 166 : index
    %56 = vector.load %arg11[%c0_57, %c166] : memref<16x576xbf16, #tpu.memory_space<vmem>>, vector<16x320xbf16>
    %c320 = arith.constant 320 : index
    %c0_58 = arith.constant 0 : index
    %57 = vector.load %arg12[%c320, %c0_58] : memref<400x320xbf16, #tpu.memory_space<vmem>>, vector<16x320xbf16>
    tpu.vector_store %arg12[%c320, %c0_58], %56 {strides = array<i32>} : memref<400x320xbf16, #tpu.memory_space<vmem>>, vector<16x320xbf16>,
    %c0_59 = arith.constant 0 : index
    %c167 = arith.constant 167 : index
    %58 = vector.load %arg11[%c0_59, %c167] : memref<16x576xbf16, #tpu.memory_space<vmem>>, vector<16x320xbf16>
    %c336 = arith.constant 336 : index
    %c0_60 = arith.constant 0 : index
    %59 = vector.load %arg12[%c336, %c0_60] : memref<400x320xbf16, #tpu.memory_space<vmem>>, vector<16x320xbf16>
    tpu.vector_store %arg12[%c336, %c0_60], %58 {strides = array<i32>} : memref<400x320xbf16, #tpu.memory_space<vmem>>, vector<16x320xbf16>,
    %c0_61 = arith.constant 0 : index
    %c168 = arith.constant 168 : index
    %60 = vector.load %arg11[%c0_61, %c168] : memref<16x576xbf16, #tpu.memory_space<vmem>>, vector<16x320xbf16>
    %c352 = arith.constant 352 : index
    %c0_62 = arith.constant 0 : index
    %61 = vector.load %arg12[%c352, %c0_62] : memref<400x320xbf16, #tpu.memory_space<vmem>>, vector<16x320xbf16>
    tpu.vector_store %arg12[%c352, %c0_62], %60 {strides = array<i32>} : memref<400x320xbf16, #tpu.memory_space<vmem>>, vector<16x320xbf16>,
    %c0_63 = arith.constant 0 : index
    %c169 = arith.constant 169 : index
    %62 = vector.load %arg11[%c0_63, %c169] : memref<16x576xbf16, #tpu.memory_space<vmem>>, vector<16x320xbf16>
    %c368 = arith.constant 368 : index
    %c0_64 = arith.constant 0 : index
    %63 = vector.load %arg12[%c368, %c0_64] : memref<400x320xbf16, #tpu.memory_space<vmem>>, vector<16x320xbf16>
    tpu.vector_store %arg12[%c368, %c0_64], %62 {strides = array<i32>} : memref<400x320xbf16, #tpu.memory_space<vmem>>, vector<16x320xbf16>,
    %c0_65 = arith.constant 0 : index
    %c170 = arith.constant 170 : index
    %64 = vector.load %arg11[%c0_65, %c170] : memref<16x576xbf16, #tpu.memory_space<vmem>>, vector<16x320xbf16>
    %c384 = arith.constant 384 : index
    %c0_66 = arith.constant 0 : index
    %65 = vector.load %arg12[%c384, %c0_66] : memref<400x320xbf16, #tpu.memory_space<vmem>>, vector<16x320xbf16>
    tpu.vector_store %arg12[%c384, %c0_66], %64 {strides = array<i32>} : memref<400x320xbf16, #tpu.memory_space<vmem>>, vector<16x320xbf16>,
    %c0_67 = arith.constant 0 : index
    %c0_68 = arith.constant 0 : index
    %66 = vector.load %arg5[%c0_67, %c0_68] : memref<16x400xbf16, #tpu.memory_space<vmem>>, vector<16x400xbf16>
    %c0_69 = arith.constant 0 : index
    %c0_70 = arith.constant 0 : index
    %67 = vector.load %arg12[%c0_69, %c0_70] : memref<400x320xbf16, #tpu.memory_space<vmem>>, vector<400x320xbf16>
    %cst_71 = arith.constant dense<0.000000e+00> : vector<16x320xf32>
    %68 = tpu.matmul %66, %67, %cst_71 {dimension_numbers = #tpu.dot_dimension_numbers<[1], [0], [0], [1], [0, 0, 1, 1], [], []>} : vector<16x400xbf16>, vector<400x320xbf16>, vector<16x320xf32> -> vector<16x320xf32>
    %c0_72 = arith.constant 0 : index
    %c0_73 = arith.constant 0 : index
    %69 = vector.load %arg6[%c0_72, %c0_73] : memref<16x1xf32, #tpu.memory_space<vmem>>, vector<16x1xf32>
    %70 = vector.broadcast %69 : vector<16x1xf32> to vector<16x320xf32>
    %71 = arith.addf %68, %70 : vector<16x320xf32>
    %c0_74 = arith.constant 0 : index
    %c0_75 = arith.constant 0 : index
    %c0_76 = arith.constant 0 : index
    %72 = vector.load %arg9[%c0_74, %c0_75, %c0_76] : memref<2x16x320xf32, #tpu.memory_space<vmem>>, vector<1x16x320xf32>
    %73 = vector.shape_cast %72 : vector<1x16x320xf32> to vector<16x320xf32>
    %74 = vector.shape_cast %71 : vector<16x320xf32> to vector<1x16x320xf32>
    tpu.vector_store %arg9[%c0_74, %c0_75, %c0_76], %74 {strides = array<i32>} : memref<2x16x320xf32, #tpu.memory_space<vmem>>, vector<1x16x320xf32>,
    %c0_77 = arith.constant 0 : index
    %c0_78 = arith.constant 0 : index
    %75 = vector.load %arg7[%c0_77, %c0_78] : memref<3x16xf32, #tpu.memory_space<vmem>>, vector<3x16xf32>
    %cst_79 = arith.constant dense<0.000000e+00> : vector<3x320xf32>
    %76 = tpu.matmul %75, %71, %cst_79 {dimension_numbers = #tpu.dot_dimension_numbers<[1], [0], [0], [1], [0, 0, 1, 1], [], []>} : vector<3x16xf32>, vector<16x320xf32>, vector<3x320xf32> -> vector<3x320xf32>
    %c0_80 = arith.constant 0 : index
    %c0_81 = arith.constant 0 : index
    %77 = vector.load %arg8[%c0_80, %c0_81] : memref<3x1xf32, #tpu.memory_space<vmem>>, vector<3x1xf32>
    %78 = vector.broadcast %77 : vector<3x1xf32> to vector<3x320xf32>
    %79 = arith.addf %76, %78 : vector<3x320xf32>
    %c0_82 = arith.constant 0 : index
    %c0_83 = arith.constant 0 : index
    %c0_84 = arith.constant 0 : index
    %80 = vector.load %arg10[%c0_82, %c0_83, %c0_84] : memref<2x3x320xf32, #tpu.memory_space<vmem>>, vector<1x3x320xf32>
    %81 = vector.shape_cast %80 : vector<1x3x320xf32> to vector<3x320xf32>
    %82 = vector.shape_cast %79 : vector<3x320xf32> to vector<1x3x320xf32>
    tpu.vector_store %arg10[%c0_82, %c0_83, %c0_84], %82 {strides = array<i32>} : memref<2x3x320xf32, #tpu.memory_space<vmem>>, vector<1x3x320xf32>,
    %c1 = arith.constant 1 : index
    %c0_85 = arith.constant 0 : index
    %c0_86 = arith.constant 0 : index
    %83 = vector.load %arg1[%c1, %c0_85, %c0_86] : memref<2x3x320xf32, #tpu.memory_space<vmem>>, vector<1x3x320xf32>
    %84 = vector.shape_cast %83 : vector<1x3x320xf32> to vector<3x320xf32>
    %c0_87 = arith.constant 0 : index
    %c0_88 = arith.constant 0 : index
    %85 = vector.load %arg3[%c0_87, %c0_88] : memref<16x3xf32, #tpu.memory_space<vmem>>, vector<16x3xf32>
    %cst_89 = arith.constant dense<0.000000e+00> : vector<16x320xf32>
    %86 = tpu.matmul %85, %84, %cst_89 {dimension_numbers = #tpu.dot_dimension_numbers<[1], [0], [0], [1], [0, 0, 1, 1], [], []>} : vector<16x3xf32>, vector<3x320xf32>, vector<16x320xf32> -> vector<16x320xf32>
    %c0_90 = arith.constant 0 : index
    %c0_91 = arith.constant 0 : index
    %87 = vector.load %arg4[%c0_90, %c0_91] : memref<16x1xf32, #tpu.memory_space<vmem>>, vector<16x1xf32>
    %88 = vector.broadcast %87 : vector<16x1xf32> to vector<16x320xf32>
    %89 = arith.addf %86, %88 : vector<16x320xf32>
    %90 = vector.broadcast %4 : vector<1x320xf32> to vector<16x320xf32>
    %91 = arith.mulf %89, %90 : vector<16x320xf32>
    %92 = arith.truncf %91 : vector<16x320xf32> to vector<16x320xbf16>
    %c0_92 = arith.constant 0 : index
    %c128_93 = arith.constant 128 : index
    %93 = vector.load %arg11[%c0_92, %c128_93] : memref<16x576xbf16, #tpu.memory_space<vmem>>, vector<16x320xbf16>
    tpu.vector_store %arg11[%c0_92, %c128_93], %92 {strides = array<i32>} : memref<16x576xbf16, #tpu.memory_space<vmem>>, vector<16x320xbf16>,
    %c0_94 = arith.constant 0 : index
    %c86_95 = arith.constant 86 : index
    %94 = vector.load %arg11[%c0_94, %c86_95] : memref<16x576xbf16, #tpu.memory_space<vmem>>, vector<16x320xbf16>
    %c0_96 = arith.constant 0 : index
    %c0_97 = arith.constant 0 : index
    %95 = vector.load %arg12[%c0_96, %c0_97] : memref<400x320xbf16, #tpu.memory_space<vmem>>, vector<16x320xbf16>
    tpu.vector_store %arg12[%c0_96, %c0_97], %94 {strides = array<i32>} : memref<400x320xbf16, #tpu.memory_space<vmem>>, vector<16x320xbf16>,
    %c0_98 = arith.constant 0 : index
    %c87_99 = arith.constant 87 : index
    %96 = vector.load %arg11[%c0_98, %c87_99] : memref<16x576xbf16, #tpu.memory_space<vmem>>, vector<16x320xbf16>
    %c16_100 = arith.constant 16 : index
    %c0_101 = arith.constant 0 : index
    %97 = vector.load %arg12[%c16_100, %c0_101] : memref<400x320xbf16, #tpu.memory_space<vmem>>, vector<16x320xbf16>
    tpu.vector_store %arg12[%c16_100, %c0_101], %96 {strides = array<i32>} : memref<400x320xbf16, #tpu.memory_space<vmem>>, vector<16x320xbf16>,
    %c0_102 = arith.constant 0 : index
    %c88_103 = arith.constant 88 : index
    %98 = vector.load %arg11[%c0_102, %c88_103] : memref<16x576xbf16, #tpu.memory_space<vmem>>, vector<16x320xbf16>
    %c32_104 = arith.constant 32 : index
    %c0_105 = arith.constant 0 : index
    %99 = vector.load %arg12[%c32_104, %c0_105] : memref<400x320xbf16, #tpu.memory_space<vmem>>, vector<16x320xbf16>
    tpu.vector_store %arg12[%c32_104, %c0_105], %98 {strides = array<i32>} : memref<400x320xbf16, #tpu.memory_space<vmem>>, vector<16x320xbf16>,
    %c0_106 = arith.constant 0 : index
    %c89_107 = arith.constant 89 : index
    %100 = vector.load %arg11[%c0_106, %c89_107] : memref<16x576xbf16, #tpu.memory_space<vmem>>, vector<16x320xbf16>
    %c48_108 = arith.constant 48 : index
    %c0_109 = arith.constant 0 : index
    %101 = vector.load %arg12[%c48_108, %c0_109] : memref<400x320xbf16, #tpu.memory_space<vmem>>, vector<16x320xbf16>
    tpu.vector_store %arg12[%c48_108, %c0_109], %100 {strides = array<i32>} : memref<400x320xbf16, #tpu.memory_space<vmem>>, vector<16x320xbf16>,
    %c0_110 = arith.constant 0 : index
    %c90_111 = arith.constant 90 : index
    %102 = vector.load %arg11[%c0_110, %c90_111] : memref<16x576xbf16, #tpu.memory_space<vmem>>, vector<16x320xbf16>
    %c64_112 = arith.constant 64 : index
    %c0_113 = arith.constant 0 : index
    %103 = vector.load %arg12[%c64_112, %c0_113] : memref<400x320xbf16, #tpu.memory_space<vmem>>, vector<16x320xbf16>
    tpu.vector_store %arg12[%c64_112, %c0_113], %102 {strides = array<i32>} : memref<400x320xbf16, #tpu.memory_space<vmem>>, vector<16x320xbf16>,
    %c0_114 = arith.constant 0 : index
    %c106_115 = arith.constant 106 : index
    %104 = vector.load %arg11[%c0_114, %c106_115] : memref<16x576xbf16, #tpu.memory_space<vmem>>, vector<16x320xbf16>
    %c80_116 = arith.constant 80 : index
    %c0_117 = arith.constant 0 : index
    %105 = vector.load %arg12[%c80_116, %c0_117] : memref<400x320xbf16, #tpu.memory_space<vmem>>, vector<16x320xbf16>
    tpu.vector_store %arg12[%c80_116, %c0_117], %104 {strides = array<i32>} : memref<400x320xbf16, #tpu.memory_space<vmem>>, vector<16x320xbf16>,
    %c0_118 = arith.constant 0 : index
    %c107_119 = arith.constant 107 : index
    %106 = vector.load %arg11[%c0_118, %c107_119] : memref<16x576xbf16, #tpu.memory_space<vmem>>, vector<16x320xbf16>
    %c96_120 = arith.constant 96 : index
    %c0_121 = arith.constant 0 : index
    %107 = vector.load %arg12[%c96_120, %c0_121] : memref<400x320xbf16, #tpu.memory_space<vmem>>, vector<16x320xbf16>
    tpu.vector_store %arg12[%c96_120, %c0_121], %106 {strides = array<i32>} : memref<400x320xbf16, #tpu.memory_space<vmem>>, vector<16x320xbf16>,
    %c0_122 = arith.constant 0 : index
    %c108_123 = arith.constant 108 : index
    %108 = vector.load %arg11[%c0_122, %c108_123] : memref<16x576xbf16, #tpu.memory_space<vmem>>, vector<16x320xbf16>
    %c112_124 = arith.constant 112 : index
    %c0_125 = arith.constant 0 : index
    %109 = vector.load %arg12[%c112_124, %c0_125] : memref<400x320xbf16, #tpu.memory_space<vmem>>, vector<16x320xbf16>
    tpu.vector_store %arg12[%c112_124, %c0_125], %108 {strides = array<i32>} : memref<400x320xbf16, #tpu.memory_space<vmem>>, vector<16x320xbf16>,
    %c0_126 = arith.constant 0 : index
    %c109_127 = arith.constant 109 : index
    %110 = vector.load %arg11[%c0_126, %c109_127] : memref<16x576xbf16, #tpu.memory_space<vmem>>, vector<16x320xbf16>
    %c128_128 = arith.constant 128 : index
    %c0_129 = arith.constant 0 : index
    %111 = vector.load %arg12[%c128_128, %c0_129] : memref<400x320xbf16, #tpu.memory_space<vmem>>, vector<16x320xbf16>
    tpu.vector_store %arg12[%c128_128, %c0_129], %110 {strides = array<i32>} : memref<400x320xbf16, #tpu.memory_space<vmem>>, vector<16x320xbf16>,
    %c0_130 = arith.constant 0 : index
    %c110_131 = arith.constant 110 : index
    %112 = vector.load %arg11[%c0_130, %c110_131] : memref<16x576xbf16, #tpu.memory_space<vmem>>, vector<16x320xbf16>
    %c144_132 = arith.constant 144 : index
    %c0_133 = arith.constant 0 : index
    %113 = vector.load %arg12[%c144_132, %c0_133] : memref<400x320xbf16, #tpu.memory_space<vmem>>, vector<16x320xbf16>
    tpu.vector_store %arg12[%c144_132, %c0_133], %112 {strides = array<i32>} : memref<400x320xbf16, #tpu.memory_space<vmem>>, vector<16x320xbf16>,
    %c0_134 = arith.constant 0 : index
    %c126_135 = arith.constant 126 : index
    %114 = vector.load %arg11[%c0_134, %c126_135] : memref<16x576xbf16, #tpu.memory_space<vmem>>, vector<16x320xbf16>
    %c160_136 = arith.constant 160 : index
    %c0_137 = arith.constant 0 : index
    %115 = vector.load %arg12[%c160_136, %c0_137] : memref<400x320xbf16, #tpu.memory_space<vmem>>, vector<16x320xbf16>
    tpu.vector_store %arg12[%c160_136, %c0_137], %114 {strides = array<i32>} : memref<400x320xbf16, #tpu.memory_space<vmem>>, vector<16x320xbf16>,
    %c0_138 = arith.constant 0 : index
    %c127_139 = arith.constant 127 : index
    %116 = vector.load %arg11[%c0_138, %c127_139] : memref<16x576xbf16, #tpu.memory_space<vmem>>, vector<16x320xbf16>
    %c176_140 = arith.constant 176 : index
    %c0_141 = arith.constant 0 : index
    %117 = vector.load %arg12[%c176_140, %c0_141] : memref<400x320xbf16, #tpu.memory_space<vmem>>, vector<16x320xbf16>
    tpu.vector_store %arg12[%c176_140, %c0_141], %116 {strides = array<i32>} : memref<400x320xbf16, #tpu.memory_space<vmem>>, vector<16x320xbf16>,
    %c0_142 = arith.constant 0 : index
    %c128_143 = arith.constant 128 : index
    %118 = vector.load %arg11[%c0_142, %c128_143] : memref<16x576xbf16, #tpu.memory_space<vmem>>, vector<16x320xbf16>
    %c192_144 = arith.constant 192 : index
    %c0_145 = arith.constant 0 : index
    %119 = vector.load %arg12[%c192_144, %c0_145] : memref<400x320xbf16, #tpu.memory_space<vmem>>, vector<16x320xbf16>
    tpu.vector_store %arg12[%c192_144, %c0_145], %118 {strides = array<i32>} : memref<400x320xbf16, #tpu.memory_space<vmem>>, vector<16x320xbf16>,
    %c0_146 = arith.constant 0 : index
    %c129_147 = arith.constant 129 : index
    %120 = vector.load %arg11[%c0_146, %c129_147] : memref<16x576xbf16, #tpu.memory_space<vmem>>, vector<16x320xbf16>
    %c208_148 = arith.constant 208 : index
    %c0_149 = arith.constant 0 : index
    %121 = vector.load %arg12[%c208_148, %c0_149] : memref<400x320xbf16, #tpu.memory_space<vmem>>, vector<16x320xbf16>
    tpu.vector_store %arg12[%c208_148, %c0_149], %120 {strides = array<i32>} : memref<400x320xbf16, #tpu.memory_space<vmem>>, vector<16x320xbf16>,
    %c0_150 = arith.constant 0 : index
    %c130_151 = arith.constant 130 : index
    %122 = vector.load %arg11[%c0_150, %c130_151] : memref<16x576xbf16, #tpu.memory_space<vmem>>, vector<16x320xbf16>
    %c224_152 = arith.constant 224 : index
    %c0_153 = arith.constant 0 : index
    %123 = vector.load %arg12[%c224_152, %c0_153] : memref<400x320xbf16, #tpu.memory_space<vmem>>, vector<16x320xbf16>
    tpu.vector_store %arg12[%c224_152, %c0_153], %122 {strides = array<i32>} : memref<400x320xbf16, #tpu.memory_space<vmem>>, vector<16x320xbf16>,
    %c0_154 = arith.constant 0 : index
    %c146_155 = arith.constant 146 : index
    %124 = vector.load %arg11[%c0_154, %c146_155] : memref<16x576xbf16, #tpu.memory_space<vmem>>, vector<16x320xbf16>
    %c240_156 = arith.constant 240 : index
    %c0_157 = arith.constant 0 : index
    %125 = vector.load %arg12[%c240_156, %c0_157] : memref<400x320xbf16, #tpu.memory_space<vmem>>, vector<16x320xbf16>
    tpu.vector_store %arg12[%c240_156, %c0_157], %124 {strides = array<i32>} : memref<400x320xbf16, #tpu.memory_space<vmem>>, vector<16x320xbf16>,
    %c0_158 = arith.constant 0 : index
    %c147_159 = arith.constant 147 : index
    %126 = vector.load %arg11[%c0_158, %c147_159] : memref<16x576xbf16, #tpu.memory_space<vmem>>, vector<16x320xbf16>
    %c256_160 = arith.constant 256 : index
    %c0_161 = arith.constant 0 : index
    %127 = vector.load %arg12[%c256_160, %c0_161] : memref<400x320xbf16, #tpu.memory_space<vmem>>, vector<16x320xbf16>
    tpu.vector_store %arg12[%c256_160, %c0_161], %126 {strides = array<i32>} : memref<400x320xbf16, #tpu.memory_space<vmem>>, vector<16x320xbf16>,
    %c0_162 = arith.constant 0 : index
    %c148_163 = arith.constant 148 : index
    %128 = vector.load %arg11[%c0_162, %c148_163] : memref<16x576xbf16, #tpu.memory_space<vmem>>, vector<16x320xbf16>
    %c272_164 = arith.constant 272 : index
    %c0_165 = arith.constant 0 : index
    %129 = vector.load %arg12[%c272_164, %c0_165] : memref<400x320xbf16, #tpu.memory_space<vmem>>, vector<16x320xbf16>
    tpu.vector_store %arg12[%c272_164, %c0_165], %128 {strides = array<i32>} : memref<400x320xbf16, #tpu.memory_space<vmem>>, vector<16x320xbf16>,
    %c0_166 = arith.constant 0 : index
    %c149_167 = arith.constant 149 : index
    %130 = vector.load %arg11[%c0_166, %c149_167] : memref<16x576xbf16, #tpu.memory_space<vmem>>, vector<16x320xbf16>
    %c288_168 = arith.constant 288 : index
    %c0_169 = arith.constant 0 : index
    %131 = vector.load %arg12[%c288_168, %c0_169] : memref<400x320xbf16, #tpu.memory_space<vmem>>, vector<16x320xbf16>
    tpu.vector_store %arg12[%c288_168, %c0_169], %130 {strides = array<i32>} : memref<400x320xbf16, #tpu.memory_space<vmem>>, vector<16x320xbf16>,
    %c0_170 = arith.constant 0 : index
    %c150_171 = arith.constant 150 : index
    %132 = vector.load %arg11[%c0_170, %c150_171] : memref<16x576xbf16, #tpu.memory_space<vmem>>, vector<16x320xbf16>
    %c304_172 = arith.constant 304 : index
    %c0_173 = arith.constant 0 : index
    %133 = vector.load %arg12[%c304_172, %c0_173] : memref<400x320xbf16, #tpu.memory_space<vmem>>, vector<16x320xbf16>
    tpu.vector_store %arg12[%c304_172, %c0_173], %132 {strides = array<i32>} : memref<400x320xbf16, #tpu.memory_space<vmem>>, vector<16x320xbf16>,
    %c0_174 = arith.constant 0 : index
    %c166_175 = arith.constant 166 : index
    %134 = vector.load %arg11[%c0_174, %c166_175] : memref<16x576xbf16, #tpu.memory_space<vmem>>, vector<16x320xbf16>
    %c320_176 = arith.constant 320 : index
    %c0_177 = arith.constant 0 : index
    %135 = vector.load %arg12[%c320_176, %c0_177] : memref<400x320xbf16, #tpu.memory_space<vmem>>, vector<16x320xbf16>
    tpu.vector_store %arg12[%c320_176, %c0_177], %134 {strides = array<i32>} : memref<400x320xbf16, #tpu.memory_space<vmem>>, vector<16x320xbf16>,
    %c0_178 = arith.constant 0 : index
    %c167_179 = arith.constant 167 : index
    %136 = vector.load %arg11[%c0_178, %c167_179] : memref<16x576xbf16, #tpu.memory_space<vmem>>, vector<16x320xbf16>
    %c336_180 = arith.constant 336 : index
    %c0_181 = arith.constant 0 : index
    %137 = vector.load %arg12[%c336_180, %c0_181] : memref<400x320xbf16, #tpu.memory_space<vmem>>, vector<16x320xbf16>
    tpu.vector_store %arg12[%c336_180, %c0_181], %136 {strides = array<i32>} : memref<400x320xbf16, #tpu.memory_space<vmem>>, vector<16x320xbf16>,
    %c0_182 = arith.constant 0 : index
    %c168_183 = arith.constant 168 : index
    %138 = vector.load %arg11[%c0_182, %c168_183] : memref<16x576xbf16, #tpu.memory_space<vmem>>, vector<16x320xbf16>
    %c352_184 = arith.constant 352 : index
    %c0_185 = arith.constant 0 : index
    %139 = vector.load %arg12[%c352_184, %c0_185] : memref<400x320xbf16, #tpu.memory_space<vmem>>, vector<16x320xbf16>
    tpu.vector_store %arg12[%c352_184, %c0_185], %138 {strides = array<i32>} : memref<400x320xbf16, #tpu.memory_space<vmem>>, vector<16x320xbf16>,
    %c0_186 = arith.constant 0 : index
    %c169_187 = arith.constant 169 : index
    %140 = vector.load %arg11[%c0_186, %c169_187] : memref<16x576xbf16, #tpu.memory_space<vmem>>, vector<16x320xbf16>
    %c368_188 = arith.constant 368 : index
    %c0_189 = arith.constant 0 : index
    %141 = vector.load %arg12[%c368_188, %c0_189] : memref<400x320xbf16, #tpu.memory_space<vmem>>, vector<16x320xbf16>
    tpu.vector_store %arg12[%c368_188, %c0_189], %140 {strides = array<i32>} : memref<400x320xbf16, #tpu.memory_space<vmem>>, vector<16x320xbf16>,
    %c0_190 = arith.constant 0 : index
    %c170_191 = arith.constant 170 : index
    %142 = vector.load %arg11[%c0_190, %c170_191] : memref<16x576xbf16, #tpu.memory_space<vmem>>, vector<16x320xbf16>
    %c384_192 = arith.constant 384 : index
    %c0_193 = arith.constant 0 : index
    %143 = vector.load %arg12[%c384_192, %c0_193] : memref<400x320xbf16, #tpu.memory_space<vmem>>, vector<16x320xbf16>
    tpu.vector_store %arg12[%c384_192, %c0_193], %142 {strides = array<i32>} : memref<400x320xbf16, #tpu.memory_space<vmem>>, vector<16x320xbf16>,
    %c0_194 = arith.constant 0 : index
    %c0_195 = arith.constant 0 : index
    %144 = vector.load %arg5[%c0_194, %c0_195] : memref<16x400xbf16, #tpu.memory_space<vmem>>, vector<16x400xbf16>
    %c0_196 = arith.constant 0 : index
    %c0_197 = arith.constant 0 : index
    %145 = vector.load %arg12[%c0_196, %c0_197] : memref<400x320xbf16, #tpu.memory_space<vmem>>, vector<400x320xbf16>
    %cst_198 = arith.constant dense<0.000000e+00> : vector<16x320xf32>
    %146 = tpu.matmul %144, %145, %cst_198 {dimension_numbers = #tpu.dot_dimension_numbers<[1], [0], [0], [1], [0, 0, 1, 1], [], []>} : vector<16x400xbf16>, vector<400x320xbf16>, vector<16x320xf32> -> vector<16x320xf32>
    %c0_199 = arith.constant 0 : index
    %c0_200 = arith.constant 0 : index
    %147 = vector.load %arg6[%c0_199, %c0_200] : memref<16x1xf32, #tpu.memory_space<vmem>>, vector<16x1xf32>
    %148 = vector.broadcast %147 : vector<16x1xf32> to vector<16x320xf32>
    %149 = arith.addf %146, %148 : vector<16x320xf32>
    %c1_201 = arith.constant 1 : index
    %c0_202 = arith.constant 0 : index
    %c0_203 = arith.constant 0 : index
    %150 = vector.load %arg9[%c1_201, %c0_202, %c0_203] : memref<2x16x320xf32, #tpu.memory_space<vmem>>, vector<1x16x320xf32>
    %151 = vector.shape_cast %150 : vector<1x16x320xf32> to vector<16x320xf32>
    %152 = vector.shape_cast %149 : vector<16x320xf32> to vector<1x16x320xf32>
    tpu.vector_store %arg9[%c1_201, %c0_202, %c0_203], %152 {strides = array<i32>} : memref<2x16x320xf32, #tpu.memory_space<vmem>>, vector<1x16x320xf32>,
    %c0_204 = arith.constant 0 : index
    %c0_205 = arith.constant 0 : index
    %153 = vector.load %arg7[%c0_204, %c0_205] : memref<3x16xf32, #tpu.memory_space<vmem>>, vector<3x16xf32>
    %cst_206 = arith.constant dense<0.000000e+00> : vector<3x320xf32>
    %154 = tpu.matmul %153, %149, %cst_206 {dimension_numbers = #tpu.dot_dimension_numbers<[1], [0], [0], [1], [0, 0, 1, 1], [], []>} : vector<3x16xf32>, vector<16x320xf32>, vector<3x320xf32> -> vector<3x320xf32>
    %c0_207 = arith.constant 0 : index
    %c0_208 = arith.constant 0 : index
    %155 = vector.load %arg8[%c0_207, %c0_208] : memref<3x1xf32, #tpu.memory_space<vmem>>, vector<3x1xf32>
    %156 = vector.broadcast %155 : vector<3x1xf32> to vector<3x320xf32>
    %157 = arith.addf %154, %156 : vector<3x320xf32>
    %c1_209 = arith.constant 1 : index
    %c0_210 = arith.constant 0 : index
    %c0_211 = arith.constant 0 : index
    %158 = vector.load %arg10[%c1_209, %c0_210, %c0_211] : memref<2x3x320xf32, #tpu.memory_space<vmem>>, vector<1x3x320xf32>
    %159 = vector.shape_cast %158 : vector<1x3x320xf32> to vector<3x320xf32>
    %160 = vector.shape_cast %157 : vector<3x320xf32> to vector<1x3x320xf32>
    tpu.vector_store %arg10[%c1_209, %c0_210, %c0_211], %160 {strides = array<i32>} : memref<2x3x320xf32, #tpu.memory_space<vmem>>, vector<1x3x320xf32>,
    return
  }
  func.func @transform_0(%arg0: i32) -> (i32, i32, i32) {
    %c0_i32 = arith.constant 0 : i32
    %c0_i32_0 = arith.constant 0 : i32
    %c0_i32_1 = arith.constant 0 : i32
    return %arg0, %c0_i32, %c0_i32_0 : i32, i32, i32
  }
  func.func @transform_1(%arg0: i32) -> (i32, i32) {
    %c0_i32 = arith.constant 0 : i32
    %c0_i32_0 = arith.constant 0 : i32
    %c0_i32_1 = arith.constant 0 : i32
    return %c0_i32, %c0_i32_0 : i32, i32
  }
  func.func @transform_2(%arg0: i32) -> (i32, i32) {
    %c0_i32 = arith.constant 0 : i32
    %c0_i32_0 = arith.constant 0 : i32
    %c0_i32_1 = arith.constant 0 : i32
    return %c0_i32, %c0_i32_0 : i32, i32
  }
  func.func @transform_3(%arg0: i32) -> (i32, i32) {
    %c0_i32 = arith.constant 0 : i32
    %c0_i32_0 = arith.constant 0 : i32
    %c0_i32_1 = arith.constant 0 : i32
    return %c0_i32, %c0_i32_0 : i32, i32
  }
  func.func @transform_4(%arg0: i32) -> (i32, i32) {
    %c0_i32 = arith.constant 0 : i32
    %c0_i32_0 = arith.constant 0 : i32
    %c0_i32_1 = arith.constant 0 : i32
    return %c0_i32, %c0_i32_0 : i32, i32
  }
  func.func @transform_5(%arg0: i32) -> (i32, i32) {
    %c0_i32 = arith.constant 0 : i32
    %c0_i32_0 = arith.constant 0 : i32
    %c0_i32_1 = arith.constant 0 : i32
    return %c0_i32, %c0_i32_0 : i32, i32
  }
  func.func @transform_6(%arg0: i32) -> (i32, i32) {
    %c0_i32 = arith.constant 0 : i32
    %c0_i32_0 = arith.constant 0 : i32
    %c0_i32_1 = arith.constant 0 : i32
    return %c0_i32, %c0_i32_0 : i32, i32
  }
  func.func @transform_7(%arg0: i32) -> (i32, i32) {
    %c0_i32 = arith.constant 0 : i32
    %c0_i32_0 = arith.constant 0 : i32
    %c0_i32_1 = arith.constant 0 : i32
    return %c0_i32, %c0_i32_0 : i32, i32
  }
  func.func @transform_8(%arg0: i32) -> (i32, i32, i32) {
    %c0_i32 = arith.constant 0 : i32
    %c0_i32_0 = arith.constant 0 : i32
    %c0_i32_1 = arith.constant 0 : i32
    return %arg0, %c0_i32, %c0_i32_0 : i32, i32, i32
  }
  func.func @transform_9(%arg0: i32) -> (i32, i32, i32) {
    %c0_i32 = arith.constant 0 : i32
    %c0_i32_0 = arith.constant 0 : i32
    %c0_i32_1 = arith.constant 0 : i32
    return %arg0, %c0_i32, %c0_i32_0 : i32, i32, i32
  }
}

</mosaic_0001>

<llo_original>
// kernel: tpu_custom_call.1
$region0: #{tpu_custom_call.1}
  #allocation0 [shape = 'u32[]', space=smem, size = 0x4, offset = 0x4, fixed_abs, tag = 'smem constant byte address 0x4 - core index']
  #allocation1 [shape = 'u32[144,128]{1,0:T(1,128)}', space=vmem, size = 0x12000, scoped, tag = 'internal scratch']
  #allocation2 [shape = 'bf16[16,576]{1,0:T(16,128)(2,1)}', space=vmem, size = 0x5000, scoped, tag = 'scratch operand']
  #allocation3 [shape = 'bf16[400,320]{1,0:T(16,128)(2,1)}', space=vmem, size = 0x4b000, scoped, tag = 'scratch operand']
  %s0 = inlined_call_operand.vmem [shape: f32[2,3,320], index: 0, kind: input, shape index: {}]
  %s1 = inlined_call_operand.vmem [shape: f32[1,320], index: 1, kind: input, shape index: {}]
  %s2 = inlined_call_operand.vmem [shape: f32[16,3], index: 2, kind: input, shape index: {}]
  %s3 = inlined_call_operand.vmem [shape: f32[16,1], index: 3, kind: input, shape index: {}]
  %s4 = inlined_call_operand.vmem [shape: bf16[16,400], index: 4, kind: input, shape index: {}]
  %s5 = inlined_call_operand.vmem [shape: f32[16,1], index: 5, kind: input, shape index: {}]
  %s6 = inlined_call_operand.vmem [shape: f32[3,16], index: 6, kind: input, shape index: {}]
  %s7 = inlined_call_operand.vmem [shape: f32[3,1], index: 7, kind: input, shape index: {}]
  %s8 = inlined_call_operand.hbm [shape: f32[2,16,320], index: 8, kind: output, shape index: {0}]
  %s9 = inlined_call_operand.vmem [shape: f32[2,3,320], index: 9, kind: output, shape index: {1}]
  %10 = xla_tuple %s8, %s9
  %s11 = sld [smem:[#allocation0]]
  $region50: #{tpu_custom_call.1} parent=0
    _
  %s13 = ssub.s32 1, %s11
  %s14 = scalar_select 0, %s13, %s11
  $region1: #{tpu_custom_call.1} parent=0
    #allocation4 [shape = 'u8[49152]{0}', space=vmem, size = 0xc000, scoped, tag = 'output window, operand 0, single buffered']
    #allocation5 [shape = 's32[1]{0}', space=sflag, size = 0x4, scoped, tag = 'scoped memory for tpu_custom_call.1']
    %15 = vsyncpa [#allocation5], 0
    // Predicated region
    $region2: #{tpu_custom_call.1} parent=1 // pred_check
      _
    $region3: #{tpu_custom_call.1} parent=1 // pred_check_branch
      %17 = sbr.rel (0) target = $region5
    $region4: #{tpu_custom_call.1} parent=1 // pred_region
      _
    $region5: #{tpu_custom_call.1} parent=1 // pred_fallthru
      _
    // Predicated region
    $region6: #{tpu_custom_call.1} parent=1 // pred_check
      _
    $region7: #{tpu_custom_call.1} parent=1 // pred_check_branch
      %19 = sbr.rel (0) target = $region9
    $region8: #{tpu_custom_call.1} parent=1 // pred_region
      _
    $region9: #{tpu_custom_call.1} parent=1 // pred_fallthru
      _
    // Predicated region
    $region10: #{tpu_custom_call.1} parent=1 // pred_check
      _
    $region11: #{tpu_custom_call.1} parent=1 // pred_check_branch
      %21 = sbr.rel (0) target = $region13
    $region12: #{tpu_custom_call.1} parent=1 // pred_region
      _
    $region13: #{tpu_custom_call.1} parent=1 // pred_fallthru
      _
    // Predicated region
    $region14: #{tpu_custom_call.1} parent=1 // pred_check
      _
    $region15: #{tpu_custom_call.1} parent=1 // pred_check_branch
      %23 = sbr.rel (0) target = $region17
    $region16: #{tpu_custom_call.1} parent=1 // pred_region
      _
    $region17: #{tpu_custom_call.1} parent=1 // pred_fallthru
      _
    // Predicated region
    $region18: #{tpu_custom_call.1} parent=1 // pred_check
      _
    $region19: #{tpu_custom_call.1} parent=1 // pred_check_branch
      %25 = sbr.rel (0) target = $region21
    $region20: #{tpu_custom_call.1} parent=1 // pred_region
      _
    $region21: #{tpu_custom_call.1} parent=1 // pred_fallthru
      _
    // Predicated region
    $region22: #{tpu_custom_call.1} parent=1 // pred_check
      _
    $region23: #{tpu_custom_call.1} parent=1 // pred_check_branch
      %27 = sbr.rel (0) target = $region25
    $region24: #{tpu_custom_call.1} parent=1 // pred_region
      _
    $region25: #{tpu_custom_call.1} parent=1 // pred_fallthru
      _
    // Predicated region
    $region26: #{tpu_custom_call.1} parent=1 // pred_check
      _
    $region27: #{tpu_custom_call.1} parent=1 // pred_check_branch
      %29 = sbr.rel (0) target = $region29
    $region28: #{tpu_custom_call.1} parent=1 // pred_region
      _
    $region29: #{tpu_custom_call.1} parent=1 // pred_fallthru
      _
    // Predicated region
    $region30: #{tpu_custom_call.1} parent=1 // pred_check
      _
    $region31: #{tpu_custom_call.1} parent=1 // pred_check_branch
      %31 = sbr.rel (0) target = $region33
    $region32: #{tpu_custom_call.1} parent=1 // pred_region
      _
    $region33: #{tpu_custom_call.1} parent=1 // pred_fallthru
      _
    %33 = vst [vmem:[#allocation2] sm:$0xff] 0
    %vm34 = vcmask 1048064
    %35 = vst.msk [vmem:[#allocation2 + $0x18] sm:$0xff] %vm34, 0
    %vm36 = vcmask 523264
    %37 = vst.msk [vmem:[#allocation2 + $0x20] sm:$0xff] %vm36, 0
    %v38 = vld [vmem:[%s1] sm:$0x7]
    %v39 = vld [vmem:[%s0] sm:$0x77]
    %v40 = vld [vmem:[%s0 + $0x8] sm:$0x7]
    %v41 = vld [vmem:[%s2] sm:$0xff]
    %v42 = vld [vmem:[%s2 + $0x8] sm:$0xff]
    %v43 = vld [vmem:[%s3] sm:$0xff]
    %v44 = vld [vmem:[%s3 + $0x8] sm:$0xff]
    %46 = vset.pattern.permute.xlu0 0
    %47 = vperm.xlu0 %46, %v43
    %v48 = vpop.permute.xlu0 %47
    %51 = vset.pattern.permute.xlu0 0
    %52 = vperm.xlu0 %51, %v44
    %v53 = vpop.permute.xlu0 %52
    %v57 = vcombine.high %v39, %v39
    %vm58 = vcmask 23552
    %v60 = vsel %vm58, %v41, 0
    %v63 = vsel %vm58, %v42, 0
    %vm65 = vcmask 1042432
    %v66 = vsel %vm65, %v39, 0
    %v68 = vsel %vm65, %v57, 0
    %v70 = vsel %vm65, %v40, 0
    %72 = vmatprep.subr.mxu0 %v68
    %73 = vmatpush1.msra.mxu0 %v66
    %74 = vmatprep.subr.mxu0 0.0
    %75 = vmatpush1.msra.mxu0 0.0
    %76 = vmatprep.subr.mxu0 0.0
    %77 = vmatpush1.msra.mxu0 0.0
    %78 = vmatprep.subr.mxu0 0.0
    %79 = vmatpush1.msra.mxu0 0.0
    %80 = vmatprep.subr.mxu0 0.0
    %81 = vmatpush1.msra.mxu0 0.0
    %82 = vmatprep.subr.mxu0 0.0
    %83 = vmatpush1.msra.mxu0 0.0
    %84 = vmatprep.subr.mxu0 0.0
    %85 = vmatpush1.msra.mxu0 0.0
    %86 = vmatprep.subr.mxu0 0.0
    %87 = vmatpush1.msra.mxu0 0.0
    %88 = vmatprep.subr.mxu0 0.0
    %89 = vmatpush1.msra.mxu0 0.0
    %90 = vmatprep.subr.mxu0 0.0
    %91 = vmatpush1.msra.mxu0 0.0
    %92 = vmatprep.subr.mxu0 0.0
    %93 = vmatpush1.msra.mxu0 0.0
    %94 = vmatprep.subr.mxu0 0.0
    %95 = vmatpush1.msra.mxu0 0.0
    %96 = vmatprep.subr.mxu0 0.0
    %97 = vmatpush1.msra.mxu0 0.0
    %98 = vmatprep.subr.mxu0 0.0
    %99 = vmatpush1.msra.mxu0 0.0
    %100 = vmatprep.subr.mxu0 0.0
    %101 = vmatpush1.msra.mxu0 0.0
    %102 = vmatprep.subr.mxu0 0.0
    %103 = vmatpush1.msra.mxu0 0.0
    %104 = vmatprep.subr.mxu0 0.0
    %105 = vmatpush1.msra.mxu0 0.0
    %106 = vmatprep.subr.mxu0 0.0
    %107 = vmatpush1.msra.mxu0 0.0
    %108 = vmatprep.subr.mxu0 0.0
    %109 = vmatpush1.msra.mxu0 0.0
    %110 = vmatprep.subr.mxu0 0.0
    %111 = vmatpush1.msra.mxu0 0.0
    %112 = vmatprep.subr.mxu0 0.0
    %113 = vmatpush1.msra.mxu0 0.0
    %114 = vmatprep.subr.mxu0 0.0
    %115 = vmatpush1.msra.mxu0 0.0
    %116 = vmatprep.subr.mxu0 0.0
    %117 = vmatpush1.msra.mxu0 0.0
    %118 = vmatprep.subr.mxu0 0.0
    %119 = vmatpush1.msra.mxu0 0.0
    %120 = vmatprep.subr.mxu0 0.0
    %121 = vmatpush1.msra.mxu0 0.0
    %122 = vmatprep.subr.mxu0 0.0
    %123 = vmatpush1.msra.mxu0 0.0
    %124 = vmatprep.subr.mxu0 0.0
    %125 = vmatpush1.msra.mxu0 0.0
    %126 = vmatprep.subr.mxu0 0.0
    %127 = vmatpush1.msra.mxu0 0.0
    %128 = vmatprep.subr.mxu0 0.0
    %129 = vmatpush1.msra.mxu0 0.0
    %130 = vmatprep.subr.mxu0 0.0
    %131 = vmatpush1.msra.mxu0 0.0
    %132 = vmatprep.subr.mxu0 0.0
    %133 = vmatpush1.msra.mxu0 0.0
    %134 = vmatprep.subr.mxu0 0.0
    %135 = vmatpush1.msra.mxu0 0.0
    %136 = vmatprep.mubr.f32.mxu0 0.0
    %137 = vmatmul.mubr.f32.gmra.mrb[0].mxu0 %v60
    %v138 = vpop.f32.mrb[0].mxu0
    %v139 = vadd.f32 %v48, %v138
    %v140 = vpop.f32.mrb[0].mxu0
    %v141 = vadd.f32 %v48, %v140
    %142 = vmatprep.mubr.f32.mxu0 0.0
    %143 = vmatmul.mubr.f32.gmra.mrb[0].mxu0 %v63
    %v144 = vpop.f32.mrb[0].mxu0
    %v145 = vadd.f32 %v53, %v144
    %v146 = vpop.f32.mrb[0].mxu0
    %v147 = vadd.f32 %v53, %v146
    %148 = vdwg.mxu0
    %149 = vmatprep.subr.mxu0 0.0
    %150 = vmatpush1.msra.mxu0 %v70
    %151 = vmatprep.subr.mxu0 0.0
    %152 = vmatpush1.msra.mxu0 0.0
    %153 = vmatprep.subr.mxu0 0.0
    %154 = vmatpush1.msra.mxu0 0.0
    %155 = vmatprep.subr.mxu0 0.0
    %156 = vmatpush1.msra.mxu0 0.0
    %157 = vmatprep.subr.mxu0 0.0
    %158 = vmatpush1.msra.mxu0 0.0
    %159 = vmatprep.subr.mxu0 0.0
    %160 = vmatpush1.msra.mxu0 0.0
    %161 = vmatprep.subr.mxu0 0.0
    %162 = vmatpush1.msra.mxu0 0.0
    %163 = vmatprep.subr.mxu0 0.0
    %164 = vmatpush1.msra.mxu0 0.0
    %165 = vmatprep.subr.mxu0 0.0
    %166 = vmatpush1.msra.mxu0 0.0
    %167 = vmatprep.subr.mxu0 0.0
    %168 = vmatpush1.msra.mxu0 0.0
    %169 = vmatprep.subr.mxu0 0.0
    %170 = vmatpush1.msra.mxu0 0.0
    %171 = vmatprep.subr.mxu0 0.0
    %172 = vmatpush1.msra.mxu0 0.0
    %173 = vmatprep.subr.mxu0 0.0
    %174 = vmatpush1.msra.mxu0 0.0
    %175 = vmatprep.subr.mxu0 0.0
    %176 = vmatpush1.msra.mxu0 0.0
    %177 = vmatprep.subr.mxu0 0.0
    %178 = vmatpush1.msra.mxu0 0.0
    %179 = vmatprep.subr.mxu0 0.0
    %180 = vmatpush1.msra.mxu0 0.0
    %181 = vmatprep.subr.mxu0 0.0
    %182 = vmatpush1.msra.mxu0 0.0
    %183 = vmatprep.subr.mxu0 0.0
    %184 = vmatpush1.msra.mxu0 0.0
    %185 = vmatprep.subr.mxu0 0.0
    %186 = vmatpush1.msra.mxu0 0.0
    %187 = vmatprep.subr.mxu0 0.0
    %188 = vmatpush1.msra.mxu0 0.0
    %189 = vmatprep.subr.mxu0 0.0
    %190 = vmatpush1.msra.mxu0 0.0
    %191 = vmatprep.subr.mxu0 0.0
    %192 = vmatpush1.msra.mxu0 0.0
    %193 = vmatprep.subr.mxu0 0.0
    %194 = vmatpush1.msra.mxu0 0.0
    %195 = vmatprep.subr.mxu0 0.0
    %196 = vmatpush1.msra.mxu0 0.0
    %197 = vmatprep.subr.mxu0 0.0
    %198 = vmatpush1.msra.mxu0 0.0
    %199 = vmatprep.subr.mxu0 0.0
    %200 = vmatpush1.msra.mxu0 0.0
    %201 = vmatprep.subr.mxu0 0.0
    %202 = vmatpush1.msra.mxu0 0.0
    %203 = vmatprep.subr.mxu0 0.0
    %204 = vmatpush1.msra.mxu0 0.0
    %205 = vmatprep.subr.mxu0 0.0
    %206 = vmatpush1.msra.mxu0 0.0
    %207 = vmatprep.subr.mxu0 0.0
    %208 = vmatpush1.msra.mxu0 0.0
    %209 = vmatprep.subr.mxu0 0.0
    %210 = vmatpush1.msra.mxu0 0.0
    %211 = vmatprep.subr.mxu0 0.0
    %212 = vmatpush1.msra.mxu0 0.0
    %213 = vmatprep.mubr.f32.mxu0 0.0
    %214 = vmatmul.mubr.f32.gmra.mrb[0].mxu0 %v60
    %v215 = vpop.f32.mrb[0].mxu0
    %v216 = vadd.f32 %v48, %v215
    %v217 = vpop.f32.mrb[0].mxu0
    %218 = vmatprep.mubr.f32.mxu0 0.0
    %219 = vmatmul.mubr.f32.gmra.mrb[0].mxu0 %v63
    %v220 = vpop.f32.mrb[0].mxu0
    %v221 = vadd.f32 %v53, %v220
    %v222 = vpop.f32.mrb[0].mxu0
    %223 = vdwg.mxu0
    %v225 = vlaneseq
    %v226 = vshrl.u32 %v225, 7
    %v227 = vsub.s32 0, %v226
    %v228 = vrot.slane %v38, %v227
    %v229 = vlaneseq
    %v230 = vshrl.u32 %v229, 7
    %v231 = vsub.s32 1, %v230
    %v232 = vrot.slane %v38, %v231
    %v233 = vlaneseq
    %v234 = vshrl.u32 %v233, 7
    %v235 = vsub.s32 2, %v234
    %v236 = vrot.slane %v38, %v235
    %v240 = vmul.f32 %v139, %v228
    %v241 = vmul.f32 %v141, %v232
    %v242 = vmul.f32 %v216, %v236
    %v243 = vmul.f32 %v145, %v228
    %v244 = vmul.f32 %v147, %v232
    %v245 = vmul.f32 %v221, %v236
    %v246 = vpack.c.bf16 %v243, %v240
    %v247 = vpack.c.bf16 %v244, %v241
    %v248 = vpack.c.bf16 %v245, %v242
    %249 = vst [vmem:[#allocation2 + $0x8] sm:$0xff] %v246
    %250 = vst [vmem:[#allocation2 + $0x10] sm:$0xff] %v247
    %251 = vst.msk [vmem:[#allocation2 + $0x18] sm:$0xff] %vm36, %v248
    %v252 = vld [vmem:[#allocation2] sm:$0xff]
    %v253 = vld [vmem:[#allocation2 + $0x8] sm:$0xff]
    %v254 = vld [vmem:[#allocation2 + $0x10] sm:$0xff]
    %v255 = vld [vmem:[#allocation2 + $0x18] sm:$0xff]
    %260 = vrot.lane.b32.xlu0 %v252, 42
    %v261 = vpop.permute.xlu0 %260
    %262 = vrot.lane.b32.xlu0 %v253, 42
    %v263 = vpop.permute.xlu0 %262
    %264 = vrot.lane.b32.xlu0 %v254, 42
    %v265 = vpop.permute.xlu0 %264
    %266 = vrot.lane.b32.xlu0 %v255, 42
    %v267 = vpop.permute.xlu0 %266
    %vm268 = vcmask 343040
    %v269 = vsel %vm268, %v261, %v263
    %v270 = vsel %vm268, %v263, %v265
    %v271 = vsel %vm268, %v265, %v267
    %275 = vst [vmem:[#allocation3] sm:$0xff] %v269
    %276 = vst [vmem:[#allocation3 + $0x8] sm:$0xff] %v270
    %277 = vst.msk [vmem:[#allocation3 + $0x10] sm:$0xff] %vm36, %v271
    %v278 = vld [vmem:[#allocation2] sm:$0xff]
    %v279 = vld [vmem:[#allocation2 + $0x8] sm:$0xff]
    %v280 = vld [vmem:[#allocation2 + $0x10] sm:$0xff]
    %v281 = vld [vmem:[#allocation2 + $0x18] sm:$0xff]
    %286 = vrot.lane.b32.xlu0 %v278, 41
    %v287 = vpop.permute.xlu0 %286
    %288 = vrot.lane.b32.xlu0 %v279, 41
    %v289 = vpop.permute.xlu0 %288
    %290 = vrot.lane.b32.xlu0 %v280, 41
    %v291 = vpop.permute.xlu0 %290
    %292 = vrot.lane.b32.xlu0 %v281, 41
    %v293 = vpop.permute.xlu0 %292
    %vm294 = vcmask 334848
    %v295 = vsel %vm294, %v287, %v289
    %v296 = vsel %vm294, %v289, %v291
    %v297 = vsel %vm294, %v291, %v293
    %301 = vst [vmem:[#allocation3 + $0x18] sm:$0xff] %v295
    %302 = vst [vmem:[#allocation3 + $0x20] sm:$0xff] %v296
    %303 = vst.msk [vmem:[#allocation3 + $0x28] sm:$0xff] %vm36, %v297
    %v304 = vld [vmem:[#allocation2] sm:$0xff]
    %v305 = vld [vmem:[#allocation2 + $0x8] sm:$0xff]
    %v306 = vld [vmem:[#allocation2 + $0x10] sm:$0xff]
    %v307 = vld [vmem:[#allocation2 + $0x18] sm:$0xff]
    %312 = vrot.lane.b32.xlu0 %v304, 40
    %v313 = vpop.permute.xlu0 %312
    %314 = vrot.lane.b32.xlu0 %v305, 40
    %v315 = vpop.permute.xlu0 %314
    %316 = vrot.lane.b32.xlu0 %v306, 40
    %v317 = vpop.permute.xlu0 %316
    %318 = vrot.lane.b32.xlu0 %v307, 40
    %v319 = vpop.permute.xlu0 %318
    %vm320 = vcmask 326656
    %v321 = vsel %vm320, %v313, %v315
    %v322 = vsel %vm320, %v315, %v317
    %v323 = vsel %vm320, %v317, %v319
    %327 = vst [vmem:[#allocation3 + $0x30] sm:$0xff] %v321
    %328 = vst [vmem:[#allocation3 + $0x38] sm:$0xff] %v322
    %329 = vst.msk [vmem:[#allocation3 + $0x40] sm:$0xff] %vm36, %v323
    %v330 = vld [vmem:[#allocation2] sm:$0xff]
    %v331 = vld [vmem:[#allocation2 + $0x8] sm:$0xff]
    %v332 = vld [vmem:[#allocation2 + $0x10] sm:$0xff]
    %v333 = vld [vmem:[#allocation2 + $0x18] sm:$0xff]
    %338 = vrot.lane.b32.xlu0 %v330, 39
    %v339 = vpop.permute.xlu0 %338
    %340 = vrot.lane.b32.xlu0 %v331, 39
    %v341 = vpop.permute.xlu0 %340
    %342 = vrot.lane.b32.xlu0 %v332, 39
    %v343 = vpop.permute.xlu0 %342
    %344 = vrot.lane.b32.xlu0 %v333, 39
    %v345 = vpop.permute.xlu0 %344
    %vm346 = vcmask 318464
    %v347 = vsel %vm346, %v339, %v341
    %v348 = vsel %vm346, %v341, %v343
    %v349 = vsel %vm346, %v343, %v345
    %353 = vst [vmem:[#allocation3 + $0x48] sm:$0xff] %v347
    %354 = vst [vmem:[#allocation3 + $0x50] sm:$0xff] %v348
    %355 = vst.msk [vmem:[#allocation3 + $0x58] sm:$0xff] %vm36, %v349
    %v356 = vld [vmem:[#allocation2] sm:$0xff]
    %v357 = vld [vmem:[#allocation2 + $0x8] sm:$0xff]
    %v358 = vld [vmem:[#allocation2 + $0x10] sm:$0xff]
    %v359 = vld [vmem:[#allocation2 + $0x18] sm:$0xff]
    %364 = vrot.lane.b32.xlu0 %v356, 38
    %v365 = vpop.permute.xlu0 %364
    %366 = vrot.lane.b32.xlu0 %v357, 38
    %v367 = vpop.permute.xlu0 %366
    %368 = vrot.lane.b32.xlu0 %v358, 38
    %v369 = vpop.permute.xlu0 %368
    %370 = vrot.lane.b32.xlu0 %v359, 38
    %v371 = vpop.permute.xlu0 %370
    %vm372 = vcmask 310272
    %v373 = vsel %vm372, %v365, %v367
    %v374 = vsel %vm372, %v367, %v369
    %v375 = vsel %vm372, %v369, %v371
    %379 = vst [vmem:[#allocation3 + $0x60] sm:$0xff] %v373
    %380 = vst [vmem:[#allocation3 + $0x68] sm:$0xff] %v374
    %381 = vst.msk [vmem:[#allocation3 + $0x70] sm:$0xff] %vm36, %v375
    %v382 = vld [vmem:[#allocation2] sm:$0xff]
    %v383 = vld [vmem:[#allocation2 + $0x8] sm:$0xff]
    %v384 = vld [vmem:[#allocation2 + $0x10] sm:$0xff]
    %v385 = vld [vmem:[#allocation2 + $0x18] sm:$0xff]
    %390 = vrot.lane.b32.xlu0 %v382, 22
    %v391 = vpop.permute.xlu0 %390
    %392 = vrot.lane.b32.xlu0 %v383, 22
    %v393 = vpop.permute.xlu0 %392
    %394 = vrot.lane.b32.xlu0 %v384, 22
    %v395 = vpop.permute.xlu0 %394
    %396 = vrot.lane.b32.xlu0 %v385, 22
    %v397 = vpop.permute.xlu0 %396
    %vm398 = vcmask 179200
    %v399 = vsel %vm398, %v391, %v393
    %v400 = vsel %vm398, %v393, %v395
    %v401 = vsel %vm398, %v395, %v397
    %405 = vst [vmem:[#allocation3 + $0x78] sm:$0xff] %v399
    %406 = vst [vmem:[#allocation3 + $0x80] sm:$0xff] %v400
    %407 = vst.msk [vmem:[#allocation3 + $0x88] sm:$0xff] %vm36, %v401
    %v408 = vld [vmem:[#allocation2] sm:$0xff]
    %v409 = vld [vmem:[#allocation2 + $0x8] sm:$0xff]
    %v410 = vld [vmem:[#allocation2 + $0x10] sm:$0xff]
    %v411 = vld [vmem:[#allocation2 + $0x18] sm:$0xff]
    %416 = vrot.lane.b32.xlu0 %v408, 21
    %v417 = vpop.permute.xlu0 %416
    %418 = vrot.lane.b32.xlu0 %v409, 21
    %v419 = vpop.permute.xlu0 %418
    %420 = vrot.lane.b32.xlu0 %v410, 21
    %v421 = vpop.permute.xlu0 %420
    %422 = vrot.lane.b32.xlu0 %v411, 21
    %v423 = vpop.permute.xlu0 %422
    %vm424 = vcmask 171008
    %v425 = vsel %vm424, %v417, %v419
    %v426 = vsel %vm424, %v419, %v421
    %v427 = vsel %vm424, %v421, %v423
    %431 = vst [vmem:[#allocation3 + $0x90] sm:$0xff] %v425
    %432 = vst [vmem:[#allocation3 + $0x98] sm:$0xff] %v426
    %433 = vst.msk [vmem:[#allocation3 + $0xa0] sm:$0xff] %vm36, %v427
    %v434 = vld [vmem:[#allocation2] sm:$0xff]
    %v435 = vld [vmem:[#allocation2 + $0x8] sm:$0xff]
    %v436 = vld [vmem:[#allocation2 + $0x10] sm:$0xff]
    %v437 = vld [vmem:[#allocation2 + $0x18] sm:$0xff]
    %442 = vrot.lane.b32.xlu0 %v434, 20
    %v443 = vpop.permute.xlu0 %442
    %444 = vrot.lane.b32.xlu0 %v435, 20
    %v445 = vpop.permute.xlu0 %444
    %446 = vrot.lane.b32.xlu0 %v436, 20
    %v447 = vpop.permute.xlu0 %446
    %448 = vrot.lane.b32.xlu0 %v437, 20
    %v449 = vpop.permute.xlu0 %448
    %vm450 = vcmask 162816
    %v451 = vsel %vm450, %v443, %v445
    %v452 = vsel %vm450, %v445, %v447
    %v453 = vsel %vm450, %v447, %v449
    %457 = vst [vmem:[#allocation3 + $0xa8] sm:$0xff] %v451
    %458 = vst [vmem:[#allocation3 + $0xb0] sm:$0xff] %v452
    %459 = vst.msk [vmem:[#allocation3 + $0xb8] sm:$0xff] %vm36, %v453
    %v460 = vld [vmem:[#allocation2] sm:$0xff]
    %v461 = vld [vmem:[#allocation2 + $0x8] sm:$0xff]
    %v462 = vld [vmem:[#allocation2 + $0x10] sm:$0xff]
    %v463 = vld [vmem:[#allocation2 + $0x18] sm:$0xff]
    %468 = vrot.lane.b32.xlu0 %v460, 19
    %v469 = vpop.permute.xlu0 %468
    %470 = vrot.lane.b32.xlu0 %v461, 19
    %v471 = vpop.permute.xlu0 %470
    %472 = vrot.lane.b32.xlu0 %v462, 19
    %v473 = vpop.permute.xlu0 %472
    %474 = vrot.lane.b32.xlu0 %v463, 19
    %v475 = vpop.permute.xlu0 %474
    %vm476 = vcmask 154624
    %v477 = vsel %vm476, %v469, %v471
    %v478 = vsel %vm476, %v471, %v473
    %v479 = vsel %vm476, %v473, %v475
    %483 = vst [vmem:[#allocation3 + $0xc0] sm:$0xff] %v477
    %484 = vst [vmem:[#allocation3 + $0xc8] sm:$0xff] %v478
    %485 = vst.msk [vmem:[#allocation3 + $0xd0] sm:$0xff] %vm36, %v479
    %v486 = vld [vmem:[#allocation2] sm:$0xff]
    %v487 = vld [vmem:[#allocation2 + $0x8] sm:$0xff]
    %v488 = vld [vmem:[#allocation2 + $0x10] sm:$0xff]
    %v489 = vld [vmem:[#allocation2 + $0x18] sm:$0xff]
    %494 = vrot.lane.b32.xlu0 %v486, 18
    %v495 = vpop.permute.xlu0 %494
    %496 = vrot.lane.b32.xlu0 %v487, 18
    %v497 = vpop.permute.xlu0 %496
    %498 = vrot.lane.b32.xlu0 %v488, 18
    %v499 = vpop.permute.xlu0 %498
    %500 = vrot.lane.b32.xlu0 %v489, 18
    %v501 = vpop.permute.xlu0 %500
    %vm502 = vcmask 146432
    %v503 = vsel %vm502, %v495, %v497
    %v504 = vsel %vm502, %v497, %v499
    %v505 = vsel %vm502, %v499, %v501
    %509 = vst [vmem:[#allocation3 + $0xd8] sm:$0xff] %v503
    %510 = vst [vmem:[#allocation3 + $0xe0] sm:$0xff] %v504
    %511 = vst.msk [vmem:[#allocation3 + $0xe8] sm:$0xff] %vm36, %v505
    %v512 = vld [vmem:[#allocation2] sm:$0xff]
    %v513 = vld [vmem:[#allocation2 + $0x8] sm:$0xff]
    %v514 = vld [vmem:[#allocation2 + $0x10] sm:$0xff]
    %v515 = vld [vmem:[#allocation2 + $0x18] sm:$0xff]
    %520 = vrot.lane.b32.xlu0 %v512, 2
    %v521 = vpop.permute.xlu0 %520
    %522 = vrot.lane.b32.xlu0 %v513, 2
    %v523 = vpop.permute.xlu0 %522
    %524 = vrot.lane.b32.xlu0 %v514, 2
    %v525 = vpop.permute.xlu0 %524
    %526 = vrot.lane.b32.xlu0 %v515, 2
    %v527 = vpop.permute.xlu0 %526
    %vm528 = vcmask 15360
    %v529 = vsel %vm528, %v521, %v523
    %v530 = vsel %vm528, %v523, %v525
    %v531 = vsel %vm528, %v525, %v527
    %535 = vst [vmem:[#allocation3 + $0xf0] sm:$0xff] %v529
    %536 = vst [vmem:[#allocation3 + $0xf8] sm:$0xff] %v530
    %537 = vst.msk [vmem:[#allocation3 + $0x100] sm:$0xff] %vm36, %v531
    %v538 = vld [vmem:[#allocation2] sm:$0xff]
    %v539 = vld [vmem:[#allocation2 + $0x8] sm:$0xff]
    %v540 = vld [vmem:[#allocation2 + $0x10] sm:$0xff]
    %v541 = vld [vmem:[#allocation2 + $0x18] sm:$0xff]
    %546 = vrot.lane.b32.xlu0 %v538, 1
    %v547 = vpop.permute.xlu0 %546
    %548 = vrot.lane.b32.xlu0 %v539, 1
    %v549 = vpop.permute.xlu0 %548
    %550 = vrot.lane.b32.xlu0 %v540, 1
    %v551 = vpop.permute.xlu0 %550
    %552 = vrot.lane.b32.xlu0 %v541, 1
    %v553 = vpop.permute.xlu0 %552
    %vm554 = vcmask 7168
    %v555 = vsel %vm554, %v547, %v549
    %v556 = vsel %vm554, %v549, %v551
    %v557 = vsel %vm554, %v551, %v553
    %561 = vst [vmem:[#allocation3 + $0x108] sm:$0xff] %v555
    %562 = vst [vmem:[#allocation3 + $0x110] sm:$0xff] %v556
    %563 = vst.msk [vmem:[#allocation3 + $0x118] sm:$0xff] %vm36, %v557
    %v564 = vld [vmem:[#allocation2 + $0x8] sm:$0xff]
    %v565 = vld [vmem:[#allocation2 + $0x10] sm:$0xff]
    %v566 = vld [vmem:[#allocation2 + $0x18] sm:$0xff]
    %567 = vst [vmem:[#allocation3 + $0x120] sm:$0xff] %v564
    %568 = vst [vmem:[#allocation3 + $0x128] sm:$0xff] %v565
    %569 = vst.msk [vmem:[#allocation3 + $0x130] sm:$0xff] %vm36, %v566
    %v570 = vld [vmem:[#allocation2 + $0x8] sm:$0xff]
    %v571 = vld [vmem:[#allocation2 + $0x10] sm:$0xff]
    %v572 = vld [vmem:[#allocation2 + $0x18] sm:$0xff]
    %576 = vrot.lane.b32.xlu0 %v570, 127
    %v577 = vpop.permute.xlu0 %576
    %578 = vrot.lane.b32.xlu0 %v571, 127
    %v579 = vpop.permute.xlu0 %578
    %580 = vrot.lane.b32.xlu0 %v572, 127
    %v581 = vpop.permute.xlu0 %580
    %vm582 = vcmask 1039360
    %v583 = vsel %vm582, %v577, %v579
    %v584 = vsel %vm582, %v579, %v581
    %588 = vst [vmem:[#allocation3 + $0x138] sm:$0xff] %v583
    %589 = vst [vmem:[#allocation3 + $0x140] sm:$0xff] %v584
    %590 = vst.msk [vmem:[#allocation3 + $0x148] sm:$0xff] %vm36, %v581
    %v591 = vld [vmem:[#allocation2 + $0x8] sm:$0xff]
    %v592 = vld [vmem:[#allocation2 + $0x10] sm:$0xff]
    %v593 = vld [vmem:[#allocation2 + $0x18] sm:$0xff]
    %597 = vrot.lane.b32.xlu0 %v591, 126
    %v598 = vpop.permute.xlu0 %597
    %599 = vrot.lane.b32.xlu0 %v592, 126
    %v600 = vpop.permute.xlu0 %599
    %601 = vrot.lane.b32.xlu0 %v593, 126
    %v602 = vpop.permute.xlu0 %601
    %vm603 = vcmask 1031168
    %v604 = vsel %vm603, %v598, %v600
    %v605 = vsel %vm603, %v600, %v602
    %609 = vst [vmem:[#allocation3 + $0x150] sm:$0xff] %v604
    %610 = vst [vmem:[#allocation3 + $0x158] sm:$0xff] %v605
    %611 = vst.msk [vmem:[#allocation3 + $0x160] sm:$0xff] %vm36, %v602
    %v612 = vld [vmem:[#allocation2 + $0x8] sm:$0xff]
    %v613 = vld [vmem:[#allocation2 + $0x10] sm:$0xff]
    %v614 = vld [vmem:[#allocation2 + $0x18] sm:$0xff]
    %618 = vrot.lane.b32.xlu0 %v612, 110
    %v619 = vpop.permute.xlu0 %618
    %620 = vrot.lane.b32.xlu0 %v613, 110
    %v621 = vpop.permute.xlu0 %620
    %622 = vrot.lane.b32.xlu0 %v614, 110
    %v623 = vpop.permute.xlu0 %622
    %vm624 = vcmask 900096
    %v625 = vsel %vm624, %v619, %v621
    %v626 = vsel %vm624, %v621, %v623
    %630 = vst [vmem:[#allocation3 + $0x168] sm:$0xff] %v625
    %631 = vst [vmem:[#allocation3 + $0x170] sm:$0xff] %v626
    %632 = vst.msk [vmem:[#allocation3 + $0x178] sm:$0xff] %vm36, %v623
    %v633 = vld [vmem:[#allocation2 + $0x8] sm:$0xff]
    %v634 = vld [vmem:[#allocation2 + $0x10] sm:$0xff]
    %v635 = vld [vmem:[#allocation2 + $0x18] sm:$0xff]
    %639 = vrot.lane.b32.xlu0 %v633, 109
    %v640 = vpop.permute.xlu0 %639
    %641 = vrot.lane.b32.xlu0 %v634, 109
    %v642 = vpop.permute.xlu0 %641
    %643 = vrot.lane.b32.xlu0 %v635, 109
    %v644 = vpop.permute.xlu0 %643
    %vm645 = vcmask 891904
    %v646 = vsel %vm645, %v640, %v642
    %v647 = vsel %vm645, %v642, %v644
    %651 = vst [vmem:[#allocation3 + $0x180] sm:$0xff] %v646
    %652 = vst [vmem:[#allocation3 + $0x188] sm:$0xff] %v647
    %653 = vst.msk [vmem:[#allocation3 + $0x190] sm:$0xff] %vm36, %v644
    %v654 = vld [vmem:[#allocation2 + $0x8] sm:$0xff]
    %v655 = vld [vmem:[#allocation2 + $0x10] sm:$0xff]
    %v656 = vld [vmem:[#allocation2 + $0x18] sm:$0xff]
    %660 = vrot.lane.b32.xlu0 %v654, 108
    %v661 = vpop.permute.xlu0 %660
    %662 = vrot.lane.b32.xlu0 %v655, 108
    %v663 = vpop.permute.xlu0 %662
    %664 = vrot.lane.b32.xlu0 %v656, 108
    %v665 = vpop.permute.xlu0 %664
    %vm666 = vcmask 883712
    %v667 = vsel %vm666, %v661, %v663
    %v668 = vsel %vm666, %v663, %v665
    %672 = vst [vmem:[#allocation3 + $0x198] sm:$0xff] %v667
    %673 = vst [vmem:[#allocation3 + $0x1a0] sm:$0xff] %v668
    %674 = vst.msk [vmem:[#allocation3 + $0x1a8] sm:$0xff] %vm36, %v665
    %v675 = vld [vmem:[#allocation2 + $0x8] sm:$0xff]
    %v676 = vld [vmem:[#allocation2 + $0x10] sm:$0xff]
    %v677 = vld [vmem:[#allocation2 + $0x18] sm:$0xff]
    %681 = vrot.lane.b32.xlu0 %v675, 107
    %v682 = vpop.permute.xlu0 %681
    %683 = vrot.lane.b32.xlu0 %v676, 107
    %v684 = vpop.permute.xlu0 %683
    %685 = vrot.lane.b32.xlu0 %v677, 107
    %v686 = vpop.permute.xlu0 %685
    %vm687 = vcmask 875520
    %v688 = vsel %vm687, %v682, %v684
    %v689 = vsel %vm687, %v684, %v686
    %693 = vst [vmem:[#allocation3 + $0x1b0] sm:$0xff] %v688
    %694 = vst [vmem:[#allocation3 + $0x1b8] sm:$0xff] %v689
    %695 = vst.msk [vmem:[#allocation3 + $0x1c0] sm:$0xff] %vm36, %v686
    %v696 = vld [vmem:[#allocation2 + $0x8] sm:$0xff]
    %v697 = vld [vmem:[#allocation2 + $0x10] sm:$0xff]
    %v698 = vld [vmem:[#allocation2 + $0x18] sm:$0xff]
    %702 = vrot.lane.b32.xlu0 %v696, 106
    %v703 = vpop.permute.xlu0 %702
    %704 = vrot.lane.b32.xlu0 %v697, 106
    %v705 = vpop.permute.xlu0 %704
    %706 = vrot.lane.b32.xlu0 %v698, 106
    %v707 = vpop.permute.xlu0 %706
    %vm708 = vcmask 867328
    %v709 = vsel %vm708, %v703, %v705
    %v710 = vsel %vm708, %v705, %v707
    %714 = vst [vmem:[#allocation3 + $0x1c8] sm:$0xff] %v709
    %715 = vst [vmem:[#allocation3 + $0x1d0] sm:$0xff] %v710
    %716 = vst.msk [vmem:[#allocation3 + $0x1d8] sm:$0xff] %vm36, %v707
    %v717 = vld [vmem:[#allocation2 + $0x8] sm:$0xff]
    %v718 = vld [vmem:[#allocation2 + $0x10] sm:$0xff]
    %v719 = vld [vmem:[#allocation2 + $0x18] sm:$0xff]
    %723 = vrot.lane.b32.xlu0 %v717, 90
    %v724 = vpop.permute.xlu0 %723
    %725 = vrot.lane.b32.xlu0 %v718, 90
    %v726 = vpop.permute.xlu0 %725
    %727 = vrot.lane.b32.xlu0 %v719, 90
    %v728 = vpop.permute.xlu0 %727
    %vm729 = vcmask 736256
    %v730 = vsel %vm729, %v724, %v726
    %v731 = vsel %vm729, %v726, %v728
    %735 = vst [vmem:[#allocation3 + $0x1e0] sm:$0xff] %v730
    %736 = vst [vmem:[#allocation3 + $0x1e8] sm:$0xff] %v731
    %737 = vst.msk [vmem:[#allocation3 + $0x1f0] sm:$0xff] %vm36, %v728
    %v738 = vld [vmem:[#allocation2 + $0x8] sm:$0xff]
    %v739 = vld [vmem:[#allocation2 + $0x10] sm:$0xff]
    %v740 = vld [vmem:[#allocation2 + $0x18] sm:$0xff]
    %744 = vrot.lane.b32.xlu0 %v738, 89
    %v745 = vpop.permute.xlu0 %744
    %746 = vrot.lane.b32.xlu0 %v739, 89
    %v747 = vpop.permute.xlu0 %746
    %748 = vrot.lane.b32.xlu0 %v740, 89
    %v749 = vpop.permute.xlu0 %748
    %vm750 = vcmask 728064
    %v751 = vsel %vm750, %v745, %v747
    %v752 = vsel %vm750, %v747, %v749
    %756 = vst [vmem:[#allocation3 + $0x1f8] sm:$0xff] %v751
    %757 = vst [vmem:[#allocation3 + $0x200] sm:$0xff] %v752
    %758 = vst.msk [vmem:[#allocation3 + $0x208] sm:$0xff] %vm36, %v749
    %v759 = vld [vmem:[#allocation2 + $0x8] sm:$0xff]
    %v760 = vld [vmem:[#allocation2 + $0x10] sm:$0xff]
    %v761 = vld [vmem:[#allocation2 + $0x18] sm:$0xff]
    %765 = vrot.lane.b32.xlu0 %v759, 88
    %v766 = vpop.permute.xlu0 %765
    %767 = vrot.lane.b32.xlu0 %v760, 88
    %v768 = vpop.permute.xlu0 %767
    %769 = vrot.lane.b32.xlu0 %v761, 88
    %v770 = vpop.permute.xlu0 %769
    %vm771 = vcmask 719872
    %v772 = vsel %vm771, %v766, %v768
    %v773 = vsel %vm771, %v768, %v770
    %777 = vst [vmem:[#allocation3 + $0x210] sm:$0xff] %v772
    %778 = vst [vmem:[#allocation3 + $0x218] sm:$0xff] %v773
    %779 = vst.msk [vmem:[#allocation3 + $0x220] sm:$0xff] %vm36, %v770
    %v780 = vld [vmem:[#allocation2 + $0x8] sm:$0xff]
    %v781 = vld [vmem:[#allocation2 + $0x10] sm:$0xff]
    %v782 = vld [vmem:[#allocation2 + $0x18] sm:$0xff]
    %786 = vrot.lane.b32.xlu0 %v780, 87
    %v787 = vpop.permute.xlu0 %786
    %788 = vrot.lane.b32.xlu0 %v781, 87
    %v789 = vpop.permute.xlu0 %788
    %790 = vrot.lane.b32.xlu0 %v782, 87
    %v791 = vpop.permute.xlu0 %790
    %vm792 = vcmask 711680
    %v793 = vsel %vm792, %v787, %v789
    %v794 = vsel %vm792, %v789, %v791
    %798 = vst [vmem:[#allocation3 + $0x228] sm:$0xff] %v793
    %799 = vst [vmem:[#allocation3 + $0x230] sm:$0xff] %v794
    %800 = vst.msk [vmem:[#allocation3 + $0x238] sm:$0xff] %vm36, %v791
    %v801 = vld [vmem:[#allocation2 + $0x8] sm:$0xff]
    %v802 = vld [vmem:[#allocation2 + $0x10] sm:$0xff]
    %v803 = vld [vmem:[#allocation2 + $0x18] sm:$0xff]
    %807 = vrot.lane.b32.xlu0 %v801, 86
    %v808 = vpop.permute.xlu0 %807
    %809 = vrot.lane.b32.xlu0 %v802, 86
    %v810 = vpop.permute.xlu0 %809
    %811 = vrot.lane.b32.xlu0 %v803, 86
    %v812 = vpop.permute.xlu0 %811
    %vm813 = vcmask 703488
    %v814 = vsel %vm813, %v808, %v810
    %v815 = vsel %vm813, %v810, %v812
    %819 = vst [vmem:[#allocation3 + $0x240] sm:$0xff] %v814
    %820 = vst [vmem:[#allocation3 + $0x248] sm:$0xff] %v815
    %821 = vst.msk [vmem:[#allocation3 + $0x250] sm:$0xff] %vm36, %v812
    %v822 = vld [vmem:[%s4] sm:$0xff]
    %v823 = vld [vmem:[%s4 + $0x8] sm:$0xff]
    %v824 = vld [vmem:[%s4 + $0x10] sm:$0xff]
    %v825 = vld [vmem:[%s4 + $0x18] sm:$0xff]
    %v826 = vld [vmem:[#allocation3] sm:$0xff]
    %v827 = vld [vmem:[#allocation3 + $0x8] sm:$0xff]
    %v828 = vld [vmem:[#allocation3 + $0x10] sm:$0xff]
    %v829 = vld [vmem:[#allocation3 + $0x18] sm:$0xff]
    %v830 = vld [vmem:[#allocation3 + $0x20] sm:$0xff]
    %v831 = vld [vmem:[#allocation3 + $0x28] sm:$0xff]
    %v832 = vld [vmem:[#allocation3 + $0x30] sm:$0xff]
    %v833 = vld [vmem:[#allocation3 + $0x38] sm:$0xff]
    %v834 = vld [vmem:[#allocation3 + $0x40] sm:$0xff]
    %v835 = vld [vmem:[#allocation3 + $0x48] sm:$0xff]
    %v836 = vld [vmem:[#allocation3 + $0x50] sm:$0xff]
    %v837 = vld [vmem:[#allocation3 + $0x58] sm:$0xff]
    %v838 = vld [vmem:[#allocation3 + $0x60] sm:$0xff]
    %v839 = vld [vmem:[#allocation3 + $0x68] sm:$0xff]
    %v840 = vld [vmem:[#allocation3 + $0x70] sm:$0xff]
    %v841 = vld [vmem:[#allocation3 + $0x78] sm:$0xff]
    %v842 = vld [vmem:[#allocation3 + $0x80] sm:$0xff]
    %v843 = vld [vmem:[#allocation3 + $0x88] sm:$0xff]
    %v844 = vld [vmem:[#allocation3 + $0x90] sm:$0xff]
    %v845 = vld [vmem:[#allocation3 + $0x98] sm:$0xff]
    %v846 = vld [vmem:[#allocation3 + $0xa0] sm:$0xff]
    %v847 = vld [vmem:[#allocation3 + $0xa8] sm:$0xff]
    %v848 = vld [vmem:[#allocation3 + $0xb0] sm:$0xff]
    %v849 = vld [vmem:[#allocation3 + $0xb8] sm:$0xff]
    %v850 = vld [vmem:[#allocation3 + $0xc0] sm:$0xff]
    %v851 = vld [vmem:[#allocation3 + $0xc8] sm:$0xff]
    %v852 = vld [vmem:[#allocation3 + $0xd0] sm:$0xff]
    %v853 = vld [vmem:[#allocation3 + $0xd8] sm:$0xff]
    %v854 = vld [vmem:[#allocation3 + $0xe0] sm:$0xff]
    %v855 = vld [vmem:[#allocation3 + $0xe8] sm:$0xff]
    %v856 = vld [vmem:[#allocation3 + $0xf0] sm:$0xff]
    %v857 = vld [vmem:[#allocation3 + $0xf8] sm:$0xff]
    %v858 = vld [vmem:[#allocation3 + $0x100] sm:$0xff]
    %v859 = vld [vmem:[#allocation3 + $0x108] sm:$0xff]
    %v860 = vld [vmem:[#allocation3 + $0x110] sm:$0xff]
    %v861 = vld [vmem:[#allocation3 + $0x118] sm:$0xff]
    %v862 = vld [vmem:[#allocation3 + $0x120] sm:$0xff]
    %v863 = vld [vmem:[#allocation3 + $0x128] sm:$0xff]
    %v864 = vld [vmem:[#allocation3 + $0x130] sm:$0xff]
    %v865 = vld [vmem:[#allocation3 + $0x138] sm:$0xff]
    %v866 = vld [vmem:[#allocation3 + $0x140] sm:$0xff]
    %v867 = vld [vmem:[#allocation3 + $0x148] sm:$0xff]
    %v868 = vld [vmem:[#allocation3 + $0x150] sm:$0xff]
    %v869 = vld [vmem:[#allocation3 + $0x158] sm:$0xff]
    %v870 = vld [vmem:[#allocation3 + $0x160] sm:$0xff]
    %v871 = vld [vmem:[#allocation3 + $0x168] sm:$0xff]
    %v872 = vld [vmem:[#allocation3 + $0x170] sm:$0xff]
    %v873 = vld [vmem:[#allocation3 + $0x178] sm:$0xff]
    %v874 = vld [vmem:[#allocation3 + $0x180] sm:$0xff]
    %v875 = vld [vmem:[#allocation3 + $0x188] sm:$0xff]
    %v876 = vld [vmem:[#allocation3 + $0x190] sm:$0xff]
    %v877 = vld [vmem:[#allocation3 + $0x198] sm:$0xff]
    %v878 = vld [vmem:[#allocation3 + $0x1a0] sm:$0xff]
    %v879 = vld [vmem:[#allocation3 + $0x1a8] sm:$0xff]
    %v880 = vld [vmem:[#allocation3 + $0x1b0] sm:$0xff]
    %v881 = vld [vmem:[#allocation3 + $0x1b8] sm:$0xff]
    %v882 = vld [vmem:[#allocation3 + $0x1c0] sm:$0xff]
    %v883 = vld [vmem:[#allocation3 + $0x1c8] sm:$0xff]
    %v884 = vld [vmem:[#allocation3 + $0x1d0] sm:$0xff]
    %v885 = vld [vmem:[#allocation3 + $0x1d8] sm:$0xff]
    %v886 = vld [vmem:[#allocation3 + $0x1e0] sm:$0xff]
    %v887 = vld [vmem:[#allocation3 + $0x1e8] sm:$0xff]
    %v888 = vld [vmem:[#allocation3 + $0x1f0] sm:$0xff]
    %v889 = vld [vmem:[#allocation3 + $0x1f8] sm:$0xff]
    %v890 = vld [vmem:[#allocation3 + $0x200] sm:$0xff]
    %v891 = vld [vmem:[#allocation3 + $0x208] sm:$0xff]
    %v892 = vld [vmem:[#allocation3 + $0x210] sm:$0xff]
    %v893 = vld [vmem:[#allocation3 + $0x218] sm:$0xff]
    %v894 = vld [vmem:[#allocation3 + $0x220] sm:$0xff]
    %v895 = vld [vmem:[#allocation3 + $0x228] sm:$0xff]
    %v896 = vld [vmem:[#allocation3 + $0x230] sm:$0xff]
    %v897 = vld [vmem:[#allocation3 + $0x238] sm:$0xff]
    %v898 = vld [vmem:[#allocation3 + $0x240] sm:$0xff]
    %v899 = vld [vmem:[#allocation3 + $0x248] sm:$0xff]
    %v900 = vld [vmem:[#allocation3 + $0x250] sm:$0xff]
    %v901 = vld [vmem:[%s5] sm:$0xff]
    %v902 = vld [vmem:[%s5 + $0x8] sm:$0xff]
    %904 = vset.pattern.permute.xlu0 0
    %905 = vperm.xlu0 %904, %v901
    %v906 = vpop.permute.xlu0 %905
    %909 = vset.pattern.permute.xlu0 0
    %910 = vperm.xlu0 %909, %v902
    %v911 = vpop.permute.xlu0 %910
    %v917 = vunpack.c.l.b16 %v822
    %v918 = vunpack.c.h.b16 %v822
    %v919 = vunpack.c.l.b16 %v823
    %v920 = vunpack.c.h.b16 %v823
    %v921 = vunpack.c.l.b16 %v824
    %v922 = vunpack.c.h.b16 %v824
    %v923 = vunpack.c.l.b16 %v825
    %v924 = vunpack.c.h.b16 %v825
    %v925 = vpack.c.b16 %v921, %v917
    %v926 = vpack.c.b16 %v922, %v918
    %v927 = vpack.c.b16 %v923, %v919
    %v928 = vpack.c.b16 %v924, %v920
    %vm932 = vcmask 130048
    %v934 = vsel %vm932, %v928, 0
    %936 = vmatprep.subr.bf16.mxu0 %v827
    %937 = vmatpush1.bf16.msra.mxu0 %v826
    %938 = vmatprep.subr.bf16.mxu0 %v830
    %939 = vmatpush1.bf16.msra.mxu0 %v829
    %940 = vmatprep.subr.bf16.mxu0 %v833
    %941 = vmatpush1.bf16.msra.mxu0 %v832
    %942 = vmatprep.subr.bf16.mxu0 %v836
    %943 = vmatpush1.bf16.msra.mxu0 %v835
    %944 = vmatprep.subr.bf16.mxu0 %v839
    %945 = vmatpush1.bf16.msra.mxu0 %v838
    %946 = vmatprep.subr.bf16.mxu0 %v842
    %947 = vmatpush1.bf16.msra.mxu0 %v841
    %948 = vmatprep.subr.bf16.mxu0 %v845
    %949 = vmatpush1.bf16.msra.mxu0 %v844
    %950 = vmatprep.subr.bf16.mxu0 %v848
    %951 = vmatpush1.bf16.msra.mxu0 %v847
    %952 = vmatprep.subr.bf16.mxu0 %v851
    %953 = vmatpush1.bf16.msra.mxu0 %v850
    %954 = vmatprep.subr.bf16.mxu0 %v854
    %955 = vmatpush1.bf16.msra.mxu0 %v853
    %956 = vmatprep.subr.bf16.mxu0 %v857
    %957 = vmatpush1.bf16.msra.mxu0 %v856
    %958 = vmatprep.subr.bf16.mxu0 %v860
    %959 = vmatpush1.bf16.msra.mxu0 %v859
    %960 = vmatprep.subr.bf16.mxu0 %v863
    %961 = vmatpush1.bf16.msra.mxu0 %v862
    %962 = vmatprep.subr.bf16.mxu0 %v866
    %963 = vmatpush1.bf16.msra.mxu0 %v865
    %964 = vmatprep.subr.bf16.mxu0 %v869
    %965 = vmatpush1.bf16.msra.mxu0 %v868
    %966 = vmatprep.subr.bf16.mxu0 %v872
    %967 = vmatpush1.bf16.msra.mxu0 %v871
    %968 = vmatprep.mubr.bf16.mxu0 %v926
    %969 = vmatmul.mubr.bf16.gmra.mrb[0].mxu0 %v925
    %v970 = vpop.f32.mrb[0].mxu0
    %v971 = vadd.f32 %v906, %v970
    %v972 = vpop.f32.mrb[0].mxu0
    %v973 = vadd.f32 %v906, %v972
    %v974 = vpop.f32.mrb[0].mxu0
    %v975 = vadd.f32 %v911, %v974
    %v976 = vpop.f32.mrb[0].mxu0
    %v977 = vadd.f32 %v911, %v976
    %978 = vdwg.mxu0
    %979 = vmatprep.subr.bf16.mxu0 %v875
    %980 = vmatpush1.bf16.msra.mxu0 %v874
    %981 = vmatprep.subr.bf16.mxu0 %v878
    %982 = vmatpush1.bf16.msra.mxu0 %v877
    %983 = vmatprep.subr.bf16.mxu0 %v881
    %984 = vmatpush1.bf16.msra.mxu0 %v880
    %985 = vmatprep.subr.bf16.mxu0 %v884
    %986 = vmatpush1.bf16.msra.mxu0 %v883
    %987 = vmatprep.subr.bf16.mxu0 %v887
    %988 = vmatpush1.bf16.msra.mxu0 %v886
    %989 = vmatprep.subr.bf16.mxu0 %v890
    %990 = vmatpush1.bf16.msra.mxu0 %v889
    %991 = vmatprep.subr.bf16.mxu0 %v893
    %992 = vmatpush1.bf16.msra.mxu0 %v892
    %993 = vmatprep.subr.bf16.mxu0 %v896
    %994 = vmatpush1.bf16.msra.mxu0 %v895
    %995 = vmatprep.subr.bf16.mxu0 %v899
    %996 = vmatpush1.bf16.msra.mxu0 %v898
    %997 = vmatprep.subr.bf16.mxu0 0
    %998 = vmatpush1.bf16.msra.mxu0 0
    %999 = vmatprep.subr.bf16.mxu0 0
    %1000 = vmatpush1.bf16.msra.mxu0 0
    %1001 = vmatprep.subr.bf16.mxu0 0
    %1002 = vmatpush1.bf16.msra.mxu0 0
    %1003 = vmatprep.subr.bf16.mxu0 0
    %1004 = vmatpush1.bf16.msra.mxu0 0
    %1005 = vmatprep.subr.bf16.mxu0 0
    %1006 = vmatpush1.bf16.msra.mxu0 0
    %1007 = vmatprep.subr.bf16.mxu0 0
    %1008 = vmatpush1.bf16.msra.mxu0 0
    %1009 = vmatprep.subr.bf16.mxu0 0
    %1010 = vmatpush1.bf16.msra.mxu0 0
    %1011 = vmatprep.mubr.bf16.mxu0 %v934
    %1012 = vmatmul.mubr.bf16.gmra.mrb[0].mxu0 %v927
    %v1013 = vpop.f32.mrb[0].mxu0
    %v1014 = vadd.f32 %v971, %v1013
    %v1015 = vpop.f32.mrb[0].mxu0
    %v1016 = vadd.f32 %v973, %v1015
    %v1017 = vpop.f32.mrb[0].mxu0
    %v1018 = vadd.f32 %v975, %v1017
    %v1019 = vpop.f32.mrb[0].mxu0
    %v1020 = vadd.f32 %v977, %v1019
    %1021 = vdwg.mxu0
    %1022 = vmatprep.subr.bf16.mxu0 0
    %1023 = vmatpush1.bf16.msra.mxu0 %v828
    %1024 = vmatprep.subr.bf16.mxu0 0
    %1025 = vmatpush1.bf16.msra.mxu0 %v831
    %1026 = vmatprep.subr.bf16.mxu0 0
    %1027 = vmatpush1.bf16.msra.mxu0 %v834
    %1028 = vmatprep.subr.bf16.mxu0 0
    %1029 = vmatpush1.bf16.msra.mxu0 %v837
    %1030 = vmatprep.subr.bf16.mxu0 0
    %1031 = vmatpush1.bf16.msra.mxu0 %v840
    %1032 = vmatprep.subr.bf16.mxu0 0
    %1033 = vmatpush1.bf16.msra.mxu0 %v843
    %1034 = vmatprep.subr.bf16.mxu0 0
    %1035 = vmatpush1.bf16.msra.mxu0 %v846
    %1036 = vmatprep.subr.bf16.mxu0 0
    %1037 = vmatpush1.bf16.msra.mxu0 %v849
    %1038 = vmatprep.subr.bf16.mxu0 0
    %1039 = vmatpush1.bf16.msra.mxu0 %v852
    %1040 = vmatprep.subr.bf16.mxu0 0
    %1041 = vmatpush1.bf16.msra.mxu0 %v855
    %1042 = vmatprep.subr.bf16.mxu0 0
    %1043 = vmatpush1.bf16.msra.mxu0 %v858
    %1044 = vmatprep.subr.bf16.mxu0 0
    %1045 = vmatpush1.bf16.msra.mxu0 %v861
    %1046 = vmatprep.subr.bf16.mxu0 0
    %1047 = vmatpush1.bf16.msra.mxu0 %v864
    %1048 = vmatprep.subr.bf16.mxu0 0
    %1049 = vmatpush1.bf16.msra.mxu0 %v867
    %1050 = vmatprep.subr.bf16.mxu0 0
    %1051 = vmatpush1.bf16.msra.mxu0 %v870
    %1052 = vmatprep.subr.bf16.mxu0 0
    %1053 = vmatpush1.bf16.msra.mxu0 %v873
    %1054 = vmatprep.mubr.bf16.mxu0 %v926
    %1055 = vmatmul.mubr.bf16.gmra.mrb[0].mxu0 %v925
    %v1056 = vpop.f32.mrb[0].mxu0
    %v1057 = vadd.f32 %v906, %v1056
    %v1058 = vpop.f32.mrb[0].mxu0
    %v1059 = vpop.f32.mrb[0].mxu0
    %v1060 = vadd.f32 %v911, %v1059
    %v1061 = vpop.f32.mrb[0].mxu0
    %1062 = vdwg.mxu0
    %1063 = vmatprep.subr.bf16.mxu0 0
    %1064 = vmatpush1.bf16.msra.mxu0 %v876
    %1065 = vmatprep.subr.bf16.mxu0 0
    %1066 = vmatpush1.bf16.msra.mxu0 %v879
    %1067 = vmatprep.subr.bf16.mxu0 0
    %1068 = vmatpush1.bf16.msra.mxu0 %v882
    %1069 = vmatprep.subr.bf16.mxu0 0
    %1070 = vmatpush1.bf16.msra.mxu0 %v885
    %1071 = vmatprep.subr.bf16.mxu0 0
    %1072 = vmatpush1.bf16.msra.mxu0 %v888
    %1073 = vmatprep.subr.bf16.mxu0 0
    %1074 = vmatpush1.bf16.msra.mxu0 %v891
    %1075 = vmatprep.subr.bf16.mxu0 0
    %1076 = vmatpush1.bf16.msra.mxu0 %v894
    %1077 = vmatprep.subr.bf16.mxu0 0
    %1078 = vmatpush1.bf16.msra.mxu0 %v897
    %1079 = vmatprep.subr.bf16.mxu0 0
    %1080 = vmatpush1.bf16.msra.mxu0 %v900
    %1081 = vmatprep.subr.bf16.mxu0 0
    %1082 = vmatpush1.bf16.msra.mxu0 0
    %1083 = vmatprep.subr.bf16.mxu0 0
    %1084 = vmatpush1.bf16.msra.mxu0 0
    %1085 = vmatprep.subr.bf16.mxu0 0
    %1086 = vmatpush1.bf16.msra.mxu0 0
    %1087 = vmatprep.subr.bf16.mxu0 0
    %1088 = vmatpush1.bf16.msra.mxu0 0
    %1089 = vmatprep.subr.bf16.mxu0 0
    %1090 = vmatpush1.bf16.msra.mxu0 0
    %1091 = vmatprep.subr.bf16.mxu0 0
    %1092 = vmatpush1.bf16.msra.mxu0 0
    %1093 = vmatprep.subr.bf16.mxu0 0
    %1094 = vmatpush1.bf16.msra.mxu0 0
    %1095 = vmatprep.mubr.bf16.mxu0 %v934
    %1096 = vmatmul.mubr.bf16.gmra.mrb[0].mxu0 %v927
    %v1097 = vpop.f32.mrb[0].mxu0
    %v1098 = vadd.f32 %v1057, %v1097
    %v1099 = vpop.f32.mrb[0].mxu0
    %v1100 = vpop.f32.mrb[0].mxu0
    %v1101 = vadd.f32 %v1060, %v1100
    %v1102 = vpop.f32.mrb[0].mxu0
    %1103 = vdwg.mxu0
    %1104 = vst [vmem:[#allocation4] sm:$0xff] %v1014
    %1105 = vst [vmem:[#allocation4 + $0x8] sm:$0xff] %v1016
    %1106 = vst.msk [vmem:[#allocation4 + $0x10] sm:$0xff] %vm36, %v1098
    %1107 = vst [vmem:[#allocation4 + $0x18] sm:$0xff] %v1018
    %1108 = vst [vmem:[#allocation4 + $0x20] sm:$0xff] %v1020
    %1109 = vst.msk [vmem:[#allocation4 + $0x28] sm:$0xff] %vm36, %v1101
    %v1110 = vld [vmem:[%s6] sm:$0x7]
    %v1111 = vld [vmem:[%s7] sm:$0x7]
    %1113 = vset.pattern.permute.xlu0 0
    %1114 = vperm.xlu0 %1113, %v1111
    %v1115 = vpop.permute.xlu0 %1114
    %v1118 = vsel %vm932, %v1110, 0
    %1120 = vmatprep.subr.mxu0 %v1016
    %1121 = vmatpush1.msra.mxu0 %v1014
    %1122 = vmatprep.subr.mxu0 %v1020
    %1123 = vmatpush1.msra.mxu0 %v1018
    %1124 = vmatprep.subr.mxu0 0.0
    %1125 = vmatpush1.msra.mxu0 0.0
    %1126 = vmatprep.subr.mxu0 0.0
    %1127 = vmatpush1.msra.mxu0 0.0
    %1128 = vmatprep.subr.mxu0 0.0
    %1129 = vmatpush1.msra.mxu0 0.0
    %1130 = vmatprep.subr.mxu0 0.0
    %1131 = vmatpush1.msra.mxu0 0.0
    %1132 = vmatprep.subr.mxu0 0.0
    %1133 = vmatpush1.msra.mxu0 0.0
    %1134 = vmatprep.subr.mxu0 0.0
    %1135 = vmatpush1.msra.mxu0 0.0
    %1136 = vmatprep.subr.mxu0 0.0
    %1137 = vmatpush1.msra.mxu0 0.0
    %1138 = vmatprep.subr.mxu0 0.0
    %1139 = vmatpush1.msra.mxu0 0.0
    %1140 = vmatprep.subr.mxu0 0.0
    %1141 = vmatpush1.msra.mxu0 0.0
    %1142 = vmatprep.subr.mxu0 0.0
    %1143 = vmatpush1.msra.mxu0 0.0
    %1144 = vmatprep.subr.mxu0 0.0
    %1145 = vmatpush1.msra.mxu0 0.0
    %1146 = vmatprep.subr.mxu0 0.0
    %1147 = vmatpush1.msra.mxu0 0.0
    %1148 = vmatprep.subr.mxu0 0.0
    %1149 = vmatpush1.msra.mxu0 0.0
    %1150 = vmatprep.subr.mxu0 0.0
    %1151 = vmatpush1.msra.mxu0 0.0
    %1152 = vmatprep.subr.mxu0 0.0
    %1153 = vmatpush1.msra.mxu0 0.0
    %1154 = vmatprep.subr.mxu0 0.0
    %1155 = vmatpush1.msra.mxu0 0.0
    %1156 = vmatprep.subr.mxu0 0.0
    %1157 = vmatpush1.msra.mxu0 0.0
    %1158 = vmatprep.subr.mxu0 0.0
    %1159 = vmatpush1.msra.mxu0 0.0
    %1160 = vmatprep.subr.mxu0 0.0
    %1161 = vmatpush1.msra.mxu0 0.0
    %1162 = vmatprep.subr.mxu0 0.0
    %1163 = vmatpush1.msra.mxu0 0.0
    %1164 = vmatprep.subr.mxu0 0.0
    %1165 = vmatpush1.msra.mxu0 0.0
    %1166 = vmatprep.subr.mxu0 0.0
    %1167 = vmatpush1.msra.mxu0 0.0
    %1168 = vmatprep.subr.mxu0 0.0
    %1169 = vmatpush1.msra.mxu0 0.0
    %1170 = vmatprep.subr.mxu0 0.0
    %1171 = vmatpush1.msra.mxu0 0.0
    %1172 = vmatprep.subr.mxu0 0.0
    %1173 = vmatpush1.msra.mxu0 0.0
    %1174 = vmatprep.subr.mxu0 0.0
    %1175 = vmatpush1.msra.mxu0 0.0
    %1176 = vmatprep.subr.mxu0 0.0
    %1177 = vmatpush1.msra.mxu0 0.0
    %1178 = vmatprep.subr.mxu0 0.0
    %1179 = vmatpush1.msra.mxu0 0.0
    %1180 = vmatprep.subr.mxu0 0.0
    %1181 = vmatpush1.msra.mxu0 0.0
    %1182 = vmatprep.subr.mxu0 0.0
    %1183 = vmatpush1.msra.mxu0 0.0
    %1184 = vmatprep.mubr.f32.mxu0 0.0
    %1185 = vmatmul.mubr.f32.gmra.mrb[0].mxu0 %v1118
    %v1186 = vpop.f32.mrb[0].mxu0
    %v1187 = vadd.f32 %v1115, %v1186
    %v1188 = vpop.f32.mrb[0].mxu0
    %v1189 = vadd.f32 %v1115, %v1188
    %1190 = vdwg.mxu0
    %1191 = vmatprep.subr.mxu0 0.0
    %1192 = vmatpush1.msra.mxu0 %v1098
    %1193 = vmatprep.subr.mxu0 0.0
    %1194 = vmatpush1.msra.mxu0 %v1101
    %1195 = vmatprep.subr.mxu0 0.0
    %1196 = vmatpush1.msra.mxu0 0.0
    %1197 = vmatprep.subr.mxu0 0.0
    %1198 = vmatpush1.msra.mxu0 0.0
    %1199 = vmatprep.subr.mxu0 0.0
    %1200 = vmatpush1.msra.mxu0 0.0
    %1201 = vmatprep.subr.mxu0 0.0
    %1202 = vmatpush1.msra.mxu0 0.0
    %1203 = vmatprep.subr.mxu0 0.0
    %1204 = vmatpush1.msra.mxu0 0.0
    %1205 = vmatprep.subr.mxu0 0.0
    %1206 = vmatpush1.msra.mxu0 0.0
    %1207 = vmatprep.subr.mxu0 0.0
    %1208 = vmatpush1.msra.mxu0 0.0
    %1209 = vmatprep.subr.mxu0 0.0
    %1210 = vmatpush1.msra.mxu0 0.0
    %1211 = vmatprep.subr.mxu0 0.0
    %1212 = vmatpush1.msra.mxu0 0.0
    %1213 = vmatprep.subr.mxu0 0.0
    %1214 = vmatpush1.msra.mxu0 0.0
    %1215 = vmatprep.subr.mxu0 0.0
    %1216 = vmatpush1.msra.mxu0 0.0
    %1217 = vmatprep.subr.mxu0 0.0
    %1218 = vmatpush1.msra.mxu0 0.0
    %1219 = vmatprep.subr.mxu0 0.0
    %1220 = vmatpush1.msra.mxu0 0.0
    %1221 = vmatprep.subr.mxu0 0.0
    %1222 = vmatpush1.msra.mxu0 0.0
    %1223 = vmatprep.subr.mxu0 0.0
    %1224 = vmatpush1.msra.mxu0 0.0
    %1225 = vmatprep.subr.mxu0 0.0
    %1226 = vmatpush1.msra.mxu0 0.0
    %1227 = vmatprep.subr.mxu0 0.0
    %1228 = vmatpush1.msra.mxu0 0.0
    %1229 = vmatprep.subr.mxu0 0.0
    %1230 = vmatpush1.msra.mxu0 0.0
    %1231 = vmatprep.subr.mxu0 0.0
    %1232 = vmatpush1.msra.mxu0 0.0
    %1233 = vmatprep.subr.mxu0 0.0
    %1234 = vmatpush1.msra.mxu0 0.0
    %1235 = vmatprep.subr.mxu0 0.0
    %1236 = vmatpush1.msra.mxu0 0.0
    %1237 = vmatprep.subr.mxu0 0.0
    %1238 = vmatpush1.msra.mxu0 0.0
    %1239 = vmatprep.subr.mxu0 0.0
    %1240 = vmatpush1.msra.mxu0 0.0
    %1241 = vmatprep.subr.mxu0 0.0
    %1242 = vmatpush1.msra.mxu0 0.0
    %1243 = vmatprep.subr.mxu0 0.0
    %1244 = vmatpush1.msra.mxu0 0.0
    %1245 = vmatprep.subr.mxu0 0.0
    %1246 = vmatpush1.msra.mxu0 0.0
    %1247 = vmatprep.subr.mxu0 0.0
    %1248 = vmatpush1.msra.mxu0 0.0
    %1249 = vmatprep.subr.mxu0 0.0
    %1250 = vmatpush1.msra.mxu0 0.0
    %1251 = vmatprep.subr.mxu0 0.0
    %1252 = vmatpush1.msra.mxu0 0.0
    %1253 = vmatprep.subr.mxu0 0.0
    %1254 = vmatpush1.msra.mxu0 0.0
    %1255 = vmatprep.mubr.f32.mxu0 0.0
    %1256 = vmatmul.mubr.f32.gmra.mrb[0].mxu0 %v1118
    %v1257 = vpop.f32.mrb[0].mxu0
    %v1258 = vadd.f32 %v1115, %v1257
    %v1259 = vpop.f32.mrb[0].mxu0
    %1260 = vdwg.mxu0
    %v1263 = vcombine.low %v1187, %v1189
    %1265 = vst [vmem:[%s9] sm:$0x77] %v1263
    %vm1266 = vcmask 518144
    %1267 = vst.msk [vmem:[%s9 + $0x8] sm:$0x7] %vm1266, %v1258
    %s1268 = scalar_lea.vmem %s0, 12
    %v1269 = vld [vmem:[%s1268] sm:$0x77]
    %v1270 = vld [vmem:[%s1268 + $0x8] sm:$0x7]
    %v1271 = vld [vmem:[%s2] sm:$0xff]
    %v1272 = vld [vmem:[%s2 + $0x8] sm:$0xff]
    %v1273 = vld [vmem:[%s3] sm:$0xff]
    %v1274 = vld [vmem:[%s3 + $0x8] sm:$0xff]
    %1276 = vset.pattern.permute.xlu0 0
    %1277 = vperm.xlu0 %1276, %v1273
    %v1278 = vpop.permute.xlu0 %1277
    %1281 = vset.pattern.permute.xlu0 0
    %1282 = vperm.xlu0 %1281, %v1274
    %v1283 = vpop.permute.xlu0 %1282
    %v1287 = vcombine.high %v1269, %v1269
    %v1289 = vsel %vm58, %v1271, 0
    %v1292 = vsel %vm58, %v1272, 0
    %v1294 = vsel %vm65, %v1269, 0
    %v1296 = vsel %vm65, %v1287, 0
    %v1298 = vsel %vm65, %v1270, 0
    %1300 = vmatprep.subr.mxu0 %v1296
    %1301 = vmatpush1.msra.mxu0 %v1294
    %1302 = vmatprep.subr.mxu0 0.0
    %1303 = vmatpush1.msra.mxu0 0.0
    %1304 = vmatprep.subr.mxu0 0.0
    %1305 = vmatpush1.msra.mxu0 0.0
    %1306 = vmatprep.subr.mxu0 0.0
    %1307 = vmatpush1.msra.mxu0 0.0
    %1308 = vmatprep.subr.mxu0 0.0
    %1309 = vmatpush1.msra.mxu0 0.0
    %1310 = vmatprep.subr.mxu0 0.0
    %1311 = vmatpush1.msra.mxu0 0.0
    %1312 = vmatprep.subr.mxu0 0.0
    %1313 = vmatpush1.msra.mxu0 0.0
    %1314 = vmatprep.subr.mxu0 0.0
    %1315 = vmatpush1.msra.mxu0 0.0
    %1316 = vmatprep.subr.mxu0 0.0
    %1317 = vmatpush1.msra.mxu0 0.0
    %1318 = vmatprep.subr.mxu0 0.0
    %1319 = vmatpush1.msra.mxu0 0.0
    %1320 = vmatprep.subr.mxu0 0.0
    %1321 = vmatpush1.msra.mxu0 0.0
    %1322 = vmatprep.subr.mxu0 0.0
    %1323 = vmatpush1.msra.mxu0 0.0
    %1324 = vmatprep.subr.mxu0 0.0
    %1325 = vmatpush1.msra.mxu0 0.0
    %1326 = vmatprep.subr.mxu0 0.0
    %1327 = vmatpush1.msra.mxu0 0.0
    %1328 = vmatprep.subr.mxu0 0.0
    %1329 = vmatpush1.msra.mxu0 0.0
    %1330 = vmatprep.subr.mxu0 0.0
    %1331 = vmatpush1.msra.mxu0 0.0
    %1332 = vmatprep.subr.mxu0 0.0
    %1333 = vmatpush1.msra.mxu0 0.0
    %1334 = vmatprep.subr.mxu0 0.0
    %1335 = vmatpush1.msra.mxu0 0.0
    %1336 = vmatprep.subr.mxu0 0.0
    %1337 = vmatpush1.msra.mxu0 0.0
    %1338 = vmatprep.subr.mxu0 0.0
    %1339 = vmatpush1.msra.mxu0 0.0
    %1340 = vmatprep.subr.mxu0 0.0
    %1341 = vmatpush1.msra.mxu0 0.0
    %1342 = vmatprep.subr.mxu0 0.0
    %1343 = vmatpush1.msra.mxu0 0.0
    %1344 = vmatprep.subr.mxu0 0.0
    %1345 = vmatpush1.msra.mxu0 0.0
    %1346 = vmatprep.subr.mxu0 0.0
    %1347 = vmatpush1.msra.mxu0 0.0
    %1348 = vmatprep.subr.mxu0 0.0
    %1349 = vmatpush1.msra.mxu0 0.0
    %1350 = vmatprep.subr.mxu0 0.0
    %1351 = vmatpush1.msra.mxu0 0.0
    %1352 = vmatprep.subr.mxu0 0.0
    %1353 = vmatpush1.msra.mxu0 0.0
    %1354 = vmatprep.subr.mxu0 0.0
    %1355 = vmatpush1.msra.mxu0 0.0
    %1356 = vmatprep.subr.mxu0 0.0
    %1357 = vmatpush1.msra.mxu0 0.0
    %1358 = vmatprep.subr.mxu0 0.0
    %1359 = vmatpush1.msra.mxu0 0.0
    %1360 = vmatprep.subr.mxu0 0.0
    %1361 = vmatpush1.msra.mxu0 0.0
    %1362 = vmatprep.subr.mxu0 0.0
    %1363 = vmatpush1.msra.mxu0 0.0
    %1364 = vmatprep.mubr.f32.mxu0 0.0
    %1365 = vmatmul.mubr.f32.gmra.mrb[0].mxu0 %v1289
    %v1366 = vpop.f32.mrb[0].mxu0
    %v1367 = vadd.f32 %v1278, %v1366
    %v1368 = vpop.f32.mrb[0].mxu0
    %v1369 = vadd.f32 %v1278, %v1368
    %1370 = vmatprep.mubr.f32.mxu0 0.0
    %1371 = vmatmul.mubr.f32.gmra.mrb[0].mxu0 %v1292
    %v1372 = vpop.f32.mrb[0].mxu0
    %v1373 = vadd.f32 %v1283, %v1372
    %v1374 = vpop.f32.mrb[0].mxu0
    %v1375 = vadd.f32 %v1283, %v1374
    %1376 = vdwg.mxu0
    %1377 = vmatprep.subr.mxu0 0.0
    %1378 = vmatpush1.msra.mxu0 %v1298
    %1379 = vmatprep.subr.mxu0 0.0
    %1380 = vmatpush1.msra.mxu0 0.0
    %1381 = vmatprep.subr.mxu0 0.0
    %1382 = vmatpush1.msra.mxu0 0.0
    %1383 = vmatprep.subr.mxu0 0.0
    %1384 = vmatpush1.msra.mxu0 0.0
    %1385 = vmatprep.subr.mxu0 0.0
    %1386 = vmatpush1.msra.mxu0 0.0
    %1387 = vmatprep.subr.mxu0 0.0
    %1388 = vmatpush1.msra.mxu0 0.0
    %1389 = vmatprep.subr.mxu0 0.0
    %1390 = vmatpush1.msra.mxu0 0.0
    %1391 = vmatprep.subr.mxu0 0.0
    %1392 = vmatpush1.msra.mxu0 0.0
    %1393 = vmatprep.subr.mxu0 0.0
    %1394 = vmatpush1.msra.mxu0 0.0
    %1395 = vmatprep.subr.mxu0 0.0
    %1396 = vmatpush1.msra.mxu0 0.0
    %1397 = vmatprep.subr.mxu0 0.0
    %1398 = vmatpush1.msra.mxu0 0.0
    %1399 = vmatprep.subr.mxu0 0.0
    %1400 = vmatpush1.msra.mxu0 0.0
    %1401 = vmatprep.subr.mxu0 0.0
    %1402 = vmatpush1.msra.mxu0 0.0
    %1403 = vmatprep.subr.mxu0 0.0
    %1404 = vmatpush1.msra.mxu0 0.0
    %1405 = vmatprep.subr.mxu0 0.0
    %1406 = vmatpush1.msra.mxu0 0.0
    %1407 = vmatprep.subr.mxu0 0.0
    %1408 = vmatpush1.msra.mxu0 0.0
    %1409 = vmatprep.subr.mxu0 0.0
    %1410 = vmatpush1.msra.mxu0 0.0
    %1411 = vmatprep.subr.mxu0 0.0
    %1412 = vmatpush1.msra.mxu0 0.0
    %1413 = vmatprep.subr.mxu0 0.0
    %1414 = vmatpush1.msra.mxu0 0.0
    %1415 = vmatprep.subr.mxu0 0.0
    %1416 = vmatpush1.msra.mxu0 0.0
    %1417 = vmatprep.subr.mxu0 0.0
    %1418 = vmatpush1.msra.mxu0 0.0
    %1419 = vmatprep.subr.mxu0 0.0
    %1420 = vmatpush1.msra.mxu0 0.0
    %1421 = vmatprep.subr.mxu0 0.0
    %1422 = vmatpush1.msra.mxu0 0.0
    %1423 = vmatprep.subr.mxu0 0.0
    %1424 = vmatpush1.msra.mxu0 0.0
    %1425 = vmatprep.subr.mxu0 0.0
    %1426 = vmatpush1.msra.mxu0 0.0
    %1427 = vmatprep.subr.mxu0 0.0
    %1428 = vmatpush1.msra.mxu0 0.0
    %1429 = vmatprep.subr.mxu0 0.0
    %1430 = vmatpush1.msra.mxu0 0.0
    %1431 = vmatprep.subr.mxu0 0.0
    %1432 = vmatpush1.msra.mxu0 0.0
    %1433 = vmatprep.subr.mxu0 0.0
    %1434 = vmatpush1.msra.mxu0 0.0
    %1435 = vmatprep.subr.mxu0 0.0
    %1436 = vmatpush1.msra.mxu0 0.0
    %1437 = vmatprep.subr.mxu0 0.0
    %1438 = vmatpush1.msra.mxu0 0.0
    %1439 = vmatprep.subr.mxu0 0.0
    %1440 = vmatpush1.msra.mxu0 0.0
    %1441 = vmatprep.mubr.f32.mxu0 0.0
    %1442 = vmatmul.mubr.f32.gmra.mrb[0].mxu0 %v1289
    %v1443 = vpop.f32.mrb[0].mxu0
    %v1444 = vadd.f32 %v1278, %v1443
    %v1445 = vpop.f32.mrb[0].mxu0
    %1446 = vmatprep.mubr.f32.mxu0 0.0
    %1447 = vmatmul.mubr.f32.gmra.mrb[0].mxu0 %v1292
    %v1448 = vpop.f32.mrb[0].mxu0
    %v1449 = vadd.f32 %v1283, %v1448
    %v1450 = vpop.f32.mrb[0].mxu0
    %1451 = vdwg.mxu0
    %v1452 = vmul.f32 %v1367, %v228
    %v1453 = vmul.f32 %v1369, %v232
    %v1454 = vmul.f32 %v1444, %v236
    %v1455 = vmul.f32 %v1373, %v228
    %v1456 = vmul.f32 %v1375, %v232
    %v1457 = vmul.f32 %v1449, %v236
    %v1458 = vpack.c.bf16 %v1455, %v1452
    %v1459 = vpack.c.bf16 %v1456, %v1453
    %v1460 = vpack.c.bf16 %v1457, %v1454
    %1461 = vst [vmem:[#allocation2 + $0x8] sm:$0xff] %v1458
    %1462 = vst [vmem:[#allocation2 + $0x10] sm:$0xff] %v1459
    %1463 = vst.msk [vmem:[#allocation2 + $0x18] sm:$0xff] %vm36, %v1460
    %v1464 = vld [vmem:[#allocation2] sm:$0xff]
    %v1465 = vld [vmem:[#allocation2 + $0x8] sm:$0xff]
    %v1466 = vld [vmem:[#allocation2 + $0x10] sm:$0xff]
    %v1467 = vld [vmem:[#allocation2 + $0x18] sm:$0xff]
    %1472 = vrot.lane.b32.xlu0 %v1464, 42
    %v1473 = vpop.permute.xlu0 %1472
    %1474 = vrot.lane.b32.xlu0 %v1465, 42
    %v1475 = vpop.permute.xlu0 %1474
    %1476 = vrot.lane.b32.xlu0 %v1466, 42
    %v1477 = vpop.permute.xlu0 %1476
    %1478 = vrot.lane.b32.xlu0 %v1467, 42
    %v1479 = vpop.permute.xlu0 %1478
    %v1480 = vsel %vm268, %v1473, %v1475
    %v1481 = vsel %vm268, %v1475, %v1477
    %v1482 = vsel %vm268, %v1477, %v1479
    %1486 = vst [vmem:[#allocation3] sm:$0xff] %v1480
    %1487 = vst [vmem:[#allocation3 + $0x8] sm:$0xff] %v1481
    %1488 = vst.msk [vmem:[#allocation3 + $0x10] sm:$0xff] %vm36, %v1482
    %v1489 = vld [vmem:[#allocation2] sm:$0xff]
    %v1490 = vld [vmem:[#allocation2 + $0x8] sm:$0xff]
    %v1491 = vld [vmem:[#allocation2 + $0x10] sm:$0xff]
    %v1492 = vld [vmem:[#allocation2 + $0x18] sm:$0xff]
    %1497 = vrot.lane.b32.xlu0 %v1489, 41
    %v1498 = vpop.permute.xlu0 %1497
    %1499 = vrot.lane.b32.xlu0 %v1490, 41
    %v1500 = vpop.permute.xlu0 %1499
    %1501 = vrot.lane.b32.xlu0 %v1491, 41
    %v1502 = vpop.permute.xlu0 %1501
    %1503 = vrot.lane.b32.xlu0 %v1492, 41
    %v1504 = vpop.permute.xlu0 %1503
    %v1505 = vsel %vm294, %v1498, %v1500
    %v1506 = vsel %vm294, %v1500, %v1502
    %v1507 = vsel %vm294, %v1502, %v1504
    %1511 = vst [vmem:[#allocation3 + $0x18] sm:$0xff] %v1505
    %1512 = vst [vmem:[#allocation3 + $0x20] sm:$0xff] %v1506
    %1513 = vst.msk [vmem:[#allocation3 + $0x28] sm:$0xff] %vm36, %v1507
    %v1514 = vld [vmem:[#allocation2] sm:$0xff]
    %v1515 = vld [vmem:[#allocation2 + $0x8] sm:$0xff]
    %v1516 = vld [vmem:[#allocation2 + $0x10] sm:$0xff]
    %v1517 = vld [vmem:[#allocation2 + $0x18] sm:$0xff]
    %1522 = vrot.lane.b32.xlu0 %v1514, 40
    %v1523 = vpop.permute.xlu0 %1522
    %1524 = vrot.lane.b32.xlu0 %v1515, 40
    %v1525 = vpop.permute.xlu0 %1524
    %1526 = vrot.lane.b32.xlu0 %v1516, 40
    %v1527 = vpop.permute.xlu0 %1526
    %1528 = vrot.lane.b32.xlu0 %v1517, 40
    %v1529 = vpop.permute.xlu0 %1528
    %v1530 = vsel %vm320, %v1523, %v1525
    %v1531 = vsel %vm320, %v1525, %v1527
    %v1532 = vsel %vm320, %v1527, %v1529
    %1536 = vst [vmem:[#allocation3 + $0x30] sm:$0xff] %v1530
    %1537 = vst [vmem:[#allocation3 + $0x38] sm:$0xff] %v1531
    %1538 = vst.msk [vmem:[#allocation3 + $0x40] sm:$0xff] %vm36, %v1532
    %v1539 = vld [vmem:[#allocation2] sm:$0xff]
    %v1540 = vld [vmem:[#allocation2 + $0x8] sm:$0xff]
    %v1541 = vld [vmem:[#allocation2 + $0x10] sm:$0xff]
    %v1542 = vld [vmem:[#allocation2 + $0x18] sm:$0xff]
    %1547 = vrot.lane.b32.xlu0 %v1539, 39
    %v1548 = vpop.permute.xlu0 %1547
    %1549 = vrot.lane.b32.xlu0 %v1540, 39
    %v1550 = vpop.permute.xlu0 %1549
    %1551 = vrot.lane.b32.xlu0 %v1541, 39
    %v1552 = vpop.permute.xlu0 %1551
    %1553 = vrot.lane.b32.xlu0 %v1542, 39
    %v1554 = vpop.permute.xlu0 %1553
    %v1555 = vsel %vm346, %v1548, %v1550
    %v1556 = vsel %vm346, %v1550, %v1552
    %v1557 = vsel %vm346, %v1552, %v1554
    %1561 = vst [vmem:[#allocation3 + $0x48] sm:$0xff] %v1555
    %1562 = vst [vmem:[#allocation3 + $0x50] sm:$0xff] %v1556
    %1563 = vst.msk [vmem:[#allocation3 + $0x58] sm:$0xff] %vm36, %v1557
    %v1564 = vld [vmem:[#allocation2] sm:$0xff]
    %v1565 = vld [vmem:[#allocation2 + $0x8] sm:$0xff]
    %v1566 = vld [vmem:[#allocation2 + $0x10] sm:$0xff]
    %v1567 = vld [vmem:[#allocation2 + $0x18] sm:$0xff]
    %1572 = vrot.lane.b32.xlu0 %v1564, 38
    %v1573 = vpop.permute.xlu0 %1572
    %1574 = vrot.lane.b32.xlu0 %v1565, 38
    %v1575 = vpop.permute.xlu0 %1574
    %1576 = vrot.lane.b32.xlu0 %v1566, 38
    %v1577 = vpop.permute.xlu0 %1576
    %1578 = vrot.lane.b32.xlu0 %v1567, 38
    %v1579 = vpop.permute.xlu0 %1578
    %v1580 = vsel %vm372, %v1573, %v1575
    %v1581 = vsel %vm372, %v1575, %v1577
    %v1582 = vsel %vm372, %v1577, %v1579
    %1586 = vst [vmem:[#allocation3 + $0x60] sm:$0xff] %v1580
    %1587 = vst [vmem:[#allocation3 + $0x68] sm:$0xff] %v1581
    %1588 = vst.msk [vmem:[#allocation3 + $0x70] sm:$0xff] %vm36, %v1582
    %v1589 = vld [vmem:[#allocation2] sm:$0xff]
    %v1590 = vld [vmem:[#allocation2 + $0x8] sm:$0xff]
    %v1591 = vld [vmem:[#allocation2 + $0x10] sm:$0xff]
    %v1592 = vld [vmem:[#allocation2 + $0x18] sm:$0xff]
    %1597 = vrot.lane.b32.xlu0 %v1589, 22
    %v1598 = vpop.permute.xlu0 %1597
    %1599 = vrot.lane.b32.xlu0 %v1590, 22
    %v1600 = vpop.permute.xlu0 %1599
    %1601 = vrot.lane.b32.xlu0 %v1591, 22
    %v1602 = vpop.permute.xlu0 %1601
    %1603 = vrot.lane.b32.xlu0 %v1592, 22
    %v1604 = vpop.permute.xlu0 %1603
    %v1605 = vsel %vm398, %v1598, %v1600
    %v1606 = vsel %vm398, %v1600, %v1602
    %v1607 = vsel %vm398, %v1602, %v1604
    %1611 = vst [vmem:[#allocation3 + $0x78] sm:$0xff] %v1605
    %1612 = vst [vmem:[#allocation3 + $0x80] sm:$0xff] %v1606
    %1613 = vst.msk [vmem:[#allocation3 + $0x88] sm:$0xff] %vm36, %v1607
    %v1614 = vld [vmem:[#allocation2] sm:$0xff]
    %v1615 = vld [vmem:[#allocation2 + $0x8] sm:$0xff]
    %v1616 = vld [vmem:[#allocation2 + $0x10] sm:$0xff]
    %v1617 = vld [vmem:[#allocation2 + $0x18] sm:$0xff]
    %1622 = vrot.lane.b32.xlu0 %v1614, 21
    %v1623 = vpop.permute.xlu0 %1622
    %1624 = vrot.lane.b32.xlu0 %v1615, 21
    %v1625 = vpop.permute.xlu0 %1624
    %1626 = vrot.lane.b32.xlu0 %v1616, 21
    %v1627 = vpop.permute.xlu0 %1626
    %1628 = vrot.lane.b32.xlu0 %v1617, 21
    %v1629 = vpop.permute.xlu0 %1628
    %v1630 = vsel %vm424, %v1623, %v1625
    %v1631 = vsel %vm424, %v1625, %v1627
    %v1632 = vsel %vm424, %v1627, %v1629
    %1636 = vst [vmem:[#allocation3 + $0x90] sm:$0xff] %v1630
    %1637 = vst [vmem:[#allocation3 + $0x98] sm:$0xff] %v1631
    %1638 = vst.msk [vmem:[#allocation3 + $0xa0] sm:$0xff] %vm36, %v1632
    %v1639 = vld [vmem:[#allocation2] sm:$0xff]
    %v1640 = vld [vmem:[#allocation2 + $0x8] sm:$0xff]
    %v1641 = vld [vmem:[#allocation2 + $0x10] sm:$0xff]
    %v1642 = vld [vmem:[#allocation2 + $0x18] sm:$0xff]
    %1647 = vrot.lane.b32.xlu0 %v1639, 20
    %v1648 = vpop.permute.xlu0 %1647
    %1649 = vrot.lane.b32.xlu0 %v1640, 20
    %v1650 = vpop.permute.xlu0 %1649
    %1651 = vrot.lane.b32.xlu0 %v1641, 20
    %v1652 = vpop.permute.xlu0 %1651
    %1653 = vrot.lane.b32.xlu0 %v1642, 20
    %v1654 = vpop.permute.xlu0 %1653
    %v1655 = vsel %vm450, %v1648, %v1650
    %v1656 = vsel %vm450, %v1650, %v1652
    %v1657 = vsel %vm450, %v1652, %v1654
    %1661 = vst [vmem:[#allocation3 + $0xa8] sm:$0xff] %v1655
    %1662 = vst [vmem:[#allocation3 + $0xb0] sm:$0xff] %v1656
    %1663 = vst.msk [vmem:[#allocation3 + $0xb8] sm:$0xff] %vm36, %v1657
    %v1664 = vld [vmem:[#allocation2] sm:$0xff]
    %v1665 = vld [vmem:[#allocation2 + $0x8] sm:$0xff]
    %v1666 = vld [vmem:[#allocation2 + $0x10] sm:$0xff]
    %v1667 = vld [vmem:[#allocation2 + $0x18] sm:$0xff]
    %1672 = vrot.lane.b32.xlu0 %v1664, 19
    %v1673 = vpop.permute.xlu0 %1672
    %1674 = vrot.lane.b32.xlu0 %v1665, 19
    %v1675 = vpop.permute.xlu0 %1674
    %1676 = vrot.lane.b32.xlu0 %v1666, 19
    %v1677 = vpop.permute.xlu0 %1676
    %1678 = vrot.lane.b32.xlu0 %v1667, 19
    %v1679 = vpop.permute.xlu0 %1678
    %v1680 = vsel %vm476, %v1673, %v1675
    %v1681 = vsel %vm476, %v1675, %v1677
    %v1682 = vsel %vm476, %v1677, %v1679
    %1686 = vst [vmem:[#allocation3 + $0xc0] sm:$0xff] %v1680
    %1687 = vst [vmem:[#allocation3 + $0xc8] sm:$0xff] %v1681
    %1688 = vst.msk [vmem:[#allocation3 + $0xd0] sm:$0xff] %vm36, %v1682
    %v1689 = vld [vmem:[#allocation2] sm:$0xff]
    %v1690 = vld [vmem:[#allocation2 + $0x8] sm:$0xff]
    %v1691 = vld [vmem:[#allocation2 + $0x10] sm:$0xff]
    %v1692 = vld [vmem:[#allocation2 + $0x18] sm:$0xff]
    %1697 = vrot.lane.b32.xlu0 %v1689, 18
    %v1698 = vpop.permute.xlu0 %1697
    %1699 = vrot.lane.b32.xlu0 %v1690, 18
    %v1700 = vpop.permute.xlu0 %1699
    %1701 = vrot.lane.b32.xlu0 %v1691, 18
    %v1702 = vpop.permute.xlu0 %1701
    %1703 = vrot.lane.b32.xlu0 %v1692, 18
    %v1704 = vpop.permute.xlu0 %1703
    %v1705 = vsel %vm502, %v1698, %v1700
    %v1706 = vsel %vm502, %v1700, %v1702
    %v1707 = vsel %vm502, %v1702, %v1704
    %1711 = vst [vmem:[#allocation3 + $0xd8] sm:$0xff] %v1705
    %1712 = vst [vmem:[#allocation3 + $0xe0] sm:$0xff] %v1706
    %1713 = vst.msk [vmem:[#allocation3 + $0xe8] sm:$0xff] %vm36, %v1707
    %v1714 = vld [vmem:[#allocation2] sm:$0xff]
    %v1715 = vld [vmem:[#allocation2 + $0x8] sm:$0xff]
    %v1716 = vld [vmem:[#allocation2 + $0x10] sm:$0xff]
    %v1717 = vld [vmem:[#allocation2 + $0x18] sm:$0xff]
    %1722 = vrot.lane.b32.xlu0 %v1714, 2
    %v1723 = vpop.permute.xlu0 %1722
    %1724 = vrot.lane.b32.xlu0 %v1715, 2
    %v1725 = vpop.permute.xlu0 %1724
    %1726 = vrot.lane.b32.xlu0 %v1716, 2
    %v1727 = vpop.permute.xlu0 %1726
    %1728 = vrot.lane.b32.xlu0 %v1717, 2
    %v1729 = vpop.permute.xlu0 %1728
    %v1730 = vsel %vm528, %v1723, %v1725
    %v1731 = vsel %vm528, %v1725, %v1727
    %v1732 = vsel %vm528, %v1727, %v1729
    %1736 = vst [vmem:[#allocation3 + $0xf0] sm:$0xff] %v1730
    %1737 = vst [vmem:[#allocation3 + $0xf8] sm:$0xff] %v1731
    %1738 = vst.msk [vmem:[#allocation3 + $0x100] sm:$0xff] %vm36, %v1732
    %v1739 = vld [vmem:[#allocation2] sm:$0xff]
    %v1740 = vld [vmem:[#allocation2 + $0x8] sm:$0xff]
    %v1741 = vld [vmem:[#allocation2 + $0x10] sm:$0xff]
    %v1742 = vld [vmem:[#allocation2 + $0x18] sm:$0xff]
    %1747 = vrot.lane.b32.xlu0 %v1739, 1
    %v1748 = vpop.permute.xlu0 %1747
    %1749 = vrot.lane.b32.xlu0 %v1740, 1
    %v1750 = vpop.permute.xlu0 %1749
    %1751 = vrot.lane.b32.xlu0 %v1741, 1
    %v1752 = vpop.permute.xlu0 %1751
    %1753 = vrot.lane.b32.xlu0 %v1742, 1
    %v1754 = vpop.permute.xlu0 %1753
    %v1755 = vsel %vm554, %v1748, %v1750
    %v1756 = vsel %vm554, %v1750, %v1752
    %v1757 = vsel %vm554, %v1752, %v1754
    %1761 = vst [vmem:[#allocation3 + $0x108] sm:$0xff] %v1755
    %1762 = vst [vmem:[#allocation3 + $0x110] sm:$0xff] %v1756
    %1763 = vst.msk [vmem:[#allocation3 + $0x118] sm:$0xff] %vm36, %v1757
    %v1764 = vld [vmem:[#allocation2 + $0x8] sm:$0xff]
    %v1765 = vld [vmem:[#allocation2 + $0x10] sm:$0xff]
    %v1766 = vld [vmem:[#allocation2 + $0x18] sm:$0xff]
    %1767 = vst [vmem:[#allocation3 + $0x120] sm:$0xff] %v1764
    %1768 = vst [vmem:[#allocation3 + $0x128] sm:$0xff] %v1765
    %1769 = vst.msk [vmem:[#allocation3 + $0x130] sm:$0xff] %vm36, %v1766
    %v1770 = vld [vmem:[#allocation2 + $0x8] sm:$0xff]
    %v1771 = vld [vmem:[#allocation2 + $0x10] sm:$0xff]
    %v1772 = vld [vmem:[#allocation2 + $0x18] sm:$0xff]
    %1776 = vrot.lane.b32.xlu0 %v1770, 127
    %v1777 = vpop.permute.xlu0 %1776
    %1778 = vrot.lane.b32.xlu0 %v1771, 127
    %v1779 = vpop.permute.xlu0 %1778
    %1780 = vrot.lane.b32.xlu0 %v1772, 127
    %v1781 = vpop.permute.xlu0 %1780
    %v1782 = vsel %vm582, %v1777, %v1779
    %v1783 = vsel %vm582, %v1779, %v1781
    %1787 = vst [vmem:[#allocation3 + $0x138] sm:$0xff] %v1782
    %1788 = vst [vmem:[#allocation3 + $0x140] sm:$0xff] %v1783
    %1789 = vst.msk [vmem:[#allocation3 + $0x148] sm:$0xff] %vm36, %v1781
    %v1790 = vld [vmem:[#allocation2 + $0x8] sm:$0xff]
    %v1791 = vld [vmem:[#allocation2 + $0x10] sm:$0xff]
    %v1792 = vld [vmem:[#allocation2 + $0x18] sm:$0xff]
    %1796 = vrot.lane.b32.xlu0 %v1790, 126
    %v1797 = vpop.permute.xlu0 %1796
    %1798 = vrot.lane.b32.xlu0 %v1791, 126
    %v1799 = vpop.permute.xlu0 %1798
    %1800 = vrot.lane.b32.xlu0 %v1792, 126
    %v1801 = vpop.permute.xlu0 %1800
    %v1802 = vsel %vm603, %v1797, %v1799
    %v1803 = vsel %vm603, %v1799, %v1801
    %1807 = vst [vmem:[#allocation3 + $0x150] sm:$0xff] %v1802
    %1808 = vst [vmem:[#allocation3 + $0x158] sm:$0xff] %v1803
    %1809 = vst.msk [vmem:[#allocation3 + $0x160] sm:$0xff] %vm36, %v1801
    %v1810 = vld [vmem:[#allocation2 + $0x8] sm:$0xff]
    %v1811 = vld [vmem:[#allocation2 + $0x10] sm:$0xff]
    %v1812 = vld [vmem:[#allocation2 + $0x18] sm:$0xff]
    %1816 = vrot.lane.b32.xlu0 %v1810, 110
    %v1817 = vpop.permute.xlu0 %1816
    %1818 = vrot.lane.b32.xlu0 %v1811, 110
    %v1819 = vpop.permute.xlu0 %1818
    %1820 = vrot.lane.b32.xlu0 %v1812, 110
    %v1821 = vpop.permute.xlu0 %1820
    %v1822 = vsel %vm624, %v1817, %v1819
    %v1823 = vsel %vm624, %v1819, %v1821
    %1827 = vst [vmem:[#allocation3 + $0x168] sm:$0xff] %v1822
    %1828 = vst [vmem:[#allocation3 + $0x170] sm:$0xff] %v1823
    %1829 = vst.msk [vmem:[#allocation3 + $0x178] sm:$0xff] %vm36, %v1821
    %v1830 = vld [vmem:[#allocation2 + $0x8] sm:$0xff]
    %v1831 = vld [vmem:[#allocation2 + $0x10] sm:$0xff]
    %v1832 = vld [vmem:[#allocation2 + $0x18] sm:$0xff]
    %1836 = vrot.lane.b32.xlu0 %v1830, 109
    %v1837 = vpop.permute.xlu0 %1836
    %1838 = vrot.lane.b32.xlu0 %v1831, 109
    %v1839 = vpop.permute.xlu0 %1838
    %1840 = vrot.lane.b32.xlu0 %v1832, 109
    %v1841 = vpop.permute.xlu0 %1840
    %v1842 = vsel %vm645, %v1837, %v1839
    %v1843 = vsel %vm645, %v1839, %v1841
    %1847 = vst [vmem:[#allocation3 + $0x180] sm:$0xff] %v1842
    %1848 = vst [vmem:[#allocation3 + $0x188] sm:$0xff] %v1843
    %1849 = vst.msk [vmem:[#allocation3 + $0x190] sm:$0xff] %vm36, %v1841
    %v1850 = vld [vmem:[#allocation2 + $0x8] sm:$0xff]
    %v1851 = vld [vmem:[#allocation2 + $0x10] sm:$0xff]
    %v1852 = vld [vmem:[#allocation2 + $0x18] sm:$0xff]
    %1856 = vrot.lane.b32.xlu0 %v1850, 108
    %v1857 = vpop.permute.xlu0 %1856
    %1858 = vrot.lane.b32.xlu0 %v1851, 108
    %v1859 = vpop.permute.xlu0 %1858
    %1860 = vrot.lane.b32.xlu0 %v1852, 108
    %v1861 = vpop.permute.xlu0 %1860
    %v1862 = vsel %vm666, %v1857, %v1859
    %v1863 = vsel %vm666, %v1859, %v1861
    %1867 = vst [vmem:[#allocation3 + $0x198] sm:$0xff] %v1862
    %1868 = vst [vmem:[#allocation3 + $0x1a0] sm:$0xff] %v1863
    %1869 = vst.msk [vmem:[#allocation3 + $0x1a8] sm:$0xff] %vm36, %v1861
    %v1870 = vld [vmem:[#allocation2 + $0x8] sm:$0xff]
    %v1871 = vld [vmem:[#allocation2 + $0x10] sm:$0xff]
    %v1872 = vld [vmem:[#allocation2 + $0x18] sm:$0xff]
    %1876 = vrot.lane.b32.xlu0 %v1870, 107
    %v1877 = vpop.permute.xlu0 %1876
    %1878 = vrot.lane.b32.xlu0 %v1871, 107
    %v1879 = vpop.permute.xlu0 %1878
    %1880 = vrot.lane.b32.xlu0 %v1872, 107
    %v1881 = vpop.permute.xlu0 %1880
    %v1882 = vsel %vm687, %v1877, %v1879
    %v1883 = vsel %vm687, %v1879, %v1881
    %1887 = vst [vmem:[#allocation3 + $0x1b0] sm:$0xff] %v1882
    %1888 = vst [vmem:[#allocation3 + $0x1b8] sm:$0xff] %v1883
    %1889 = vst.msk [vmem:[#allocation3 + $0x1c0] sm:$0xff] %vm36, %v1881
    %v1890 = vld [vmem:[#allocation2 + $0x8] sm:$0xff]
    %v1891 = vld [vmem:[#allocation2 + $0x10] sm:$0xff]
    %v1892 = vld [vmem:[#allocation2 + $0x18] sm:$0xff]
    %1896 = vrot.lane.b32.xlu0 %v1890, 106
    %v1897 = vpop.permute.xlu0 %1896
    %1898 = vrot.lane.b32.xlu0 %v1891, 106
    %v1899 = vpop.permute.xlu0 %1898
    %1900 = vrot.lane.b32.xlu0 %v1892, 106
    %v1901 = vpop.permute.xlu0 %1900
    %v1902 = vsel %vm708, %v1897, %v1899
    %v1903 = vsel %vm708, %v1899, %v1901
    %1907 = vst [vmem:[#allocation3 + $0x1c8] sm:$0xff] %v1902
    %1908 = vst [vmem:[#allocation3 + $0x1d0] sm:$0xff] %v1903
    %1909 = vst.msk [vmem:[#allocation3 + $0x1d8] sm:$0xff] %vm36, %v1901
    %v1910 = vld [vmem:[#allocation2 + $0x8] sm:$0xff]
    %v1911 = vld [vmem:[#allocation2 + $0x10] sm:$0xff]
    %v1912 = vld [vmem:[#allocation2 + $0x18] sm:$0xff]
    %1916 = vrot.lane.b32.xlu0 %v1910, 90
    %v1917 = vpop.permute.xlu0 %1916
    %1918 = vrot.lane.b32.xlu0 %v1911, 90
    %v1919 = vpop.permute.xlu0 %1918
    %1920 = vrot.lane.b32.xlu0 %v1912, 90
    %v1921 = vpop.permute.xlu0 %1920
    %v1922 = vsel %vm729, %v1917, %v1919
    %v1923 = vsel %vm729, %v1919, %v1921
    %1927 = vst [vmem:[#allocation3 + $0x1e0] sm:$0xff] %v1922
    %1928 = vst [vmem:[#allocation3 + $0x1e8] sm:$0xff] %v1923
    %1929 = vst.msk [vmem:[#allocation3 + $0x1f0] sm:$0xff] %vm36, %v1921
    %v1930 = vld [vmem:[#allocation2 + $0x8] sm:$0xff]
    %v1931 = vld [vmem:[#allocation2 + $0x10] sm:$0xff]
    %v1932 = vld [vmem:[#allocation2 + $0x18] sm:$0xff]
    %1936 = vrot.lane.b32.xlu0 %v1930, 89
    %v1937 = vpop.permute.xlu0 %1936
    %1938 = vrot.lane.b32.xlu0 %v1931, 89
    %v1939 = vpop.permute.xlu0 %1938
    %1940 = vrot.lane.b32.xlu0 %v1932, 89
    %v1941 = vpop.permute.xlu0 %1940
    %v1942 = vsel %vm750, %v1937, %v1939
    %v1943 = vsel %vm750, %v1939, %v1941
    %1947 = vst [vmem:[#allocation3 + $0x1f8] sm:$0xff] %v1942
    %1948 = vst [vmem:[#allocation3 + $0x200] sm:$0xff] %v1943
    %1949 = vst.msk [vmem:[#allocation3 + $0x208] sm:$0xff] %vm36, %v1941
    %v1950 = vld [vmem:[#allocation2 + $0x8] sm:$0xff]
    %v1951 = vld [vmem:[#allocation2 + $0x10] sm:$0xff]
    %v1952 = vld [vmem:[#allocation2 + $0x18] sm:$0xff]
    %1956 = vrot.lane.b32.xlu0 %v1950, 88
    %v1957 = vpop.permute.xlu0 %1956
    %1958 = vrot.lane.b32.xlu0 %v1951, 88
    %v1959 = vpop.permute.xlu0 %1958
    %1960 = vrot.lane.b32.xlu0 %v1952, 88
    %v1961 = vpop.permute.xlu0 %1960
    %v1962 = vsel %vm771, %v1957, %v1959
    %v1963 = vsel %vm771, %v1959, %v1961
    %1967 = vst [vmem:[#allocation3 + $0x210] sm:$0xff] %v1962
    %1968 = vst [vmem:[#allocation3 + $0x218] sm:$0xff] %v1963
    %1969 = vst.msk [vmem:[#allocation3 + $0x220] sm:$0xff] %vm36, %v1961
    %v1970 = vld [vmem:[#allocation2 + $0x8] sm:$0xff]
    %v1971 = vld [vmem:[#allocation2 + $0x10] sm:$0xff]
    %v1972 = vld [vmem:[#allocation2 + $0x18] sm:$0xff]
    %1976 = vrot.lane.b32.xlu0 %v1970, 87
    %v1977 = vpop.permute.xlu0 %1976
    %1978 = vrot.lane.b32.xlu0 %v1971, 87
    %v1979 = vpop.permute.xlu0 %1978
    %1980 = vrot.lane.b32.xlu0 %v1972, 87
    %v1981 = vpop.permute.xlu0 %1980
    %v1982 = vsel %vm792, %v1977, %v1979
    %v1983 = vsel %vm792, %v1979, %v1981
    %1987 = vst [vmem:[#allocation3 + $0x228] sm:$0xff] %v1982
    %1988 = vst [vmem:[#allocation3 + $0x230] sm:$0xff] %v1983
    %1989 = vst.msk [vmem:[#allocation3 + $0x238] sm:$0xff] %vm36, %v1981
    %v1990 = vld [vmem:[#allocation2 + $0x8] sm:$0xff]
    %v1991 = vld [vmem:[#allocation2 + $0x10] sm:$0xff]
    %v1992 = vld [vmem:[#allocation2 + $0x18] sm:$0xff]
    %1996 = vrot.lane.b32.xlu0 %v1990, 86
    %v1997 = vpop.permute.xlu0 %1996
    %1998 = vrot.lane.b32.xlu0 %v1991, 86
    %v1999 = vpop.permute.xlu0 %1998
    %2000 = vrot.lane.b32.xlu0 %v1992, 86
    %v2001 = vpop.permute.xlu0 %2000
    %v2002 = vsel %vm813, %v1997, %v1999
    %v2003 = vsel %vm813, %v1999, %v2001
    %2007 = vst [vmem:[#allocation3 + $0x240] sm:$0xff] %v2002
    %2008 = vst [vmem:[#allocation3 + $0x248] sm:$0xff] %v2003
    %2009 = vst.msk [vmem:[#allocation3 + $0x250] sm:$0xff] %vm36, %v2001
    %v2010 = vld [vmem:[%s4] sm:$0xff]
    %v2011 = vld [vmem:[%s4 + $0x8] sm:$0xff]
    %v2012 = vld [vmem:[%s4 + $0x10] sm:$0xff]
    %v2013 = vld [vmem:[%s4 + $0x18] sm:$0xff]
    %v2014 = vld [vmem:[#allocation3] sm:$0xff]
    %v2015 = vld [vmem:[#allocation3 + $0x8] sm:$0xff]
    %v2016 = vld [vmem:[#allocation3 + $0x10] sm:$0xff]
    %v2017 = vld [vmem:[#allocation3 + $0x18] sm:$0xff]
    %v2018 = vld [vmem:[#allocation3 + $0x20] sm:$0xff]
    %v2019 = vld [vmem:[#allocation3 + $0x28] sm:$0xff]
    %v2020 = vld [vmem:[#allocation3 + $0x30] sm:$0xff]
    %v2021 = vld [vmem:[#allocation3 + $0x38] sm:$0xff]
    %v2022 = vld [vmem:[#allocation3 + $0x40] sm:$0xff]
    %v2023 = vld [vmem:[#allocation3 + $0x48] sm:$0xff]
    %v2024 = vld [vmem:[#allocation3 + $0x50] sm:$0xff]
    %v2025 = vld [vmem:[#allocation3 + $0x58] sm:$0xff]
    %v2026 = vld [vmem:[#allocation3 + $0x60] sm:$0xff]
    %v2027 = vld [vmem:[#allocation3 + $0x68] sm:$0xff]
    %v2028 = vld [vmem:[#allocation3 + $0x70] sm:$0xff]
    %v2029 = vld [vmem:[#allocation3 + $0x78] sm:$0xff]
    %v2030 = vld [vmem:[#allocation3 + $0x80] sm:$0xff]
    %v2031 = vld [vmem:[#allocation3 + $0x88] sm:$0xff]
    %v2032 = vld [vmem:[#allocation3 + $0x90] sm:$0xff]
    %v2033 = vld [vmem:[#allocation3 + $0x98] sm:$0xff]
    %v2034 = vld [vmem:[#allocation3 + $0xa0] sm:$0xff]
    %v2035 = vld [vmem:[#allocation3 + $0xa8] sm:$0xff]
    %v2036 = vld [vmem:[#allocation3 + $0xb0] sm:$0xff]
    %v2037 = vld [vmem:[#allocation3 + $0xb8] sm:$0xff]
    %v2038 = vld [vmem:[#allocation3 + $0xc0] sm:$0xff]
    %v2039 = vld [vmem:[#allocation3 + $0xc8] sm:$0xff]
    %v2040 = vld [vmem:[#allocation3 + $0xd0] sm:$0xff]
    %v2041 = vld [vmem:[#allocation3 + $0xd8] sm:$0xff]
    %v2042 = vld [vmem:[#allocation3 + $0xe0] sm:$0xff]
    %v2043 = vld [vmem:[#allocation3 + $0xe8] sm:$0xff]
    %v2044 = vld [vmem:[#allocation3 + $0xf0] sm:$0xff]
    %v2045 = vld [vmem:[#allocation3 + $0xf8] sm:$0xff]
    %v2046 = vld [vmem:[#allocation3 + $0x100] sm:$0xff]
    %v2047 = vld [vmem:[#allocation3 + $0x108] sm:$0xff]
    %v2048 = vld [vmem:[#allocation3 + $0x110] sm:$0xff]
    %v2049 = vld [vmem:[#allocation3 + $0x118] sm:$0xff]
    %v2050 = vld [vmem:[#allocation3 + $0x120] sm:$0xff]
    %v2051 = vld [vmem:[#allocation3 + $0x128] sm:$0xff]
    %v2052 = vld [vmem:[#allocation3 + $0x130] sm:$0xff]
    %v2053 = vld [vmem:[#allocation3 + $0x138] sm:$0xff]
    %v2054 = vld [vmem:[#allocation3 + $0x140] sm:$0xff]
    %v2055 = vld [vmem:[#allocation3 + $0x148] sm:$0xff]
    %v2056 = vld [vmem:[#allocation3 + $0x150] sm:$0xff]
    %v2057 = vld [vmem:[#allocation3 + $0x158] sm:$0xff]
    %v2058 = vld [vmem:[#allocation3 + $0x160] sm:$0xff]
    %v2059 = vld [vmem:[#allocation3 + $0x168] sm:$0xff]
    %v2060 = vld [vmem:[#allocation3 + $0x170] sm:$0xff]
    %v2061 = vld [vmem:[#allocation3 + $0x178] sm:$0xff]
    %v2062 = vld [vmem:[#allocation3 + $0x180] sm:$0xff]
    %v2063 = vld [vmem:[#allocation3 + $0x188] sm:$0xff]
    %v2064 = vld [vmem:[#allocation3 + $0x190] sm:$0xff]
    %v2065 = vld [vmem:[#allocation3 + $0x198] sm:$0xff]
    %v2066 = vld [vmem:[#allocation3 + $0x1a0] sm:$0xff]
    %v2067 = vld [vmem:[#allocation3 + $0x1a8] sm:$0xff]
    %v2068 = vld [vmem:[#allocation3 + $0x1b0] sm:$0xff]
    %v2069 = vld [vmem:[#allocation3 + $0x1b8] sm:$0xff]
    %v2070 = vld [vmem:[#allocation3 + $0x1c0] sm:$0xff]
    %v2071 = vld [vmem:[#allocation3 + $0x1c8] sm:$0xff]
    %v2072 = vld [vmem:[#allocation3 + $0x1d0] sm:$0xff]
    %v2073 = vld [vmem:[#allocation3 + $0x1d8] sm:$0xff]
    %v2074 = vld [vmem:[#allocation3 + $0x1e0] sm:$0xff]
    %v2075 = vld [vmem:[#allocation3 + $0x1e8] sm:$0xff]
    %v2076 = vld [vmem:[#allocation3 + $0x1f0] sm:$0xff]
    %v2077 = vld [vmem:[#allocation3 + $0x1f8] sm:$0xff]
    %v2078 = vld [vmem:[#allocation3 + $0x200] sm:$0xff]
    %v2079 = vld [vmem:[#allocation3 + $0x208] sm:$0xff]
    %v2080 = vld [vmem:[#allocation3 + $0x210] sm:$0xff]
    %v2081 = vld [vmem:[#allocation3 + $0x218] sm:$0xff]
    %v2082 = vld [vmem:[#allocation3 + $0x220] sm:$0xff]
    %v2083 = vld [vmem:[#allocation3 + $0x228] sm:$0xff]
    %v2084 = vld [vmem:[#allocation3 + $0x230] sm:$0xff]
    %v2085 = vld [vmem:[#allocation3 + $0x238] sm:$0xff]
    %v2086 = vld [vmem:[#allocation3 + $0x240] sm:$0xff]
    %v2087 = vld [vmem:[#allocation3 + $0x248] sm:$0xff]
    %v2088 = vld [vmem:[#allocation3 + $0x250] sm:$0xff]
    %v2089 = vld [vmem:[%s5] sm:$0xff]
    %v2090 = vld [vmem:[%s5 + $0x8] sm:$0xff]
    %2092 = vset.pattern.permute.xlu0 0
    %2093 = vperm.xlu0 %2092, %v2089
    %v2094 = vpop.permute.xlu0 %2093
    %2097 = vset.pattern.permute.xlu0 0
    %2098 = vperm.xlu0 %2097, %v2090
    %v2099 = vpop.permute.xlu0 %2098
    %v2105 = vunpack.c.l.b16 %v2010
    %v2106 = vunpack.c.h.b16 %v2010
    %v2107 = vunpack.c.l.b16 %v2011
    %v2108 = vunpack.c.h.b16 %v2011
    %v2109 = vunpack.c.l.b16 %v2012
    %v2110 = vunpack.c.h.b16 %v2012
    %v2111 = vunpack.c.l.b16 %v2013
    %v2112 = vunpack.c.h.b16 %v2013
    %v2113 = vpack.c.b16 %v2109, %v2105
    %v2114 = vpack.c.b16 %v2110, %v2106
    %v2115 = vpack.c.b16 %v2111, %v2107
    %v2116 = vpack.c.b16 %v2112, %v2108
    %v2121 = vsel %vm932, %v2116, 0
    %2123 = vmatprep.subr.bf16.mxu0 %v2015
    %2124 = vmatpush1.bf16.msra.mxu0 %v2014
    %2125 = vmatprep.subr.bf16.mxu0 %v2018
    %2126 = vmatpush1.bf16.msra.mxu0 %v2017
    %2127 = vmatprep.subr.bf16.mxu0 %v2021
    %2128 = vmatpush1.bf16.msra.mxu0 %v2020
    %2129 = vmatprep.subr.bf16.mxu0 %v2024
    %2130 = vmatpush1.bf16.msra.mxu0 %v2023
    %2131 = vmatprep.subr.bf16.mxu0 %v2027
    %2132 = vmatpush1.bf16.msra.mxu0 %v2026
    %2133 = vmatprep.subr.bf16.mxu0 %v2030
    %2134 = vmatpush1.bf16.msra.mxu0 %v2029
    %2135 = vmatprep.subr.bf16.mxu0 %v2033
    %2136 = vmatpush1.bf16.msra.mxu0 %v2032
    %2137 = vmatprep.subr.bf16.mxu0 %v2036
    %2138 = vmatpush1.bf16.msra.mxu0 %v2035
    %2139 = vmatprep.subr.bf16.mxu0 %v2039
    %2140 = vmatpush1.bf16.msra.mxu0 %v2038
    %2141 = vmatprep.subr.bf16.mxu0 %v2042
    %2142 = vmatpush1.bf16.msra.mxu0 %v2041
    %2143 = vmatprep.subr.bf16.mxu0 %v2045
    %2144 = vmatpush1.bf16.msra.mxu0 %v2044
    %2145 = vmatprep.subr.bf16.mxu0 %v2048
    %2146 = vmatpush1.bf16.msra.mxu0 %v2047
    %2147 = vmatprep.subr.bf16.mxu0 %v2051
    %2148 = vmatpush1.bf16.msra.mxu0 %v2050
    %2149 = vmatprep.subr.bf16.mxu0 %v2054
    %2150 = vmatpush1.bf16.msra.mxu0 %v2053
    %2151 = vmatprep.subr.bf16.mxu0 %v2057
    %2152 = vmatpush1.bf16.msra.mxu0 %v2056
    %2153 = vmatprep.subr.bf16.mxu0 %v2060
    %2154 = vmatpush1.bf16.msra.mxu0 %v2059
    %2155 = vmatprep.mubr.bf16.mxu0 %v2114
    %2156 = vmatmul.mubr.bf16.gmra.mrb[0].mxu0 %v2113
    %v2157 = vpop.f32.mrb[0].mxu0
    %v2158 = vadd.f32 %v2094, %v2157
    %v2159 = vpop.f32.mrb[0].mxu0
    %v2160 = vadd.f32 %v2094, %v2159
    %v2161 = vpop.f32.mrb[0].mxu0
    %v2162 = vadd.f32 %v2099, %v2161
    %v2163 = vpop.f32.mrb[0].mxu0
    %v2164 = vadd.f32 %v2099, %v2163
    %2165 = vdwg.mxu0
    %2166 = vmatprep.subr.bf16.mxu0 %v2063
    %2167 = vmatpush1.bf16.msra.mxu0 %v2062
    %2168 = vmatprep.subr.bf16.mxu0 %v2066
    %2169 = vmatpush1.bf16.msra.mxu0 %v2065
    %2170 = vmatprep.subr.bf16.mxu0 %v2069
    %2171 = vmatpush1.bf16.msra.mxu0 %v2068
    %2172 = vmatprep.subr.bf16.mxu0 %v2072
    %2173 = vmatpush1.bf16.msra.mxu0 %v2071
    %2174 = vmatprep.subr.bf16.mxu0 %v2075
    %2175 = vmatpush1.bf16.msra.mxu0 %v2074
    %2176 = vmatprep.subr.bf16.mxu0 %v2078
    %2177 = vmatpush1.bf16.msra.mxu0 %v2077
    %2178 = vmatprep.subr.bf16.mxu0 %v2081
    %2179 = vmatpush1.bf16.msra.mxu0 %v2080
    %2180 = vmatprep.subr.bf16.mxu0 %v2084
    %2181 = vmatpush1.bf16.msra.mxu0 %v2083
    %2182 = vmatprep.subr.bf16.mxu0 %v2087
    %2183 = vmatpush1.bf16.msra.mxu0 %v2086
    %2184 = vmatprep.subr.bf16.mxu0 0
    %2185 = vmatpush1.bf16.msra.mxu0 0
    %2186 = vmatprep.subr.bf16.mxu0 0
    %2187 = vmatpush1.bf16.msra.mxu0 0
    %2188 = vmatprep.subr.bf16.mxu0 0
    %2189 = vmatpush1.bf16.msra.mxu0 0
    %2190 = vmatprep.subr.bf16.mxu0 0
    %2191 = vmatpush1.bf16.msra.mxu0 0
    %2192 = vmatprep.subr.bf16.mxu0 0
    %2193 = vmatpush1.bf16.msra.mxu0 0
    %2194 = vmatprep.subr.bf16.mxu0 0
    %2195 = vmatpush1.bf16.msra.mxu0 0
    %2196 = vmatprep.subr.bf16.mxu0 0
    %2197 = vmatpush1.bf16.msra.mxu0 0
    %2198 = vmatprep.mubr.bf16.mxu0 %v2121
    %2199 = vmatmul.mubr.bf16.gmra.mrb[0].mxu0 %v2115
    %v2200 = vpop.f32.mrb[0].mxu0
    %v2201 = vadd.f32 %v2158, %v2200
    %v2202 = vpop.f32.mrb[0].mxu0
    %v2203 = vadd.f32 %v2160, %v2202
    %v2204 = vpop.f32.mrb[0].mxu0
    %v2205 = vadd.f32 %v2162, %v2204
    %v2206 = vpop.f32.mrb[0].mxu0
    %v2207 = vadd.f32 %v2164, %v2206
    %2208 = vdwg.mxu0
    %2209 = vmatprep.subr.bf16.mxu0 0
    %2210 = vmatpush1.bf16.msra.mxu0 %v2016
    %2211 = vmatprep.subr.bf16.mxu0 0
    %2212 = vmatpush1.bf16.msra.mxu0 %v2019
    %2213 = vmatprep.subr.bf16.mxu0 0
    %2214 = vmatpush1.bf16.msra.mxu0 %v2022
    %2215 = vmatprep.subr.bf16.mxu0 0
    %2216 = vmatpush1.bf16.msra.mxu0 %v2025
    %2217 = vmatprep.subr.bf16.mxu0 0
    %2218 = vmatpush1.bf16.msra.mxu0 %v2028
    %2219 = vmatprep.subr.bf16.mxu0 0
    %2220 = vmatpush1.bf16.msra.mxu0 %v2031
    %2221 = vmatprep.subr.bf16.mxu0 0
    %2222 = vmatpush1.bf16.msra.mxu0 %v2034
    %2223 = vmatprep.subr.bf16.mxu0 0
    %2224 = vmatpush1.bf16.msra.mxu0 %v2037
    %2225 = vmatprep.subr.bf16.mxu0 0
    %2226 = vmatpush1.bf16.msra.mxu0 %v2040
    %2227 = vmatprep.subr.bf16.mxu0 0
    %2228 = vmatpush1.bf16.msra.mxu0 %v2043
    %2229 = vmatprep.subr.bf16.mxu0 0
    %2230 = vmatpush1.bf16.msra.mxu0 %v2046
    %2231 = vmatprep.subr.bf16.mxu0 0
    %2232 = vmatpush1.bf16.msra.mxu0 %v2049
    %2233 = vmatprep.subr.bf16.mxu0 0
    %2234 = vmatpush1.bf16.msra.mxu0 %v2052
    %2235 = vmatprep.subr.bf16.mxu0 0
    %2236 = vmatpush1.bf16.msra.mxu0 %v2055
    %2237 = vmatprep.subr.bf16.mxu0 0
    %2238 = vmatpush1.bf16.msra.mxu0 %v2058
    %2239 = vmatprep.subr.bf16.mxu0 0
    %2240 = vmatpush1.bf16.msra.mxu0 %v2061
    %2241 = vmatprep.mubr.bf16.mxu0 %v2114
    %2242 = vmatmul.mubr.bf16.gmra.mrb[0].mxu0 %v2113
    %v2243 = vpop.f32.mrb[0].mxu0
    %v2244 = vadd.f32 %v2094, %v2243
    %v2245 = vpop.f32.mrb[0].mxu0
    %v2246 = vpop.f32.mrb[0].mxu0
    %v2247 = vadd.f32 %v2099, %v2246
    %v2248 = vpop.f32.mrb[0].mxu0
    %2249 = vdwg.mxu0
    %2250 = vmatprep.subr.bf16.mxu0 0
    %2251 = vmatpush1.bf16.msra.mxu0 %v2064
    %2252 = vmatprep.subr.bf16.mxu0 0
    %2253 = vmatpush1.bf16.msra.mxu0 %v2067
    %2254 = vmatprep.subr.bf16.mxu0 0
    %2255 = vmatpush1.bf16.msra.mxu0 %v2070
    %2256 = vmatprep.subr.bf16.mxu0 0
    %2257 = vmatpush1.bf16.msra.mxu0 %v2073
    %2258 = vmatprep.subr.bf16.mxu0 0
    %2259 = vmatpush1.bf16.msra.mxu0 %v2076
    %2260 = vmatprep.subr.bf16.mxu0 0
    %2261 = vmatpush1.bf16.msra.mxu0 %v2079
    %2262 = vmatprep.subr.bf16.mxu0 0
    %2263 = vmatpush1.bf16.msra.mxu0 %v2082
    %2264 = vmatprep.subr.bf16.mxu0 0
    %2265 = vmatpush1.bf16.msra.mxu0 %v2085
    %2266 = vmatprep.subr.bf16.mxu0 0
    %2267 = vmatpush1.bf16.msra.mxu0 %v2088
    %2268 = vmatprep.subr.bf16.mxu0 0
    %2269 = vmatpush1.bf16.msra.mxu0 0
    %2270 = vmatprep.subr.bf16.mxu0 0
    %2271 = vmatpush1.bf16.msra.mxu0 0
    %2272 = vmatprep.subr.bf16.mxu0 0
    %2273 = vmatpush1.bf16.msra.mxu0 0
    %2274 = vmatprep.subr.bf16.mxu0 0
    %2275 = vmatpush1.bf16.msra.mxu0 0
    %2276 = vmatprep.subr.bf16.mxu0 0
    %2277 = vmatpush1.bf16.msra.mxu0 0
    %2278 = vmatprep.subr.bf16.mxu0 0
    %2279 = vmatpush1.bf16.msra.mxu0 0
    %2280 = vmatprep.subr.bf16.mxu0 0
    %2281 = vmatpush1.bf16.msra.mxu0 0
    %2282 = vmatprep.mubr.bf16.mxu0 %v2121
    %2283 = vmatmul.mubr.bf16.gmra.mrb[0].mxu0 %v2115
    %v2284 = vpop.f32.mrb[0].mxu0
    %v2285 = vadd.f32 %v2244, %v2284
    %v2286 = vpop.f32.mrb[0].mxu0
    %v2287 = vpop.f32.mrb[0].mxu0
    %v2288 = vadd.f32 %v2247, %v2287
    %v2289 = vpop.f32.mrb[0].mxu0
    %2290 = vdwg.mxu0
    %s2291 = scalar_lea.vmem [#allocation4], 48
    %2292 = vst [vmem:[%s2291] sm:$0xff] %v2201
    %2293 = vst [vmem:[%s2291 + $0x8] sm:$0xff] %v2203
    %2294 = vst.msk [vmem:[%s2291 + $0x10] sm:$0xff] %vm36, %v2285
    %2295 = vst [vmem:[%s2291 + $0x18] sm:$0xff] %v2205
    %2296 = vst [vmem:[%s2291 + $0x20] sm:$0xff] %v2207
    %2297 = vst.msk [vmem:[%s2291 + $0x28] sm:$0xff] %vm36, %v2288
    %v2298 = vld [vmem:[%s6] sm:$0x7]
    %v2299 = vld [vmem:[%s7] sm:$0x7]
    %2301 = vset.pattern.permute.xlu0 0
    %2302 = vperm.xlu0 %2301, %v2299
    %v2303 = vpop.permute.xlu0 %2302
    %v2306 = vsel %vm932, %v2298, 0
    %2308 = vmatprep.subr.mxu0 %v2203
    %2309 = vmatpush1.msra.mxu0 %v2201
    %2310 = vmatprep.subr.mxu0 %v2207
    %2311 = vmatpush1.msra.mxu0 %v2205
    %2312 = vmatprep.subr.mxu0 0.0
    %2313 = vmatpush1.msra.mxu0 0.0
    %2314 = vmatprep.subr.mxu0 0.0
    %2315 = vmatpush1.msra.mxu0 0.0
    %2316 = vmatprep.subr.mxu0 0.0
    %2317 = vmatpush1.msra.mxu0 0.0
    %2318 = vmatprep.subr.mxu0 0.0
    %2319 = vmatpush1.msra.mxu0 0.0
    %2320 = vmatprep.subr.mxu0 0.0
    %2321 = vmatpush1.msra.mxu0 0.0
    %2322 = vmatprep.subr.mxu0 0.0
    %2323 = vmatpush1.msra.mxu0 0.0
    %2324 = vmatprep.subr.mxu0 0.0
    %2325 = vmatpush1.msra.mxu0 0.0
    %2326 = vmatprep.subr.mxu0 0.0
    %2327 = vmatpush1.msra.mxu0 0.0
    %2328 = vmatprep.subr.mxu0 0.0
    %2329 = vmatpush1.msra.mxu0 0.0
    %2330 = vmatprep.subr.mxu0 0.0
    %2331 = vmatpush1.msra.mxu0 0.0
    %2332 = vmatprep.subr.mxu0 0.0
    %2333 = vmatpush1.msra.mxu0 0.0
    %2334 = vmatprep.subr.mxu0 0.0
    %2335 = vmatpush1.msra.mxu0 0.0
    %2336 = vmatprep.subr.mxu0 0.0
    %2337 = vmatpush1.msra.mxu0 0.0
    %2338 = vmatprep.subr.mxu0 0.0
    %2339 = vmatpush1.msra.mxu0 0.0
    %2340 = vmatprep.subr.mxu0 0.0
    %2341 = vmatpush1.msra.mxu0 0.0
    %2342 = vmatprep.subr.mxu0 0.0
    %2343 = vmatpush1.msra.mxu0 0.0
    %2344 = vmatprep.subr.mxu0 0.0
    %2345 = vmatpush1.msra.mxu0 0.0
    %2346 = vmatprep.subr.mxu0 0.0
    %2347 = vmatpush1.msra.mxu0 0.0
    %2348 = vmatprep.subr.mxu0 0.0
    %2349 = vmatpush1.msra.mxu0 0.0
    %2350 = vmatprep.subr.mxu0 0.0
    %2351 = vmatpush1.msra.mxu0 0.0
    %2352 = vmatprep.subr.mxu0 0.0
    %2353 = vmatpush1.msra.mxu0 0.0
    %2354 = vmatprep.subr.mxu0 0.0
    %2355 = vmatpush1.msra.mxu0 0.0
    %2356 = vmatprep.subr.mxu0 0.0
    %2357 = vmatpush1.msra.mxu0 0.0
    %2358 = vmatprep.subr.mxu0 0.0
    %2359 = vmatpush1.msra.mxu0 0.0
    %2360 = vmatprep.subr.mxu0 0.0
    %2361 = vmatpush1.msra.mxu0 0.0
    %2362 = vmatprep.subr.mxu0 0.0
    %2363 = vmatpush1.msra.mxu0 0.0
    %2364 = vmatprep.subr.mxu0 0.0
    %2365 = vmatpush1.msra.mxu0 0.0
    %2366 = vmatprep.subr.mxu0 0.0
    %2367 = vmatpush1.msra.mxu0 0.0
    %2368 = vmatprep.subr.mxu0 0.0
    %2369 = vmatpush1.msra.mxu0 0.0
    %2370 = vmatprep.subr.mxu0 0.0
    %2371 = vmatpush1.msra.mxu0 0.0
    %2372 = vmatprep.mubr.f32.mxu0 0.0
    %2373 = vmatmul.mubr.f32.gmra.mrb[0].mxu0 %v2306
    %v2374 = vpop.f32.mrb[0].mxu0
    %v2375 = vadd.f32 %v2303, %v2374
    %v2376 = vpop.f32.mrb[0].mxu0
    %v2377 = vadd.f32 %v2303, %v2376
    %2378 = vdwg.mxu0
    %2379 = vmatprep.subr.mxu0 0.0
    %2380 = vmatpush1.msra.mxu0 %v2285
    %2381 = vmatprep.subr.mxu0 0.0
    %2382 = vmatpush1.msra.mxu0 %v2288
    %2383 = vmatprep.subr.mxu0 0.0
    %2384 = vmatpush1.msra.mxu0 0.0
    %2385 = vmatprep.subr.mxu0 0.0
    %2386 = vmatpush1.msra.mxu0 0.0
    %2387 = vmatprep.subr.mxu0 0.0
    %2388 = vmatpush1.msra.mxu0 0.0
    %2389 = vmatprep.subr.mxu0 0.0
    %2390 = vmatpush1.msra.mxu0 0.0
    %2391 = vmatprep.subr.mxu0 0.0
    %2392 = vmatpush1.msra.mxu0 0.0
    %2393 = vmatprep.subr.mxu0 0.0
    %2394 = vmatpush1.msra.mxu0 0.0
    %2395 = vmatprep.subr.mxu0 0.0
    %2396 = vmatpush1.msra.mxu0 0.0
    %2397 = vmatprep.subr.mxu0 0.0
    %2398 = vmatpush1.msra.mxu0 0.0
    %2399 = vmatprep.subr.mxu0 0.0
    %2400 = vmatpush1.msra.mxu0 0.0
    %2401 = vmatprep.subr.mxu0 0.0
    %2402 = vmatpush1.msra.mxu0 0.0
    %2403 = vmatprep.subr.mxu0 0.0
    %2404 = vmatpush1.msra.mxu0 0.0
    %2405 = vmatprep.subr.mxu0 0.0
    %2406 = vmatpush1.msra.mxu0 0.0
    %2407 = vmatprep.subr.mxu0 0.0
    %2408 = vmatpush1.msra.mxu0 0.0
    %2409 = vmatprep.subr.mxu0 0.0
    %2410 = vmatpush1.msra.mxu0 0.0
    %2411 = vmatprep.subr.mxu0 0.0
    %2412 = vmatpush1.msra.mxu0 0.0
    %2413 = vmatprep.subr.mxu0 0.0
    %2414 = vmatpush1.msra.mxu0 0.0
    %2415 = vmatprep.subr.mxu0 0.0
    %2416 = vmatpush1.msra.mxu0 0.0
    %2417 = vmatprep.subr.mxu0 0.0
    %2418 = vmatpush1.msra.mxu0 0.0
    %2419 = vmatprep.subr.mxu0 0.0
    %2420 = vmatpush1.msra.mxu0 0.0
    %2421 = vmatprep.subr.mxu0 0.0
    %2422 = vmatpush1.msra.mxu0 0.0
    %2423 = vmatprep.subr.mxu0 0.0
    %2424 = vmatpush1.msra.mxu0 0.0
    %2425 = vmatprep.subr.mxu0 0.0
    %2426 = vmatpush1.msra.mxu0 0.0
    %2427 = vmatprep.subr.mxu0 0.0
    %2428 = vmatpush1.msra.mxu0 0.0
    %2429 = vmatprep.subr.mxu0 0.0
    %2430 = vmatpush1.msra.mxu0 0.0
    %2431 = vmatprep.subr.mxu0 0.0
    %2432 = vmatpush1.msra.mxu0 0.0
    %2433 = vmatprep.subr.mxu0 0.0
    %2434 = vmatpush1.msra.mxu0 0.0
    %2435 = vmatprep.subr.mxu0 0.0
    %2436 = vmatpush1.msra.mxu0 0.0
    %2437 = vmatprep.subr.mxu0 0.0
    %2438 = vmatpush1.msra.mxu0 0.0
    %2439 = vmatprep.subr.mxu0 0.0
    %2440 = vmatpush1.msra.mxu0 0.0
    %2441 = vmatprep.subr.mxu0 0.0
    %2442 = vmatpush1.msra.mxu0 0.0
    %2443 = vmatprep.mubr.f32.mxu0 0.0
    %2444 = vmatmul.mubr.f32.gmra.mrb[0].mxu0 %v2306
    %v2445 = vpop.f32.mrb[0].mxu0
    %v2446 = vadd.f32 %v2303, %v2445
    %v2447 = vpop.f32.mrb[0].mxu0
    %2448 = vdwg.mxu0
    %v2451 = vcombine.low %v2375, %v2377
    %s2453 = scalar_lea.vmem %s9, 12
    %2454 = vst [vmem:[%s2453] sm:$0x77] %v2451
    %2455 = vst.msk [vmem:[%s2453 + $0x8] sm:$0x7] %vm1266, %v2446
    // Predicated region
    $region34: #{tpu_custom_call.1} parent=1 // pred_check
      _
    $region35: #{tpu_custom_call.1} parent=1 // pred_check_branch
      %2457 = sbr.rel (0) target = $region37
    $region36: #{tpu_custom_call.1} parent=1 // pred_region
      %s2459 = ssub.s32 1536, 1536
      %2460 = vsyncadd [#allocation5], %s2459
      %s2461 = sshll.u32 [#allocation4], 4
      %s2462 = int_to_ptr.vmem [resolvable:$true] %s2461
      %2467 = dma.vmem_to_hbm [thread:$0]  %s2462, 1536, %s8, [#allocation5], 384, 384, 24
    $region37: #{tpu_custom_call.1} parent=1 // pred_fallthru
      _
    // Predicated region
    $region38: #{tpu_custom_call.1} parent=1 // pred_check
      _
    $region39: #{tpu_custom_call.1} parent=1 // pred_check_branch
      %2469 = sbr.rel (0) target = $region41
    $region40: #{tpu_custom_call.1} parent=1 // pred_region
      _
    $region41: #{tpu_custom_call.1} parent=1 // pred_fallthru
      _
    // Predicated region
    $region42: #{tpu_custom_call.1} parent=1 // pred_check
      _
    $region43: #{tpu_custom_call.1} parent=1 // pred_check_branch
      %2471 = sbr.rel (0) target = $region45
    $region44: #{tpu_custom_call.1} parent=1 // pred_region
      %2472 = dma.done [#allocation5], 1536
    $region45: #{tpu_custom_call.1} parent=1 // pred_fallthru
      _
    // Predicated region
    $region46: #{tpu_custom_call.1} parent=1 // pred_check
      _
    $region47: #{tpu_custom_call.1} parent=1 // pred_check_branch
      %2474 = sbr.rel (0) target = $region49
    $region48: #{tpu_custom_call.1} parent=1 // pred_region
      _
    $region49: #{tpu_custom_call.1} parent=1 // pred_fallthru
      _
    %2475 = vsyncpa [#allocation5], 1

</llo_original>
